<compile_context>
chip_gen: v5e
topology: v5e:2x2
jax: 0.10.0
libtpu: 0.0.40
codegen_flags: <defaults>
</compile_context>

<pallas_src>
import jax
import jax.numpy as jnp
from jax import lax
from jax.experimental import pallas as pl
from jax.experimental.pallas import tpu as pltpu

# ----------------------------- config (small, consistent with the module) ----
B = 2          # batch (power of 2 assumed for the bitwise batch selectors)
LT = 16        # context sequence length (power of 2 assumed for the max tree)
LA = 8         # aspect sequence length
D = 32         # opt.bert_dim (original 768)
H = 16         # per-direction LSTM hidden (original 384); 2*H == D
CO = 50        # conv / fc2 channels (as in the module)
COP = 64       # CO zero-padded to a lane-friendly width (per conv)
C = 3          # opt.polarities_dim
VOCAB = 30

NT = LT * B    # flattened time-major text rows
NA = LA * B    # flattened time-major aspect rows

F32 = jnp.float32


# ----------------------------- fully fused METNet kernel ----------------------
def _metnet_kernel(
    emb_t_ref, emb_a_ref, posw_ref, invf_ref, inva_ref,
    wpT_ref, bp_ref,
    l1_wih_ref, l1_whh_ref, l1_b_ref,
    l2_wih_ref, l2_whh_ref, l2_b_ref,
    fc1_weT_ref, fc1_wvT_ref, fc1_b_ref,
    fc2_wT_ref, fc2_b_ref,
    conv_wT_ref, conv_b_ref,
    fcT_ref, fc_b_ref,
    o_ref,
    xp_ref, hst_ref,
):
    f32 = jnp.float32

    # ---------- small iota-built selector matrices (kept lane-dense) ----------
    def batch_selectors(n_rows):
        """ssum (B, n): per-batch row-sum selector;  bsel (n, B): per-batch bcast."""
        r = lax.broadcasted_iota(jnp.int32, (B, n_rows), 0)
        c = lax.broadcasted_iota(jnp.int32, (B, n_rows), 1)
        ssum = ((c & (B - 1)) == r).astype(f32)
        r2 = lax.broadcasted_iota(jnp.int32, (n_rows, B), 0)
        c2 = lax.broadcasted_iota(jnp.int32, (n_rows, B), 1)
        bsel = ((r2 & (B - 1)) == c2).astype(f32)
        return ssum, bsel

    def time_rev_perm(n_rows):
        """(n, n) permutation: row r = t*B+b  ->  source row (L-1-t)*B + b."""
        r = lax.broadcasted_iota(jnp.int32, (n_rows, n_rows), 0)
        c = lax.broadcasted_iota(jnp.int32, (n_rows, n_rows), 1)
        rev = (n_rows - B) - r + 2 * (r & (B - 1))
        return (c == rev).astype(f32)

    def proj(x):
        """BERT-stub projection: (N, D) @ (D, D) + b."""
        return jnp.dot(x, wpT_ref[...], preferred_element_type=f32) + bp_ref[...]

    # ---------------------------- fused bidirectional LSTM --------------------
    def bilstm(x, Lx, wih_ref, whh_ref, b_ref):
        """x: (Lx*B, D) time-major rows.  Returns (Lx*B, 2H) = [h_fwd | h_bwd]
        in sequence order (PyTorch bidirectional layout).

        Gate columns are gate-major / direction-minor
        ([i_f,i_b,f_f,f_b,g_f,g_b,o_f,o_b]); i/f/o weight columns were
        pre-scaled by 0.5 so sigmoid(x) = 0.5*tanh(x/2) + 0.5 costs one tanh.
        """
        Nx = Lx * B
        P = time_rev_perm(Nx)

        # Hoisted input projection for BOTH directions (one lane-dense matmul);
        # the backward lanes are pre-reversed in time so every step reads a
        # single 128-lane row from the scratch.
        xp = jnp.dot(x, wih_ref[...], preferred_element_type=f32) + b_ref[...]
        lane8 = lax.broadcasted_iota(jnp.int32, (Nx, 8 * H), 1)
        bwd = (lane8 & H) != 0                      # odd H-blocks = backward dir
        xp = jnp.where(bwd, jnp.dot(P, xp, preferred_element_type=f32), xp)
        xp_ref[0:Nx, :] = xp

        whh = whh_ref[...]                          # (2H, 8H) block-diagonal
        glane = lax.broadcasted_iota(jnp.int32, (B, 8 * H), 1)
        g_sel = (glane >= 4 * H) & (glane < 6 * H)  # tanh (cell-input) lanes

        def one_step(t, carry):
            h, cst = carry                          # (B, 2H) = [fwd | bwd]
            row = pl.multiple_of(t * B, B)
            x_t = xp_ref[pl.ds(row, B), :]          # (B, 8H) single row load
            gates = x_t + jnp.dot(h, whh, preferred_element_type=f32)
            th = jnp.tanh(gates)                    # one EUP pass per step
            act = jnp.where(g_sel, th, 0.5 * th + 0.5)
            i_g = act[:, 0:2 * H]
            f_g = act[:, 2 * H:4 * H]
            g_g = act[:, 4 * H:6 * H]
            o_g = act[:, 6 * H:8 * H]
            c_new = f_g * cst + i_g * g_g
            h_new = o_g * jnp.tanh(c_new)
            hst_ref[pl.ds(row, B), :] = h_new       # step-ordered, both dirs
            return h_new, c_new

        UNROLL = 4
        assert Lx % UNROLL == 0

        def block(blk, carry):                      # fori_loop + manual unroll
            for u in range(UNROLL):
                carry = one_step(blk * UNROLL + u, carry)
            return carry

        zero = jnp.zeros((B, 2 * H), f32)
        lax.fori_loop(0, Lx // UNROLL, block, (zero, zero))

        hs = hst_ref[0:Nx, :]
        lane2 = lax.broadcasted_iota(jnp.int32, (Nx, 2 * H), 1)
        # backward half re-ordered back to sequence order (reuse P)
        return jnp.where(lane2 < H, hs,
                         jnp.dot(P, hs, preferred_element_type=f32))

    # ---------------- BERT stub projection ----------------
    v = proj(emb_t_ref[...])                        # (NT, D)
    e_in = proj(emb_a_ref[...])                     # (NA, D)

    ssum_t, bsel_t = batch_selectors(NT)
    ssum_a, _ = batch_selectors(NA)

    # ---------------- lstm2 on aspect + mean pool ----------------
    # TODO(synk): mean pool sums all positions (no pad mask); matches packed
    # DynamicLSTM only because the synthetic inputs have no padding.
    ea = bilstm(e_in, LA, l2_wih_ref, l2_whh_ref, l2_b_ref)             # (NA, D)
    e = jnp.dot(ssum_a, ea, preferred_element_type=f32) * inva_ref[...]  # (B, D)

    # ---------------- 4 refinement iterations ----------------
    fc1_weT = fc1_weT_ref[...]
    fc1_wvT = fc1_wvT_ref[...]
    fc1_b = fc1_b_ref[...]
    inv_f = invf_ref[...]

    v = bilstm(v, LT, l1_wih_ref, l1_whh_ref, l1_b_ref)                  # (NT, D)
    for i in range(4):
        if i != 0:
            v = bilstm(v, LT, l1_wih_ref, l1_whh_ref, l1_b_ref)
        e = e + jnp.dot(ssum_t, v, preferred_element_type=f32) * inv_f   # e += mean_t(v)
        # relu(fc1([e_enlarge | v])) with the identical-row e-half factored out:
        e_part = jnp.dot(e, fc1_weT, preferred_element_type=f32)         # (B, D)
        v_part = jnp.dot(v, fc1_wvT, preferred_element_type=f32)         # (NT, D)
        e_rows = jnp.dot(bsel_t, e_part, preferred_element_type=f32)     # (NT, D)
        aspect_mid = jnp.maximum(v_part + e_rows + fc1_b, 0.0)
        v = aspect_mid + v

    # ---------------- absolute position weighting ----------------
    v = v * posw_ref[...]                                                # (NT, D)

    # fc2(e_enlarge): identical rows -> single (B, D) x (D, COP) matmul
    ee = jnp.dot(e, fc2_wT_ref[...], preferred_element_type=f32) + fc2_b_ref[...]

    # ---------------- convs1/convs2 (k=3, pad=1) via row-shift selectors -------
    rr = lax.broadcasted_iota(jnp.int32, (NT, NT), 0)
    cc = lax.broadcasted_iota(jnp.int32, (NT, NT), 1)
    s_prev = (cc == rr - B).astype(f32)       # picks in[t-1] (zero row at t=0)
    s_next = (cc == rr + B).astype(f32)       # picks in[t+1] (zero row at t=L-1)
    acc = (jnp.dot(v, conv_wT_ref[1], preferred_element_type=f32)
           + jnp.dot(jnp.dot(s_prev, v, preferred_element_type=f32),
                     conv_wT_ref[0], preferred_element_type=f32)
           + jnp.dot(jnp.dot(s_next, v, preferred_element_type=f32),
                     conv_wT_ref[2], preferred_element_type=f32)
           + conv_b_ref[...])                  # (NT, 2*COP)
    v1 = acc[:, :COP]                                      # convs1 (padded chans)
    v2 = acc[:, COP:] + jnp.dot(bsel_t, ee, preferred_element_type=f32)  # + fc2(e)
    z = jnp.tanh(v1) * jnp.maximum(v2, 0.0)                # padded lanes stay 0

    # max_pool1d over the time dimension: tree of aligned row-block maxima
    n = LT
    while n > 1:
        half = n // 2
        z = jnp.maximum(z[: half * B, :], z[half * B: n * B, :])
        n = half
    zmax = z                                               # (B, COP)

    out = jnp.dot(zmax, fcT_ref[...], preferred_element_type=f32) + fc_b_ref[...]
    o_ref[...] = out                                       # (B, C)


# ----------------------------- position embedding weights (glue) --------------
def position_weights(pos_inx, L):
    j = jnp.arange(L, dtype=F32)[None, :]                  # (1, L)
    p0 = pos_inx[:, 0:1].astype(F32)
    p1 = pos_inx[:, 1:2].astype(F32)
    return jnp.where(j < p1, 1.0 - (p1 - j) / 40.0, 1.0 - (j - p0) / 40.0)  # (B, L)


# ----------------------------- parameter init (PyTorch-ish layouts) -----------
def _rand(key, shape, scale=0.1):
    return jax.random.normal(key, shape, F32) * scale


def init_lstm_params(key):
    # TODO(synk): PyTorch nn.LSTM has b_ih + b_hh; a single combined bias per
    # direction is used here (sum them when loading real checkpoints).
    ks = jax.random.split(key, 6)
    return {
        "wih_f": _rand(ks[0], (D, 4 * H)),
        "whh_f": _rand(ks[1], (H, 4 * H)),
        "b_f": _rand(ks[2], (1, 4 * H)),
        "wih_b": _rand(ks[3], (D, 4 * H)),
        "whh_b": _rand(ks[4], (H, 4 * H)),
        "b_b": _rand(ks[5], (1, 4 * H)),
    }


def init_params(key):
    ks = jax.random.split(key, 16)
    return {
        # TODO(synk): real BERT encoder is external; stubbed as embedding lookup + linear.
        "embed": _rand(ks[0], (VOCAB, D)),
        "bert_proj": {"w": _rand(ks[1], (D, D)), "b": _rand(ks[2], (1, D))},
        "lstm1": init_lstm_params(ks[3]),
        "lstm2": init_lstm_params(ks[4]),
        "fc1": {"w": _rand(ks[5], (D, 2 * D)), "b": _rand(ks[6], (1, D))},
        "fc2": {"w": _rand(ks[7], (CO, D)), "b": _rand(ks[8], (1, CO))},
        "conv1_w": _rand(ks[9], (CO, D, 3)),
        "conv1_b": _rand(ks[10], (CO,)),
        "conv2_w": _rand(ks[11], (CO, D, 3)),
        "conv2_b": _rand(ks[12], (CO,)),
        "fc_w": _rand(ks[13], (C, CO)),
        "fc_b": _rand(ks[14], (1, C)),
    }


# ----------------------------- one-time weight packing for the kernel ---------
def _pack_lstm(lp):
    """Pack a bidirectional LSTM into wih (D, 8H), whh (2H, 8H), b (1, 8H).

    Column order is gate-major / direction-minor: [i_f,i_b,f_f,f_b,g_f,g_b,o_f,o_b];
    whh is block-diagonal over the packed [h_f | h_b] state; the i/f/o columns
    are pre-scaled by 0.5 for the sigmoid-via-tanh trick.
    """
    wih_blocks, whh_blocks, b_blocks = [], [], []
    zH = jnp.zeros((H, H), F32)
    for gi in range(4):                       # gate order i, f, g, o
        s = 1.0 if gi == 2 else 0.5
        cols = slice(gi * H, (gi + 1) * H)
        wih_blocks += [lp["wih_f"][:, cols] * s, lp["wih_b"][:, cols] * s]
        whh_blocks += [jnp.concatenate([lp["whh_f"][:, cols] * s, zH], axis=0),
                       jnp.concatenate([zH, lp["whh_b"][:, cols] * s], axis=0)]
        b_blocks += [lp["b_f"][:, cols] * s, lp["b_b"][:, cols] * s]
    return (jnp.concatenate(wih_blocks, axis=1),
            jnp.concatenate(whh_blocks, axis=1),
            jnp.concatenate(b_blocks, axis=1))


def pack_params(p):
    def pad_cols(w, n):
        return jnp.pad(w, ((0, 0), (0, n - w.shape[1])))

    def conv_tap(w, k):                        # (CO, D, 3) -> (D, COP) tap k
        return pad_cols(w[:, :, k].T, COP)

    conv_wT = jnp.stack(
        [jnp.concatenate([conv_tap(p["conv1_w"], k), conv_tap(p["conv2_w"], k)],
                         axis=1) for k in range(3)], axis=0)        # (3, D, 2*COP)
    conv_b = jnp.concatenate(
        [pad_cols(p["conv1_b"].reshape(1, CO), COP),
         pad_cols(p["conv2_b"].reshape(1, CO), COP)], axis=1)       # (1, 2*COP)

    l1 = _pack_lstm(p["lstm1"])
    l2 = _pack_lstm(p["lstm2"])
    return {
        "embed": p["embed"],
        "wpT": p["bert_proj"]["w"].T,                               # (D, D)
        "bp": p["bert_proj"]["b"],                                  # (1, D)
        "l1_wih": l1[0], "l1_whh": l1[1], "l1_b": l1[2],
        "l2_wih": l2[0], "l2_whh": l2[1], "l2_b": l2[2],
        "fc1_weT": p["fc1"]["w"][:, :D].T,                          # (D, D)
        "fc1_wvT": p["fc1"]["w"][:, D:].T,                          # (D, D)
        "fc1_b": p["fc1"]["b"],                                     # (1, D)
        "fc2_wT": pad_cols(p["fc2"]["w"].T, COP),                   # (D, COP)
        "fc2_b": pad_cols(p["fc2"]["b"], COP),                      # (1, COP)
        "conv_wT": conv_wT,
        "conv_b": conv_b,
        "fcT": jnp.pad(p["fc_w"].T, ((0, COP - CO), (0, 0))),       # (COP, C)
        "fc_b": p["fc_b"],                                          # (1, C)
    }


# ----------------------------- full METNet forward -----------------------------
def metnet_forward(packed, text_raw_indices, aspect_indices, aspect_in_text):
    feature_len = jnp.sum(text_raw_indices != 0, axis=-1)     # (B,)
    aspect_len = jnp.sum(aspect_indices != 0, axis=-1)        # (B,)

    # TODO(synk): real BERT encoder is external; stubbed as embedding lookup +
    # in-kernel linear.  SqueezeEmbedding / DynamicLSTM packing and dropout are
    # identity (no padding in the synthetic inputs, eval mode).
    emb_t = packed["embed"][text_raw_indices].astype(F32)     # (B, LT, D)
    emb_a = packed["embed"][aspect_indices].astype(F32)       # (B, LA, D)

    # Time-major flattened layout (row = t*B + b): every in-kernel tensor is 2-D.
    emb_t_f = jnp.transpose(emb_t, (1, 0, 2)).reshape(NT, D)
    emb_a_f = jnp.transpose(emb_a, (1, 0, 2)).reshape(NA, D)

    posw = position_weights(aspect_in_text, LT)               # (B, LT)
    posw_f = jnp.broadcast_to(posw.T.reshape(NT, 1), (NT, D)) # lane-dense
    inv_f = jnp.broadcast_to((1.0 / feature_len.astype(F32))[:, None], (B, D))
    inv_a = jnp.broadcast_to((1.0 / aspect_len.astype(F32))[:, None], (B, D))

    weight_names = ["wpT", "bp",
                    "l1_wih", "l1_whh", "l1_b",
                    "l2_wih", "l2_whh", "l2_b",
                    "fc1_weT", "fc1_wvT", "fc1_b",
                    "fc2_wT", "fc2_b", "conv_wT", "conv_b",
                    "fcT", "fc_b"]
    weights = [packed[n] for n in weight_names]

    # Single invocation, whole batch, everything (<1 MiB) resident in VMEM.
    out = pl.pallas_call(
        _metnet_kernel,
        out_shape=jax.ShapeDtypeStruct((B, C), F32),
        scratch_shapes=[
            pltpu.VMEM((NT, 8 * H), F32),   # hoisted LSTM input projections
            pltpu.VMEM((NT, 2 * H), F32),   # per-step LSTM hidden states
        ],
    )(emb_t_f, emb_a_f, posw_f, inv_f, inv_a, *weights)
    return out


# ----------------------------- main -------------------------------------------
if __name__ == "__main__":
    assert B & (B - 1) == 0 and LT & (LT - 1) == 0  # required by selector / max-tree tricks

    key = jax.random.PRNGKey(0)
    k_param, k_text, k_asp = jax.random.split(key, 3)

    params = init_params(k_param)
    packed = pack_params(params)

    text_raw_indices = jax.random.randint(k_text, (B, LT), 1, VOCAB, dtype=jnp.int32)
    aspect_indices = jax.random.randint(k_asp, (B, LA), 1, VOCAB, dtype=jnp.int32)
    aspect_in_text = jnp.array([[3, 5], [7, 9]], dtype=jnp.int32)

    fwd = jax.jit(metnet_forward)
    out = jax.block_until_ready(
        fwd(packed, text_raw_indices, aspect_indices, aspect_in_text))
    assert out.shape == (B, C), out.shape
    print("KERNEL_OK")
</pallas_src>

<mosaic_0001>
module attributes {stable_mosaic.version = 11 : i64} {
  func.func @_metnet_kernel(%arg0: memref<32x32xf32, #tpu.memory_space<vmem>>, %arg1: memref<16x32xf32, #tpu.memory_space<vmem>>, %arg2: memref<32x32xf32, #tpu.memory_space<vmem>>, %arg3: memref<2x32xf32, #tpu.memory_space<vmem>>, %arg4: memref<2x32xf32, #tpu.memory_space<vmem>>, %arg5: memref<32x32xf32, #tpu.memory_space<vmem>>, %arg6: memref<1x32xf32, #tpu.memory_space<vmem>>, %arg7: memref<32x128xf32, #tpu.memory_space<vmem>>, %arg8: memref<32x128xf32, #tpu.memory_space<vmem>>, %arg9: memref<1x128xf32, #tpu.memory_space<vmem>>, %arg10: memref<32x128xf32, #tpu.memory_space<vmem>>, %arg11: memref<32x128xf32, #tpu.memory_space<vmem>>, %arg12: memref<1x128xf32, #tpu.memory_space<vmem>>, %arg13: memref<32x32xf32, #tpu.memory_space<vmem>>, %arg14: memref<32x32xf32, #tpu.memory_space<vmem>>, %arg15: memref<1x32xf32, #tpu.memory_space<vmem>>, %arg16: memref<32x64xf32, #tpu.memory_space<vmem>>, %arg17: memref<1x64xf32, #tpu.memory_space<vmem>>, %arg18: memref<3x32x128xf32, #tpu.memory_space<vmem>>, %arg19: memref<1x128xf32, #tpu.memory_space<vmem>>, %arg20: memref<64x3xf32, #tpu.memory_space<vmem>>, %arg21: memref<1x3xf32, #tpu.memory_space<vmem>>, %arg22: memref<2x3xf32, #tpu.memory_space<vmem>>, %arg23: memref<32x128xf32, #tpu.memory_space<vmem>>, %arg24: memref<32x32xf32, #tpu.memory_space<vmem>>) attributes {dimension_semantics = [], scalar_prefetch = 0 : i64, scratch_operands = 2 : i64, tpu.core_type = #tpu.core_type<tc>} {
    %c0 = arith.constant 0 : index
    %c0_0 = arith.constant 0 : index
    %0 = vector.load %arg0[%c0, %c0_0] : memref<32x32xf32, #tpu.memory_space<vmem>>, vector<32x32xf32>
    %c0_1 = arith.constant 0 : index
    %c0_2 = arith.constant 0 : index
    %1 = vector.load %arg5[%c0_1, %c0_2] : memref<32x32xf32, #tpu.memory_space<vmem>>, vector<32x32xf32>
    %cst = arith.constant dense<0.000000e+00> : vector<32x32xf32>
    %2 = tpu.matmul %0, %1, %cst {dimension_numbers = #tpu.dot_dimension_numbers<[1], [0], [0], [1], [0, 0, 1, 1], [], []>} : vector<32x32xf32>, vector<32x32xf32>, vector<32x32xf32> -> vector<32x32xf32>
    %c0_3 = arith.constant 0 : index
    %c0_4 = arith.constant 0 : index
    %3 = vector.load %arg6[%c0_3, %c0_4] : memref<1x32xf32, #tpu.memory_space<vmem>>, vector<1x32xf32>
    %4 = vector.broadcast %3 : vector<1x32xf32> to vector<32x32xf32>
    %5 = arith.addf %2, %4 : vector<32x32xf32>
    %c0_5 = arith.constant 0 : index
    %c0_6 = arith.constant 0 : index
    %6 = vector.load %arg1[%c0_5, %c0_6] : memref<16x32xf32, #tpu.memory_space<vmem>>, vector<16x32xf32>
    %c0_7 = arith.constant 0 : index
    %c0_8 = arith.constant 0 : index
    %7 = vector.load %arg5[%c0_7, %c0_8] : memref<32x32xf32, #tpu.memory_space<vmem>>, vector<32x32xf32>
    %cst_9 = arith.constant dense<0.000000e+00> : vector<16x32xf32>
    %8 = tpu.matmul %6, %7, %cst_9 {dimension_numbers = #tpu.dot_dimension_numbers<[1], [0], [0], [1], [0, 0, 1, 1], [], []>} : vector<16x32xf32>, vector<32x32xf32>, vector<16x32xf32> -> vector<16x32xf32>
    %c0_10 = arith.constant 0 : index
    %c0_11 = arith.constant 0 : index
    %9 = vector.load %arg6[%c0_10, %c0_11] : memref<1x32xf32, #tpu.memory_space<vmem>>, vector<1x32xf32>
    %10 = vector.broadcast %9 : vector<1x32xf32> to vector<16x32xf32>
    %11 = arith.addf %8, %10 : vector<16x32xf32>
    %12 = tpu.iota {dimensions = array<i32: 0>} : vector<2x32xi32>
    %13 = tpu.iota {dimensions = array<i32: 1>} : vector<2x32xi32>
    %c1_i32 = arith.constant 1 : i32
    %14 = vector.broadcast %c1_i32 : i32 to vector<2x32xi32>
    %15 = arith.andi %13, %14 : vector<2x32xi32>
    %16 = arith.cmpi eq, %15, %12 : vector<2x32xi32>
    %17 = arith.extui %16 : vector<2x32xi1> to vector<2x32xi32>
    %18 = arith.sitofp %17 : vector<2x32xi32> to vector<2x32xf32>
    %19 = tpu.iota {dimensions = array<i32: 0>} : vector<32x2xi32>
    %20 = tpu.iota {dimensions = array<i32: 1>} : vector<32x2xi32>
    %c1_i32_12 = arith.constant 1 : i32
    %21 = vector.broadcast %c1_i32_12 : i32 to vector<32x2xi32>
    %22 = arith.andi %19, %21 : vector<32x2xi32>
    %23 = arith.cmpi eq, %22, %20 : vector<32x2xi32>
    %24 = arith.extui %23 : vector<32x2xi1> to vector<32x2xi32>
    %25 = arith.sitofp %24 : vector<32x2xi32> to vector<32x2xf32>
    %26 = tpu.iota {dimensions = array<i32: 0>} : vector<2x16xi32>
    %27 = tpu.iota {dimensions = array<i32: 1>} : vector<2x16xi32>
    %c1_i32_13 = arith.constant 1 : i32
    %28 = vector.broadcast %c1_i32_13 : i32 to vector<2x16xi32>
    %29 = arith.andi %27, %28 : vector<2x16xi32>
    %30 = arith.cmpi eq, %29, %26 : vector<2x16xi32>
    %31 = arith.extui %30 : vector<2x16xi1> to vector<2x16xi32>
    %32 = arith.sitofp %31 : vector<2x16xi32> to vector<2x16xf32>
    %33 = tpu.iota {dimensions = array<i32: 0>} : vector<16x16xi32>
    %34 = tpu.iota {dimensions = array<i32: 1>} : vector<16x16xi32>
    %c14_i32 = arith.constant 14 : i32
    %35 = vector.broadcast %c14_i32 : i32 to vector<16x16xi32>
    %36 = arith.subi %35, %33 : vector<16x16xi32>
    %c1_i32_14 = arith.constant 1 : i32
    %37 = vector.broadcast %c1_i32_14 : i32 to vector<16x16xi32>
    %38 = arith.andi %33, %37 : vector<16x16xi32>
    %c2_i32 = arith.constant 2 : i32
    %39 = vector.broadcast %c2_i32 : i32 to vector<16x16xi32>
    %40 = arith.muli %39, %38 : vector<16x16xi32>
    %41 = arith.addi %36, %40 : vector<16x16xi32>
    %42 = arith.cmpi eq, %34, %41 : vector<16x16xi32>
    %43 = arith.extui %42 : vector<16x16xi1> to vector<16x16xi32>
    %44 = arith.sitofp %43 : vector<16x16xi32> to vector<16x16xf32>
    %c0_15 = arith.constant 0 : index
    %c0_16 = arith.constant 0 : index
    %45 = vector.load %arg10[%c0_15, %c0_16] : memref<32x128xf32, #tpu.memory_space<vmem>>, vector<32x128xf32>
    %cst_17 = arith.constant dense<0.000000e+00> : vector<16x128xf32>
    %46 = tpu.matmul %11, %45, %cst_17 {dimension_numbers = #tpu.dot_dimension_numbers<[1], [0], [0], [1], [0, 0, 1, 1], [], []>} : vector<16x32xf32>, vector<32x128xf32>, vector<16x128xf32> -> vector<16x128xf32>
    %c0_18 = arith.constant 0 : index
    %c0_19 = arith.constant 0 : index
    %47 = vector.load %arg12[%c0_18, %c0_19] : memref<1x128xf32, #tpu.memory_space<vmem>>, vector<1x128xf32>
    %48 = vector.broadcast %47 : vector<1x128xf32> to vector<16x128xf32>
    %49 = arith.addf %46, %48 : vector<16x128xf32>
    %50 = tpu.iota {dimensions = array<i32: 1>} : vector<16x128xi32>
    %c16_i32 = arith.constant 16 : i32
    %51 = vector.broadcast %c16_i32 : i32 to vector<16x128xi32>
    %52 = arith.andi %50, %51 : vector<16x128xi32>
    %c0_i32 = arith.constant 0 : i32
    %53 = vector.broadcast %c0_i32 : i32 to vector<16x128xi32>
    %54 = arith.cmpi ne, %52, %53 : vector<16x128xi32>
    %cst_20 = arith.constant dense<0.000000e+00> : vector<16x128xf32>
    %55 = tpu.matmul %44, %49, %cst_20 {dimension_numbers = #tpu.dot_dimension_numbers<[1], [0], [0], [1], [0, 0, 1, 1], [], []>} : vector<16x16xf32>, vector<16x128xf32>, vector<16x128xf32> -> vector<16x128xf32>
    %56 = arith.select %54, %55, %49 : vector<16x128xi1>, vector<16x128xf32>
    %c0_21 = arith.constant 0 : index
    %c0_22 = arith.constant 0 : index
    %57 = vector.load %arg23[%c0_21, %c0_22] : memref<32x128xf32, #tpu.memory_space<vmem>>, vector<16x128xf32>
    tpu.vector_store %arg23[%c0_21, %c0_22], %56 {strides = array<i32>} : memref<32x128xf32, #tpu.memory_space<vmem>>, vector<16x128xf32>,
    %c0_23 = arith.constant 0 : index
    %c0_24 = arith.constant 0 : index
    %58 = vector.load %arg11[%c0_23, %c0_24] : memref<32x128xf32, #tpu.memory_space<vmem>>, vector<32x128xf32>
    %59 = tpu.iota {dimensions = array<i32: 1>} : vector<2x128xi32>
    %c64_i32 = arith.constant 64 : i32
    %60 = vector.broadcast %c64_i32 : i32 to vector<2x128xi32>
    %61 = arith.cmpi sge, %59, %60 : vector<2x128xi32>
    %c96_i32 = arith.constant 96 : i32
    %62 = vector.broadcast %c96_i32 : i32 to vector<2x128xi32>
    %63 = arith.cmpi slt, %59, %62 : vector<2x128xi32>
    %64 = arith.andi %61, %63 : vector<2x128xi1>
    %cst_25 = arith.constant 0.000000e+00 : f32
    %65 = vector.broadcast %cst_25 : f32 to vector<2x32xf32>
    %c0_i32_26 = arith.constant 0 : i32
    %c2_i32_27 = arith.constant 2 : i32
    %66 = arith.addi %c0_i32_26, %c2_i32_27 : i32
    %c1_i32_28 = arith.constant 1 : i32
    %67:2 = scf.for %arg25 = %c0_i32_26 to %66 step %c1_i32_28 iter_args(%arg26 = %65, %arg27 = %65) -> (vector<2x32xf32>, vector<2x32xf32>)  : i32 {
      %c4_i32_199 = arith.constant 4 : i32
      %354 = arith.muli %arg25, %c4_i32_199 : i32
      %c0_i32_200 = arith.constant 0 : i32
      %355 = arith.addi %354, %c0_i32_200 : i32
      %c2_i32_201 = arith.constant 2 : i32
      %356 = arith.muli %355, %c2_i32_201 : i32
      %357 = tpu.assume_multiple %356, 2 : i32
      %358 = arith.index_cast %357 : i32 to index
      %c0_202 = arith.constant 0 : index
      %359 = vector.load %arg23[%358, %c0_202] : memref<32x128xf32, #tpu.memory_space<vmem>>, vector<2x128xf32>
      %cst_203 = arith.constant dense<0.000000e+00> : vector<2x128xf32>
      %360 = tpu.matmul %arg26, %58, %cst_203 {dimension_numbers = #tpu.dot_dimension_numbers<[1], [0], [0], [1], [0, 0, 1, 1], [], []>} : vector<2x32xf32>, vector<32x128xf32>, vector<2x128xf32> -> vector<2x128xf32>
      %361 = arith.addf %359, %360 : vector<2x128xf32>
      %362 = math.tanh %361 : vector<2x128xf32>
      %cst_204 = arith.constant 5.000000e-01 : f32
      %363 = vector.broadcast %cst_204 : f32 to vector<2x128xf32>
      %364 = arith.mulf %363, %362 : vector<2x128xf32>
      %cst_205 = arith.constant 5.000000e-01 : f32
      %365 = vector.broadcast %cst_205 : f32 to vector<2x128xf32>
      %366 = arith.addf %364, %365 : vector<2x128xf32>
      %367 = arith.select %64, %362, %366 : vector<2x128xi1>, vector<2x128xf32>
      %368 = vector.extract_strided_slice %367 {offsets = [0, 0], sizes = [2, 32], strides = [1, 1]} : vector<2x128xf32> to vector<2x32xf32>
      %369 = vector.extract_strided_slice %367 {offsets = [0, 32], sizes = [2, 32], strides = [1, 1]} : vector<2x128xf32> to vector<2x32xf32>
      %370 = vector.extract_strided_slice %367 {offsets = [0, 64], sizes = [2, 32], strides = [1, 1]} : vector<2x128xf32> to vector<2x32xf32>
      %371 = vector.extract_strided_slice %367 {offsets = [0, 96], sizes = [2, 32], strides = [1, 1]} : vector<2x128xf32> to vector<2x32xf32>
      %372 = arith.mulf %369, %arg27 : vector<2x32xf32>
      %373 = arith.mulf %368, %370 : vector<2x32xf32>
      %374 = arith.addf %372, %373 : vector<2x32xf32>
      %375 = math.tanh %374 : vector<2x32xf32>
      %376 = arith.mulf %371, %375 : vector<2x32xf32>
      %377 = arith.index_cast %357 : i32 to index
      %c0_206 = arith.constant 0 : index
      %378 = vector.load %arg24[%377, %c0_206] : memref<32x32xf32, #tpu.memory_space<vmem>>, vector<2x32xf32>
      tpu.vector_store %arg24[%377, %c0_206], %376 {strides = array<i32>} : memref<32x32xf32, #tpu.memory_space<vmem>>, vector<2x32xf32>,
      %c4_i32_207 = arith.constant 4 : i32
      %379 = arith.muli %arg25, %c4_i32_207 : i32
      %c1_i32_208 = arith.constant 1 : i32
      %380 = arith.addi %379, %c1_i32_208 : i32
      %c2_i32_209 = arith.constant 2 : i32
      %381 = arith.muli %380, %c2_i32_209 : i32
      %382 = tpu.assume_multiple %381, 2 : i32
      %383 = arith.index_cast %382 : i32 to index
      %c0_210 = arith.constant 0 : index
      %384 = vector.load %arg23[%383, %c0_210] : memref<32x128xf32, #tpu.memory_space<vmem>>, vector<2x128xf32>
      %cst_211 = arith.constant dense<0.000000e+00> : vector<2x128xf32>
      %385 = tpu.matmul %376, %58, %cst_211 {dimension_numbers = #tpu.dot_dimension_numbers<[1], [0], [0], [1], [0, 0, 1, 1], [], []>} : vector<2x32xf32>, vector<32x128xf32>, vector<2x128xf32> -> vector<2x128xf32>
      %386 = arith.addf %384, %385 : vector<2x128xf32>
      %387 = math.tanh %386 : vector<2x128xf32>
      %cst_212 = arith.constant 5.000000e-01 : f32
      %388 = vector.broadcast %cst_212 : f32 to vector<2x128xf32>
      %389 = arith.mulf %388, %387 : vector<2x128xf32>
      %cst_213 = arith.constant 5.000000e-01 : f32
      %390 = vector.broadcast %cst_213 : f32 to vector<2x128xf32>
      %391 = arith.addf %389, %390 : vector<2x128xf32>
      %392 = arith.select %64, %387, %391 : vector<2x128xi1>, vector<2x128xf32>
      %393 = vector.extract_strided_slice %392 {offsets = [0, 0], sizes = [2, 32], strides = [1, 1]} : vector<2x128xf32> to vector<2x32xf32>
      %394 = vector.extract_strided_slice %392 {offsets = [0, 32], sizes = [2, 32], strides = [1, 1]} : vector<2x128xf32> to vector<2x32xf32>
      %395 = vector.extract_strided_slice %392 {offsets = [0, 64], sizes = [2, 32], strides = [1, 1]} : vector<2x128xf32> to vector<2x32xf32>
      %396 = vector.extract_strided_slice %392 {offsets = [0, 96], sizes = [2, 32], strides = [1, 1]} : vector<2x128xf32> to vector<2x32xf32>
      %397 = arith.mulf %394, %374 : vector<2x32xf32>
      %398 = arith.mulf %393, %395 : vector<2x32xf32>
      %399 = arith.addf %397, %398 : vector<2x32xf32>
      %400 = math.tanh %399 : vector<2x32xf32>
      %401 = arith.mulf %396, %400 : vector<2x32xf32>
      %402 = arith.index_cast %382 : i32 to index
      %c0_214 = arith.constant 0 : index
      %403 = vector.load %arg24[%402, %c0_214] : memref<32x32xf32, #tpu.memory_space<vmem>>, vector<2x32xf32>
      tpu.vector_store %arg24[%402, %c0_214], %401 {strides = array<i32>} : memref<32x32xf32, #tpu.memory_space<vmem>>, vector<2x32xf32>,
      %c4_i32_215 = arith.constant 4 : i32
      %404 = arith.muli %arg25, %c4_i32_215 : i32
      %c2_i32_216 = arith.constant 2 : i32
      %405 = arith.addi %404, %c2_i32_216 : i32
      %c2_i32_217 = arith.constant 2 : i32
      %406 = arith.muli %405, %c2_i32_217 : i32
      %407 = tpu.assume_multiple %406, 2 : i32
      %408 = arith.index_cast %407 : i32 to index
      %c0_218 = arith.constant 0 : index
      %409 = vector.load %arg23[%408, %c0_218] : memref<32x128xf32, #tpu.memory_space<vmem>>, vector<2x128xf32>
      %cst_219 = arith.constant dense<0.000000e+00> : vector<2x128xf32>
      %410 = tpu.matmul %401, %58, %cst_219 {dimension_numbers = #tpu.dot_dimension_numbers<[1], [0], [0], [1], [0, 0, 1, 1], [], []>} : vector<2x32xf32>, vector<32x128xf32>, vector<2x128xf32> -> vector<2x128xf32>
      %411 = arith.addf %409, %410 : vector<2x128xf32>
      %412 = math.tanh %411 : vector<2x128xf32>
      %cst_220 = arith.constant 5.000000e-01 : f32
      %413 = vector.broadcast %cst_220 : f32 to vector<2x128xf32>
      %414 = arith.mulf %413, %412 : vector<2x128xf32>
      %cst_221 = arith.constant 5.000000e-01 : f32
      %415 = vector.broadcast %cst_221 : f32 to vector<2x128xf32>
      %416 = arith.addf %414, %415 : vector<2x128xf32>
      %417 = arith.select %64, %412, %416 : vector<2x128xi1>, vector<2x128xf32>
      %418 = vector.extract_strided_slice %417 {offsets = [0, 0], sizes = [2, 32], strides = [1, 1]} : vector<2x128xf32> to vector<2x32xf32>
      %419 = vector.extract_strided_slice %417 {offsets = [0, 32], sizes = [2, 32], strides = [1, 1]} : vector<2x128xf32> to vector<2x32xf32>
      %420 = vector.extract_strided_slice %417 {offsets = [0, 64], sizes = [2, 32], strides = [1, 1]} : vector<2x128xf32> to vector<2x32xf32>
      %421 = vector.extract_strided_slice %417 {offsets = [0, 96], sizes = [2, 32], strides = [1, 1]} : vector<2x128xf32> to vector<2x32xf32>
      %422 = arith.mulf %419, %399 : vector<2x32xf32>
      %423 = arith.mulf %418, %420 : vector<2x32xf32>
      %424 = arith.addf %422, %423 : vector<2x32xf32>
      %425 = math.tanh %424 : vector<2x32xf32>
      %426 = arith.mulf %421, %425 : vector<2x32xf32>
      %427 = arith.index_cast %407 : i32 to index
      %c0_222 = arith.constant 0 : index
      %428 = vector.load %arg24[%427, %c0_222] : memref<32x32xf32, #tpu.memory_space<vmem>>, vector<2x32xf32>
      tpu.vector_store %arg24[%427, %c0_222], %426 {strides = array<i32>} : memref<32x32xf32, #tpu.memory_space<vmem>>, vector<2x32xf32>,
      %c4_i32_223 = arith.constant 4 : i32
      %429 = arith.muli %arg25, %c4_i32_223 : i32
      %c3_i32 = arith.constant 3 : i32
      %430 = arith.addi %429, %c3_i32 : i32
      %c2_i32_224 = arith.constant 2 : i32
      %431 = arith.muli %430, %c2_i32_224 : i32
      %432 = tpu.assume_multiple %431, 2 : i32
      %433 = arith.index_cast %432 : i32 to index
      %c0_225 = arith.constant 0 : index
      %434 = vector.load %arg23[%433, %c0_225] : memref<32x128xf32, #tpu.memory_space<vmem>>, vector<2x128xf32>
      %cst_226 = arith.constant dense<0.000000e+00> : vector<2x128xf32>
      %435 = tpu.matmul %426, %58, %cst_226 {dimension_numbers = #tpu.dot_dimension_numbers<[1], [0], [0], [1], [0, 0, 1, 1], [], []>} : vector<2x32xf32>, vector<32x128xf32>, vector<2x128xf32> -> vector<2x128xf32>
      %436 = arith.addf %434, %435 : vector<2x128xf32>
      %437 = math.tanh %436 : vector<2x128xf32>
      %cst_227 = arith.constant 5.000000e-01 : f32
      %438 = vector.broadcast %cst_227 : f32 to vector<2x128xf32>
      %439 = arith.mulf %438, %437 : vector<2x128xf32>
      %cst_228 = arith.constant 5.000000e-01 : f32
      %440 = vector.broadcast %cst_228 : f32 to vector<2x128xf32>
      %441 = arith.addf %439, %440 : vector<2x128xf32>
      %442 = arith.select %64, %437, %441 : vector<2x128xi1>, vector<2x128xf32>
      %443 = vector.extract_strided_slice %442 {offsets = [0, 0], sizes = [2, 32], strides = [1, 1]} : vector<2x128xf32> to vector<2x32xf32>
      %444 = vector.extract_strided_slice %442 {offsets = [0, 32], sizes = [2, 32], strides = [1, 1]} : vector<2x128xf32> to vector<2x32xf32>
      %445 = vector.extract_strided_slice %442 {offsets = [0, 64], sizes = [2, 32], strides = [1, 1]} : vector<2x128xf32> to vector<2x32xf32>
      %446 = vector.extract_strided_slice %442 {offsets = [0, 96], sizes = [2, 32], strides = [1, 1]} : vector<2x128xf32> to vector<2x32xf32>
      %447 = arith.mulf %444, %424 : vector<2x32xf32>
      %448 = arith.mulf %443, %445 : vector<2x32xf32>
      %449 = arith.addf %447, %448 : vector<2x32xf32>
      %450 = math.tanh %449 : vector<2x32xf32>
      %451 = arith.mulf %446, %450 : vector<2x32xf32>
      %452 = arith.index_cast %432 : i32 to index
      %c0_229 = arith.constant 0 : index
      %453 = vector.load %arg24[%452, %c0_229] : memref<32x32xf32, #tpu.memory_space<vmem>>, vector<2x32xf32>
      tpu.vector_store %arg24[%452, %c0_229], %451 {strides = array<i32>} : memref<32x32xf32, #tpu.memory_space<vmem>>, vector<2x32xf32>,
      scf.yield %451, %449 : vector<2x32xf32>, vector<2x32xf32>
    }
    %c2_i32_29 = arith.constant 2 : i32
    %c0_30 = arith.constant 0 : index
    %c0_31 = arith.constant 0 : index
    %68 = vector.load %arg24[%c0_30, %c0_31] : memref<32x32xf32, #tpu.memory_space<vmem>>, vector<16x32xf32>
    %69 = tpu.iota {dimensions = array<i32: 1>} : vector<16x32xi32>
    %c16_i32_32 = arith.constant 16 : i32
    %70 = vector.broadcast %c16_i32_32 : i32 to vector<16x32xi32>
    %71 = arith.cmpi slt, %69, %70 : vector<16x32xi32>
    %cst_33 = arith.constant dense<0.000000e+00> : vector<16x32xf32>
    %72 = tpu.matmul %44, %68, %cst_33 {dimension_numbers = #tpu.dot_dimension_numbers<[1], [0], [0], [1], [0, 0, 1, 1], [], []>} : vector<16x16xf32>, vector<16x32xf32>, vector<16x32xf32> -> vector<16x32xf32>
    %73 = arith.select %71, %68, %72 : vector<16x32xi1>, vector<16x32xf32>
    %cst_34 = arith.constant dense<0.000000e+00> : vector<2x32xf32>
    %74 = tpu.matmul %32, %73, %cst_34 {dimension_numbers = #tpu.dot_dimension_numbers<[1], [0], [0], [1], [0, 0, 1, 1], [], []>} : vector<2x16xf32>, vector<16x32xf32>, vector<2x32xf32> -> vector<2x32xf32>
    %c0_35 = arith.constant 0 : index
    %c0_36 = arith.constant 0 : index
    %75 = vector.load %arg4[%c0_35, %c0_36] : memref<2x32xf32, #tpu.memory_space<vmem>>, vector<2x32xf32>
    %76 = arith.mulf %74, %75 : vector<2x32xf32>
    %c0_37 = arith.constant 0 : index
    %c0_38 = arith.constant 0 : index
    %77 = vector.load %arg13[%c0_37, %c0_38] : memref<32x32xf32, #tpu.memory_space<vmem>>, vector<32x32xf32>
    %c0_39 = arith.constant 0 : index
    %c0_40 = arith.constant 0 : index
    %78 = vector.load %arg14[%c0_39, %c0_40] : memref<32x32xf32, #tpu.memory_space<vmem>>, vector<32x32xf32>
    %c0_41 = arith.constant 0 : index
    %c0_42 = arith.constant 0 : index
    %79 = vector.load %arg15[%c0_41, %c0_42] : memref<1x32xf32, #tpu.memory_space<vmem>>, vector<1x32xf32>
    %c0_43 = arith.constant 0 : index
    %c0_44 = arith.constant 0 : index
    %80 = vector.load %arg3[%c0_43, %c0_44] : memref<2x32xf32, #tpu.memory_space<vmem>>, vector<2x32xf32>
    %81 = tpu.iota {dimensions = array<i32: 0>} : vector<32x32xi32>
    %82 = tpu.iota {dimensions = array<i32: 1>} : vector<32x32xi32>
    %c30_i32 = arith.constant 30 : i32
    %83 = vector.broadcast %c30_i32 : i32 to vector<32x32xi32>
    %84 = arith.subi %83, %81 : vector<32x32xi32>
    %c1_i32_45 = arith.constant 1 : i32
    %85 = vector.broadcast %c1_i32_45 : i32 to vector<32x32xi32>
    %86 = arith.andi %81, %85 : vector<32x32xi32>
    %c2_i32_46 = arith.constant 2 : i32
    %87 = vector.broadcast %c2_i32_46 : i32 to vector<32x32xi32>
    %88 = arith.muli %87, %86 : vector<32x32xi32>
    %89 = arith.addi %84, %88 : vector<32x32xi32>
    %90 = arith.cmpi eq, %82, %89 : vector<32x32xi32>
    %91 = arith.extui %90 : vector<32x32xi1> to vector<32x32xi32>
    %92 = arith.sitofp %91 : vector<32x32xi32> to vector<32x32xf32>
    %c0_47 = arith.constant 0 : index
    %c0_48 = arith.constant 0 : index
    %93 = vector.load %arg7[%c0_47, %c0_48] : memref<32x128xf32, #tpu.memory_space<vmem>>, vector<32x128xf32>
    %cst_49 = arith.constant dense<0.000000e+00> : vector<32x128xf32>
    %94 = tpu.matmul %5, %93, %cst_49 {dimension_numbers = #tpu.dot_dimension_numbers<[1], [0], [0], [1], [0, 0, 1, 1], [], []>} : vector<32x32xf32>, vector<32x128xf32>, vector<32x128xf32> -> vector<32x128xf32>
    %c0_50 = arith.constant 0 : index
    %c0_51 = arith.constant 0 : index
    %95 = vector.load %arg9[%c0_50, %c0_51] : memref<1x128xf32, #tpu.memory_space<vmem>>, vector<1x128xf32>
    %96 = vector.broadcast %95 : vector<1x128xf32> to vector<32x128xf32>
    %97 = arith.addf %94, %96 : vector<32x128xf32>
    %98 = tpu.iota {dimensions = array<i32: 1>} : vector<32x128xi32>
    %c16_i32_52 = arith.constant 16 : i32
    %99 = vector.broadcast %c16_i32_52 : i32 to vector<32x128xi32>
    %100 = arith.andi %98, %99 : vector<32x128xi32>
    %c0_i32_53 = arith.constant 0 : i32
    %101 = vector.broadcast %c0_i32_53 : i32 to vector<32x128xi32>
    %102 = arith.cmpi ne, %100, %101 : vector<32x128xi32>
    %cst_54 = arith.constant dense<0.000000e+00> : vector<32x128xf32>
    %103 = tpu.matmul %92, %97, %cst_54 {dimension_numbers = #tpu.dot_dimension_numbers<[1], [0], [0], [1], [0, 0, 1, 1], [], []>} : vector<32x32xf32>, vector<32x128xf32>, vector<32x128xf32> -> vector<32x128xf32>
    %104 = arith.select %102, %103, %97 : vector<32x128xi1>, vector<32x128xf32>
    %c0_55 = arith.constant 0 : index
    %c0_56 = arith.constant 0 : index
    %105 = vector.load %arg23[%c0_55, %c0_56] : memref<32x128xf32, #tpu.memory_space<vmem>>, vector<32x128xf32>
    tpu.vector_store %arg23[%c0_55, %c0_56], %104 {strides = array<i32>} : memref<32x128xf32, #tpu.memory_space<vmem>>, vector<32x128xf32>,
    %c0_57 = arith.constant 0 : index
    %c0_58 = arith.constant 0 : index
    %106 = vector.load %arg8[%c0_57, %c0_58] : memref<32x128xf32, #tpu.memory_space<vmem>>, vector<32x128xf32>
    %107 = tpu.iota {dimensions = array<i32: 1>} : vector<2x128xi32>
    %c64_i32_59 = arith.constant 64 : i32
    %108 = vector.broadcast %c64_i32_59 : i32 to vector<2x128xi32>
    %109 = arith.cmpi sge, %107, %108 : vector<2x128xi32>
    %c96_i32_60 = arith.constant 96 : i32
    %110 = vector.broadcast %c96_i32_60 : i32 to vector<2x128xi32>
    %111 = arith.cmpi slt, %107, %110 : vector<2x128xi32>
    %112 = arith.andi %109, %111 : vector<2x128xi1>
    %cst_61 = arith.constant 0.000000e+00 : f32
    %113 = vector.broadcast %cst_61 : f32 to vector<2x32xf32>
    %c0_i32_62 = arith.constant 0 : i32
    %c4_i32 = arith.constant 4 : i32
    %114 = arith.addi %c0_i32_62, %c4_i32 : i32
    %c1_i32_63 = arith.constant 1 : i32
    %115:2 = scf.for %arg25 = %c0_i32_62 to %114 step %c1_i32_63 iter_args(%arg26 = %113, %arg27 = %113) -> (vector<2x32xf32>, vector<2x32xf32>)  : i32 {
      %c4_i32_199 = arith.constant 4 : i32
      %354 = arith.muli %arg25, %c4_i32_199 : i32
      %c0_i32_200 = arith.constant 0 : i32
      %355 = arith.addi %354, %c0_i32_200 : i32
      %c2_i32_201 = arith.constant 2 : i32
      %356 = arith.muli %355, %c2_i32_201 : i32
      %357 = tpu.assume_multiple %356, 2 : i32
      %358 = arith.index_cast %357 : i32 to index
      %c0_202 = arith.constant 0 : index
      %359 = vector.load %arg23[%358, %c0_202] : memref<32x128xf32, #tpu.memory_space<vmem>>, vector<2x128xf32>
      %cst_203 = arith.constant dense<0.000000e+00> : vector<2x128xf32>
      %360 = tpu.matmul %arg26, %106, %cst_203 {dimension_numbers = #tpu.dot_dimension_numbers<[1], [0], [0], [1], [0, 0, 1, 1], [], []>} : vector<2x32xf32>, vector<32x128xf32>, vector<2x128xf32> -> vector<2x128xf32>
      %361 = arith.addf %359, %360 : vector<2x128xf32>
      %362 = math.tanh %361 : vector<2x128xf32>
      %cst_204 = arith.constant 5.000000e-01 : f32
      %363 = vector.broadcast %cst_204 : f32 to vector<2x128xf32>
      %364 = arith.mulf %363, %362 : vector<2x128xf32>
      %cst_205 = arith.constant 5.000000e-01 : f32
      %365 = vector.broadcast %cst_205 : f32 to vector<2x128xf32>
      %366 = arith.addf %364, %365 : vector<2x128xf32>
      %367 = arith.select %112, %362, %366 : vector<2x128xi1>, vector<2x128xf32>
      %368 = vector.extract_strided_slice %367 {offsets = [0, 0], sizes = [2, 32], strides = [1, 1]} : vector<2x128xf32> to vector<2x32xf32>
      %369 = vector.extract_strided_slice %367 {offsets = [0, 32], sizes = [2, 32], strides = [1, 1]} : vector<2x128xf32> to vector<2x32xf32>
      %370 = vector.extract_strided_slice %367 {offsets = [0, 64], sizes = [2, 32], strides = [1, 1]} : vector<2x128xf32> to vector<2x32xf32>
      %371 = vector.extract_strided_slice %367 {offsets = [0, 96], sizes = [2, 32], strides = [1, 1]} : vector<2x128xf32> to vector<2x32xf32>
      %372 = arith.mulf %369, %arg27 : vector<2x32xf32>
      %373 = arith.mulf %368, %370 : vector<2x32xf32>
      %374 = arith.addf %372, %373 : vector<2x32xf32>
      %375 = math.tanh %374 : vector<2x32xf32>
      %376 = arith.mulf %371, %375 : vector<2x32xf32>
      %377 = arith.index_cast %357 : i32 to index
      %c0_206 = arith.constant 0 : index
      %378 = vector.load %arg24[%377, %c0_206] : memref<32x32xf32, #tpu.memory_space<vmem>>, vector<2x32xf32>
      tpu.vector_store %arg24[%377, %c0_206], %376 {strides = array<i32>} : memref<32x32xf32, #tpu.memory_space<vmem>>, vector<2x32xf32>,
      %c4_i32_207 = arith.constant 4 : i32
      %379 = arith.muli %arg25, %c4_i32_207 : i32
      %c1_i32_208 = arith.constant 1 : i32
      %380 = arith.addi %379, %c1_i32_208 : i32
      %c2_i32_209 = arith.constant 2 : i32
      %381 = arith.muli %380, %c2_i32_209 : i32
      %382 = tpu.assume_multiple %381, 2 : i32
      %383 = arith.index_cast %382 : i32 to index
      %c0_210 = arith.constant 0 : index
      %384 = vector.load %arg23[%383, %c0_210] : memref<32x128xf32, #tpu.memory_space<vmem>>, vector<2x128xf32>
      %cst_211 = arith.constant dense<0.000000e+00> : vector<2x128xf32>
      %385 = tpu.matmul %376, %106, %cst_211 {dimension_numbers = #tpu.dot_dimension_numbers<[1], [0], [0], [1], [0, 0, 1, 1], [], []>} : vector<2x32xf32>, vector<32x128xf32>, vector<2x128xf32> -> vector<2x128xf32>
      %386 = arith.addf %384, %385 : vector<2x128xf32>
      %387 = math.tanh %386 : vector<2x128xf32>
      %cst_212 = arith.constant 5.000000e-01 : f32
      %388 = vector.broadcast %cst_212 : f32 to vector<2x128xf32>
      %389 = arith.mulf %388, %387 : vector<2x128xf32>
      %cst_213 = arith.constant 5.000000e-01 : f32
      %390 = vector.broadcast %cst_213 : f32 to vector<2x128xf32>
      %391 = arith.addf %389, %390 : vector<2x128xf32>
      %392 = arith.select %112, %387, %391 : vector<2x128xi1>, vector<2x128xf32>
      %393 = vector.extract_strided_slice %392 {offsets = [0, 0], sizes = [2, 32], strides = [1, 1]} : vector<2x128xf32> to vector<2x32xf32>
      %394 = vector.extract_strided_slice %392 {offsets = [0, 32], sizes = [2, 32], strides = [1, 1]} : vector<2x128xf32> to vector<2x32xf32>
      %395 = vector.extract_strided_slice %392 {offsets = [0, 64], sizes = [2, 32], strides = [1, 1]} : vector<2x128xf32> to vector<2x32xf32>
      %396 = vector.extract_strided_slice %392 {offsets = [0, 96], sizes = [2, 32], strides = [1, 1]} : vector<2x128xf32> to vector<2x32xf32>
      %397 = arith.mulf %394, %374 : vector<2x32xf32>
      %398 = arith.mulf %393, %395 : vector<2x32xf32>
      %399 = arith.addf %397, %398 : vector<2x32xf32>
      %400 = math.tanh %399 : vector<2x32xf32>
      %401 = arith.mulf %396, %400 : vector<2x32xf32>
      %402 = arith.index_cast %382 : i32 to index
      %c0_214 = arith.constant 0 : index
      %403 = vector.load %arg24[%402, %c0_214] : memref<32x32xf32, #tpu.memory_space<vmem>>, vector<2x32xf32>
      tpu.vector_store %arg24[%402, %c0_214], %401 {strides = array<i32>} : memref<32x32xf32, #tpu.memory_space<vmem>>, vector<2x32xf32>,
      %c4_i32_215 = arith.constant 4 : i32
      %404 = arith.muli %arg25, %c4_i32_215 : i32
      %c2_i32_216 = arith.constant 2 : i32
      %405 = arith.addi %404, %c2_i32_216 : i32
      %c2_i32_217 = arith.constant 2 : i32
      %406 = arith.muli %405, %c2_i32_217 : i32
      %407 = tpu.assume_multiple %406, 2 : i32
      %408 = arith.index_cast %407 : i32 to index
      %c0_218 = arith.constant 0 : index
      %409 = vector.load %arg23[%408, %c0_218] : memref<32x128xf32, #tpu.memory_space<vmem>>, vector<2x128xf32>
      %cst_219 = arith.constant dense<0.000000e+00> : vector<2x128xf32>
      %410 = tpu.matmul %401, %106, %cst_219 {dimension_numbers = #tpu.dot_dimension_numbers<[1], [0], [0], [1], [0, 0, 1, 1], [], []>} : vector<2x32xf32>, vector<32x128xf32>, vector<2x128xf32> -> vector<2x128xf32>
      %411 = arith.addf %409, %410 : vector<2x128xf32>
      %412 = math.tanh %411 : vector<2x128xf32>
      %cst_220 = arith.constant 5.000000e-01 : f32
      %413 = vector.broadcast %cst_220 : f32 to vector<2x128xf32>
      %414 = arith.mulf %413, %412 : vector<2x128xf32>
      %cst_221 = arith.constant 5.000000e-01 : f32
      %415 = vector.broadcast %cst_221 : f32 to vector<2x128xf32>
      %416 = arith.addf %414, %415 : vector<2x128xf32>
      %417 = arith.select %112, %412, %416 : vector<2x128xi1>, vector<2x128xf32>
      %418 = vector.extract_strided_slice %417 {offsets = [0, 0], sizes = [2, 32], strides = [1, 1]} : vector<2x128xf32> to vector<2x32xf32>
      %419 = vector.extract_strided_slice %417 {offsets = [0, 32], sizes = [2, 32], strides = [1, 1]} : vector<2x128xf32> to vector<2x32xf32>
      %420 = vector.extract_strided_slice %417 {offsets = [0, 64], sizes = [2, 32], strides = [1, 1]} : vector<2x128xf32> to vector<2x32xf32>
      %421 = vector.extract_strided_slice %417 {offsets = [0, 96], sizes = [2, 32], strides = [1, 1]} : vector<2x128xf32> to vector<2x32xf32>
      %422 = arith.mulf %419, %399 : vector<2x32xf32>
      %423 = arith.mulf %418, %420 : vector<2x32xf32>
      %424 = arith.addf %422, %423 : vector<2x32xf32>
      %425 = math.tanh %424 : vector<2x32xf32>
      %426 = arith.mulf %421, %425 : vector<2x32xf32>
      %427 = arith.index_cast %407 : i32 to index
      %c0_222 = arith.constant 0 : index
      %428 = vector.load %arg24[%427, %c0_222] : memref<32x32xf32, #tpu.memory_space<vmem>>, vector<2x32xf32>
      tpu.vector_store %arg24[%427, %c0_222], %426 {strides = array<i32>} : memref<32x32xf32, #tpu.memory_space<vmem>>, vector<2x32xf32>,
      %c4_i32_223 = arith.constant 4 : i32
      %429 = arith.muli %arg25, %c4_i32_223 : i32
      %c3_i32 = arith.constant 3 : i32
      %430 = arith.addi %429, %c3_i32 : i32
      %c2_i32_224 = arith.constant 2 : i32
      %431 = arith.muli %430, %c2_i32_224 : i32
      %432 = tpu.assume_multiple %431, 2 : i32
      %433 = arith.index_cast %432 : i32 to index
      %c0_225 = arith.constant 0 : index
      %434 = vector.load %arg23[%433, %c0_225] : memref<32x128xf32, #tpu.memory_space<vmem>>, vector<2x128xf32>
      %cst_226 = arith.constant dense<0.000000e+00> : vector<2x128xf32>
      %435 = tpu.matmul %426, %106, %cst_226 {dimension_numbers = #tpu.dot_dimension_numbers<[1], [0], [0], [1], [0, 0, 1, 1], [], []>} : vector<2x32xf32>, vector<32x128xf32>, vector<2x128xf32> -> vector<2x128xf32>
      %436 = arith.addf %434, %435 : vector<2x128xf32>
      %437 = math.tanh %436 : vector<2x128xf32>
      %cst_227 = arith.constant 5.000000e-01 : f32
      %438 = vector.broadcast %cst_227 : f32 to vector<2x128xf32>
      %439 = arith.mulf %438, %437 : vector<2x128xf32>
      %cst_228 = arith.constant 5.000000e-01 : f32
      %440 = vector.broadcast %cst_228 : f32 to vector<2x128xf32>
      %441 = arith.addf %439, %440 : vector<2x128xf32>
      %442 = arith.select %112, %437, %441 : vector<2x128xi1>, vector<2x128xf32>
      %443 = vector.extract_strided_slice %442 {offsets = [0, 0], sizes = [2, 32], strides = [1, 1]} : vector<2x128xf32> to vector<2x32xf32>
      %444 = vector.extract_strided_slice %442 {offsets = [0, 32], sizes = [2, 32], strides = [1, 1]} : vector<2x128xf32> to vector<2x32xf32>
      %445 = vector.extract_strided_slice %442 {offsets = [0, 64], sizes = [2, 32], strides = [1, 1]} : vector<2x128xf32> to vector<2x32xf32>
      %446 = vector.extract_strided_slice %442 {offsets = [0, 96], sizes = [2, 32], strides = [1, 1]} : vector<2x128xf32> to vector<2x32xf32>
      %447 = arith.mulf %444, %424 : vector<2x32xf32>
      %448 = arith.mulf %443, %445 : vector<2x32xf32>
      %449 = arith.addf %447, %448 : vector<2x32xf32>
      %450 = math.tanh %449 : vector<2x32xf32>
      %451 = arith.mulf %446, %450 : vector<2x32xf32>
      %452 = arith.index_cast %432 : i32 to index
      %c0_229 = arith.constant 0 : index
      %453 = vector.load %arg24[%452, %c0_229] : memref<32x32xf32, #tpu.memory_space<vmem>>, vector<2x32xf32>
      tpu.vector_store %arg24[%452, %c0_229], %451 {strides = array<i32>} : memref<32x32xf32, #tpu.memory_space<vmem>>, vector<2x32xf32>,
      scf.yield %451, %449 : vector<2x32xf32>, vector<2x32xf32>
    }
    %c4_i32_64 = arith.constant 4 : i32
    %c0_65 = arith.constant 0 : index
    %c0_66 = arith.constant 0 : index
    %116 = vector.load %arg24[%c0_65, %c0_66] : memref<32x32xf32, #tpu.memory_space<vmem>>, vector<32x32xf32>
    %117 = tpu.iota {dimensions = array<i32: 1>} : vector<32x32xi32>
    %c16_i32_67 = arith.constant 16 : i32
    %118 = vector.broadcast %c16_i32_67 : i32 to vector<32x32xi32>
    %119 = arith.cmpi slt, %117, %118 : vector<32x32xi32>
    %cst_68 = arith.constant dense<0.000000e+00> : vector<32x32xf32>
    %120 = tpu.matmul %92, %116, %cst_68 {dimension_numbers = #tpu.dot_dimension_numbers<[1], [0], [0], [1], [0, 0, 1, 1], [], []>} : vector<32x32xf32>, vector<32x32xf32>, vector<32x32xf32> -> vector<32x32xf32>
    %121 = arith.select %119, %116, %120 : vector<32x32xi1>, vector<32x32xf32>
    %cst_69 = arith.constant dense<0.000000e+00> : vector<2x32xf32>
    %122 = tpu.matmul %18, %121, %cst_69 {dimension_numbers = #tpu.dot_dimension_numbers<[1], [0], [0], [1], [0, 0, 1, 1], [], []>} : vector<2x32xf32>, vector<32x32xf32>, vector<2x32xf32> -> vector<2x32xf32>
    %123 = arith.mulf %122, %80 : vector<2x32xf32>
    %124 = arith.addf %76, %123 : vector<2x32xf32>
    %cst_70 = arith.constant dense<0.000000e+00> : vector<2x32xf32>
    %125 = tpu.matmul %124, %77, %cst_70 {dimension_numbers = #tpu.dot_dimension_numbers<[1], [0], [0], [1], [0, 0, 1, 1], [], []>} : vector<2x32xf32>, vector<32x32xf32>, vector<2x32xf32> -> vector<2x32xf32>
    %cst_71 = arith.constant dense<0.000000e+00> : vector<32x32xf32>
    %126 = tpu.matmul %121, %78, %cst_71 {dimension_numbers = #tpu.dot_dimension_numbers<[1], [0], [0], [1], [0, 0, 1, 1], [], []>} : vector<32x32xf32>, vector<32x32xf32>, vector<32x32xf32> -> vector<32x32xf32>
    %cst_72 = arith.constant dense<0.000000e+00> : vector<32x32xf32>
    %127 = tpu.matmul %25, %125, %cst_72 {dimension_numbers = #tpu.dot_dimension_numbers<[1], [0], [0], [1], [0, 0, 1, 1], [], []>} : vector<32x2xf32>, vector<2x32xf32>, vector<32x32xf32> -> vector<32x32xf32>
    %128 = arith.addf %126, %127 : vector<32x32xf32>
    %129 = vector.broadcast %79 : vector<1x32xf32> to vector<32x32xf32>
    %130 = arith.addf %128, %129 : vector<32x32xf32>
    %cst_73 = arith.constant 0.000000e+00 : f32
    %131 = vector.broadcast %cst_73 : f32 to vector<32x32xf32>
    %132 = arith.maximumf %130, %131 : vector<32x32xf32>
    %133 = arith.addf %132, %121 : vector<32x32xf32>
    %134 = tpu.iota {dimensions = array<i32: 0>} : vector<32x32xi32>
    %135 = tpu.iota {dimensions = array<i32: 1>} : vector<32x32xi32>
    %c30_i32_74 = arith.constant 30 : i32
    %136 = vector.broadcast %c30_i32_74 : i32 to vector<32x32xi32>
    %137 = arith.subi %136, %134 : vector<32x32xi32>
    %c1_i32_75 = arith.constant 1 : i32
    %138 = vector.broadcast %c1_i32_75 : i32 to vector<32x32xi32>
    %139 = arith.andi %134, %138 : vector<32x32xi32>
    %c2_i32_76 = arith.constant 2 : i32
    %140 = vector.broadcast %c2_i32_76 : i32 to vector<32x32xi32>
    %141 = arith.muli %140, %139 : vector<32x32xi32>
    %142 = arith.addi %137, %141 : vector<32x32xi32>
    %143 = arith.cmpi eq, %135, %142 : vector<32x32xi32>
    %144 = arith.extui %143 : vector<32x32xi1> to vector<32x32xi32>
    %145 = arith.sitofp %144 : vector<32x32xi32> to vector<32x32xf32>
    %c0_77 = arith.constant 0 : index
    %c0_78 = arith.constant 0 : index
    %146 = vector.load %arg7[%c0_77, %c0_78] : memref<32x128xf32, #tpu.memory_space<vmem>>, vector<32x128xf32>
    %cst_79 = arith.constant dense<0.000000e+00> : vector<32x128xf32>
    %147 = tpu.matmul %133, %146, %cst_79 {dimension_numbers = #tpu.dot_dimension_numbers<[1], [0], [0], [1], [0, 0, 1, 1], [], []>} : vector<32x32xf32>, vector<32x128xf32>, vector<32x128xf32> -> vector<32x128xf32>
    %c0_80 = arith.constant 0 : index
    %c0_81 = arith.constant 0 : index
    %148 = vector.load %arg9[%c0_80, %c0_81] : memref<1x128xf32, #tpu.memory_space<vmem>>, vector<1x128xf32>
    %149 = vector.broadcast %148 : vector<1x128xf32> to vector<32x128xf32>
    %150 = arith.addf %147, %149 : vector<32x128xf32>
    %151 = tpu.iota {dimensions = array<i32: 1>} : vector<32x128xi32>
    %c16_i32_82 = arith.constant 16 : i32
    %152 = vector.broadcast %c16_i32_82 : i32 to vector<32x128xi32>
    %153 = arith.andi %151, %152 : vector<32x128xi32>
    %c0_i32_83 = arith.constant 0 : i32
    %154 = vector.broadcast %c0_i32_83 : i32 to vector<32x128xi32>
    %155 = arith.cmpi ne, %153, %154 : vector<32x128xi32>
    %cst_84 = arith.constant dense<0.000000e+00> : vector<32x128xf32>
    %156 = tpu.matmul %145, %150, %cst_84 {dimension_numbers = #tpu.dot_dimension_numbers<[1], [0], [0], [1], [0, 0, 1, 1], [], []>} : vector<32x32xf32>, vector<32x128xf32>, vector<32x128xf32> -> vector<32x128xf32>
    %157 = arith.select %155, %156, %150 : vector<32x128xi1>, vector<32x128xf32>
    %c0_85 = arith.constant 0 : index
    %c0_86 = arith.constant 0 : index
    %158 = vector.load %arg23[%c0_85, %c0_86] : memref<32x128xf32, #tpu.memory_space<vmem>>, vector<32x128xf32>
    tpu.vector_store %arg23[%c0_85, %c0_86], %157 {strides = array<i32>} : memref<32x128xf32, #tpu.memory_space<vmem>>, vector<32x128xf32>,
    %c0_87 = arith.constant 0 : index
    %c0_88 = arith.constant 0 : index
    %159 = vector.load %arg8[%c0_87, %c0_88] : memref<32x128xf32, #tpu.memory_space<vmem>>, vector<32x128xf32>
    %160 = tpu.iota {dimensions = array<i32: 1>} : vector<2x128xi32>
    %c64_i32_89 = arith.constant 64 : i32
    %161 = vector.broadcast %c64_i32_89 : i32 to vector<2x128xi32>
    %162 = arith.cmpi sge, %160, %161 : vector<2x128xi32>
    %c96_i32_90 = arith.constant 96 : i32
    %163 = vector.broadcast %c96_i32_90 : i32 to vector<2x128xi32>
    %164 = arith.cmpi slt, %160, %163 : vector<2x128xi32>
    %165 = arith.andi %162, %164 : vector<2x128xi1>
    %cst_91 = arith.constant 0.000000e+00 : f32
    %166 = vector.broadcast %cst_91 : f32 to vector<2x32xf32>
    %c0_i32_92 = arith.constant 0 : i32
    %c4_i32_93 = arith.constant 4 : i32
    %167 = arith.addi %c0_i32_92, %c4_i32_93 : i32
    %c1_i32_94 = arith.constant 1 : i32
    %168:2 = scf.for %arg25 = %c0_i32_92 to %167 step %c1_i32_94 iter_args(%arg26 = %166, %arg27 = %166) -> (vector<2x32xf32>, vector<2x32xf32>)  : i32 {
      %c4_i32_199 = arith.constant 4 : i32
      %354 = arith.muli %arg25, %c4_i32_199 : i32
      %c0_i32_200 = arith.constant 0 : i32
      %355 = arith.addi %354, %c0_i32_200 : i32
      %c2_i32_201 = arith.constant 2 : i32
      %356 = arith.muli %355, %c2_i32_201 : i32
      %357 = tpu.assume_multiple %356, 2 : i32
      %358 = arith.index_cast %357 : i32 to index
      %c0_202 = arith.constant 0 : index
      %359 = vector.load %arg23[%358, %c0_202] : memref<32x128xf32, #tpu.memory_space<vmem>>, vector<2x128xf32>
      %cst_203 = arith.constant dense<0.000000e+00> : vector<2x128xf32>
      %360 = tpu.matmul %arg26, %159, %cst_203 {dimension_numbers = #tpu.dot_dimension_numbers<[1], [0], [0], [1], [0, 0, 1, 1], [], []>} : vector<2x32xf32>, vector<32x128xf32>, vector<2x128xf32> -> vector<2x128xf32>
      %361 = arith.addf %359, %360 : vector<2x128xf32>
      %362 = math.tanh %361 : vector<2x128xf32>
      %cst_204 = arith.constant 5.000000e-01 : f32
      %363 = vector.broadcast %cst_204 : f32 to vector<2x128xf32>
      %364 = arith.mulf %363, %362 : vector<2x128xf32>
      %cst_205 = arith.constant 5.000000e-01 : f32
      %365 = vector.broadcast %cst_205 : f32 to vector<2x128xf32>
      %366 = arith.addf %364, %365 : vector<2x128xf32>
      %367 = arith.select %165, %362, %366 : vector<2x128xi1>, vector<2x128xf32>
      %368 = vector.extract_strided_slice %367 {offsets = [0, 0], sizes = [2, 32], strides = [1, 1]} : vector<2x128xf32> to vector<2x32xf32>
      %369 = vector.extract_strided_slice %367 {offsets = [0, 32], sizes = [2, 32], strides = [1, 1]} : vector<2x128xf32> to vector<2x32xf32>
      %370 = vector.extract_strided_slice %367 {offsets = [0, 64], sizes = [2, 32], strides = [1, 1]} : vector<2x128xf32> to vector<2x32xf32>
      %371 = vector.extract_strided_slice %367 {offsets = [0, 96], sizes = [2, 32], strides = [1, 1]} : vector<2x128xf32> to vector<2x32xf32>
      %372 = arith.mulf %369, %arg27 : vector<2x32xf32>
      %373 = arith.mulf %368, %370 : vector<2x32xf32>
      %374 = arith.addf %372, %373 : vector<2x32xf32>
      %375 = math.tanh %374 : vector<2x32xf32>
      %376 = arith.mulf %371, %375 : vector<2x32xf32>
      %377 = arith.index_cast %357 : i32 to index
      %c0_206 = arith.constant 0 : index
      %378 = vector.load %arg24[%377, %c0_206] : memref<32x32xf32, #tpu.memory_space<vmem>>, vector<2x32xf32>
      tpu.vector_store %arg24[%377, %c0_206], %376 {strides = array<i32>} : memref<32x32xf32, #tpu.memory_space<vmem>>, vector<2x32xf32>,
      %c4_i32_207 = arith.constant 4 : i32
      %379 = arith.muli %arg25, %c4_i32_207 : i32
      %c1_i32_208 = arith.constant 1 : i32
      %380 = arith.addi %379, %c1_i32_208 : i32
      %c2_i32_209 = arith.constant 2 : i32
      %381 = arith.muli %380, %c2_i32_209 : i32
      %382 = tpu.assume_multiple %381, 2 : i32
      %383 = arith.index_cast %382 : i32 to index
      %c0_210 = arith.constant 0 : index
      %384 = vector.load %arg23[%383, %c0_210] : memref<32x128xf32, #tpu.memory_space<vmem>>, vector<2x128xf32>
      %cst_211 = arith.constant dense<0.000000e+00> : vector<2x128xf32>
      %385 = tpu.matmul %376, %159, %cst_211 {dimension_numbers = #tpu.dot_dimension_numbers<[1], [0], [0], [1], [0, 0, 1, 1], [], []>} : vector<2x32xf32>, vector<32x128xf32>, vector<2x128xf32> -> vector<2x128xf32>
      %386 = arith.addf %384, %385 : vector<2x128xf32>
      %387 = math.tanh %386 : vector<2x128xf32>
      %cst_212 = arith.constant 5.000000e-01 : f32
      %388 = vector.broadcast %cst_212 : f32 to vector<2x128xf32>
      %389 = arith.mulf %388, %387 : vector<2x128xf32>
      %cst_213 = arith.constant 5.000000e-01 : f32
      %390 = vector.broadcast %cst_213 : f32 to vector<2x128xf32>
      %391 = arith.addf %389, %390 : vector<2x128xf32>
      %392 = arith.select %165, %387, %391 : vector<2x128xi1>, vector<2x128xf32>
      %393 = vector.extract_strided_slice %392 {offsets = [0, 0], sizes = [2, 32], strides = [1, 1]} : vector<2x128xf32> to vector<2x32xf32>
      %394 = vector.extract_strided_slice %392 {offsets = [0, 32], sizes = [2, 32], strides = [1, 1]} : vector<2x128xf32> to vector<2x32xf32>
      %395 = vector.extract_strided_slice %392 {offsets = [0, 64], sizes = [2, 32], strides = [1, 1]} : vector<2x128xf32> to vector<2x32xf32>
      %396 = vector.extract_strided_slice %392 {offsets = [0, 96], sizes = [2, 32], strides = [1, 1]} : vector<2x128xf32> to vector<2x32xf32>
      %397 = arith.mulf %394, %374 : vector<2x32xf32>
      %398 = arith.mulf %393, %395 : vector<2x32xf32>
      %399 = arith.addf %397, %398 : vector<2x32xf32>
      %400 = math.tanh %399 : vector<2x32xf32>
      %401 = arith.mulf %396, %400 : vector<2x32xf32>
      %402 = arith.index_cast %382 : i32 to index
      %c0_214 = arith.constant 0 : index
      %403 = vector.load %arg24[%402, %c0_214] : memref<32x32xf32, #tpu.memory_space<vmem>>, vector<2x32xf32>
      tpu.vector_store %arg24[%402, %c0_214], %401 {strides = array<i32>} : memref<32x32xf32, #tpu.memory_space<vmem>>, vector<2x32xf32>,
      %c4_i32_215 = arith.constant 4 : i32
      %404 = arith.muli %arg25, %c4_i32_215 : i32
      %c2_i32_216 = arith.constant 2 : i32
      %405 = arith.addi %404, %c2_i32_216 : i32
      %c2_i32_217 = arith.constant 2 : i32
      %406 = arith.muli %405, %c2_i32_217 : i32
      %407 = tpu.assume_multiple %406, 2 : i32
      %408 = arith.index_cast %407 : i32 to index
      %c0_218 = arith.constant 0 : index
      %409 = vector.load %arg23[%408, %c0_218] : memref<32x128xf32, #tpu.memory_space<vmem>>, vector<2x128xf32>
      %cst_219 = arith.constant dense<0.000000e+00> : vector<2x128xf32>
      %410 = tpu.matmul %401, %159, %cst_219 {dimension_numbers = #tpu.dot_dimension_numbers<[1], [0], [0], [1], [0, 0, 1, 1], [], []>} : vector<2x32xf32>, vector<32x128xf32>, vector<2x128xf32> -> vector<2x128xf32>
      %411 = arith.addf %409, %410 : vector<2x128xf32>
      %412 = math.tanh %411 : vector<2x128xf32>
      %cst_220 = arith.constant 5.000000e-01 : f32
      %413 = vector.broadcast %cst_220 : f32 to vector<2x128xf32>
      %414 = arith.mulf %413, %412 : vector<2x128xf32>
      %cst_221 = arith.constant 5.000000e-01 : f32
      %415 = vector.broadcast %cst_221 : f32 to vector<2x128xf32>
      %416 = arith.addf %414, %415 : vector<2x128xf32>
      %417 = arith.select %165, %412, %416 : vector<2x128xi1>, vector<2x128xf32>
      %418 = vector.extract_strided_slice %417 {offsets = [0, 0], sizes = [2, 32], strides = [1, 1]} : vector<2x128xf32> to vector<2x32xf32>
      %419 = vector.extract_strided_slice %417 {offsets = [0, 32], sizes = [2, 32], strides = [1, 1]} : vector<2x128xf32> to vector<2x32xf32>
      %420 = vector.extract_strided_slice %417 {offsets = [0, 64], sizes = [2, 32], strides = [1, 1]} : vector<2x128xf32> to vector<2x32xf32>
      %421 = vector.extract_strided_slice %417 {offsets = [0, 96], sizes = [2, 32], strides = [1, 1]} : vector<2x128xf32> to vector<2x32xf32>
      %422 = arith.mulf %419, %399 : vector<2x32xf32>
      %423 = arith.mulf %418, %420 : vector<2x32xf32>
      %424 = arith.addf %422, %423 : vector<2x32xf32>
      %425 = math.tanh %424 : vector<2x32xf32>
      %426 = arith.mulf %421, %425 : vector<2x32xf32>
      %427 = arith.index_cast %407 : i32 to index
      %c0_222 = arith.constant 0 : index
      %428 = vector.load %arg24[%427, %c0_222] : memref<32x32xf32, #tpu.memory_space<vmem>>, vector<2x32xf32>
      tpu.vector_store %arg24[%427, %c0_222], %426 {strides = array<i32>} : memref<32x32xf32, #tpu.memory_space<vmem>>, vector<2x32xf32>,
      %c4_i32_223 = arith.constant 4 : i32
      %429 = arith.muli %arg25, %c4_i32_223 : i32
      %c3_i32 = arith.constant 3 : i32
      %430 = arith.addi %429, %c3_i32 : i32
      %c2_i32_224 = arith.constant 2 : i32
      %431 = arith.muli %430, %c2_i32_224 : i32
      %432 = tpu.assume_multiple %431, 2 : i32
      %433 = arith.index_cast %432 : i32 to index
      %c0_225 = arith.constant 0 : index
      %434 = vector.load %arg23[%433, %c0_225] : memref<32x128xf32, #tpu.memory_space<vmem>>, vector<2x128xf32>
      %cst_226 = arith.constant dense<0.000000e+00> : vector<2x128xf32>
      %435 = tpu.matmul %426, %159, %cst_226 {dimension_numbers = #tpu.dot_dimension_numbers<[1], [0], [0], [1], [0, 0, 1, 1], [], []>} : vector<2x32xf32>, vector<32x128xf32>, vector<2x128xf32> -> vector<2x128xf32>
      %436 = arith.addf %434, %435 : vector<2x128xf32>
      %437 = math.tanh %436 : vector<2x128xf32>
      %cst_227 = arith.constant 5.000000e-01 : f32
      %438 = vector.broadcast %cst_227 : f32 to vector<2x128xf32>
      %439 = arith.mulf %438, %437 : vector<2x128xf32>
      %cst_228 = arith.constant 5.000000e-01 : f32
      %440 = vector.broadcast %cst_228 : f32 to vector<2x128xf32>
      %441 = arith.addf %439, %440 : vector<2x128xf32>
      %442 = arith.select %165, %437, %441 : vector<2x128xi1>, vector<2x128xf32>
      %443 = vector.extract_strided_slice %442 {offsets = [0, 0], sizes = [2, 32], strides = [1, 1]} : vector<2x128xf32> to vector<2x32xf32>
      %444 = vector.extract_strided_slice %442 {offsets = [0, 32], sizes = [2, 32], strides = [1, 1]} : vector<2x128xf32> to vector<2x32xf32>
      %445 = vector.extract_strided_slice %442 {offsets = [0, 64], sizes = [2, 32], strides = [1, 1]} : vector<2x128xf32> to vector<2x32xf32>
      %446 = vector.extract_strided_slice %442 {offsets = [0, 96], sizes = [2, 32], strides = [1, 1]} : vector<2x128xf32> to vector<2x32xf32>
      %447 = arith.mulf %444, %424 : vector<2x32xf32>
      %448 = arith.mulf %443, %445 : vector<2x32xf32>
      %449 = arith.addf %447, %448 : vector<2x32xf32>
      %450 = math.tanh %449 : vector<2x32xf32>
      %451 = arith.mulf %446, %450 : vector<2x32xf32>
      %452 = arith.index_cast %432 : i32 to index
      %c0_229 = arith.constant 0 : index
      %453 = vector.load %arg24[%452, %c0_229] : memref<32x32xf32, #tpu.memory_space<vmem>>, vector<2x32xf32>
      tpu.vector_store %arg24[%452, %c0_229], %451 {strides = array<i32>} : memref<32x32xf32, #tpu.memory_space<vmem>>, vector<2x32xf32>,
      scf.yield %451, %449 : vector<2x32xf32>, vector<2x32xf32>
    }
    %c4_i32_95 = arith.constant 4 : i32
    %c0_96 = arith.constant 0 : index
    %c0_97 = arith.constant 0 : index
    %169 = vector.load %arg24[%c0_96, %c0_97] : memref<32x32xf32, #tpu.memory_space<vmem>>, vector<32x32xf32>
    %170 = tpu.iota {dimensions = array<i32: 1>} : vector<32x32xi32>
    %c16_i32_98 = arith.constant 16 : i32
    %171 = vector.broadcast %c16_i32_98 : i32 to vector<32x32xi32>
    %172 = arith.cmpi slt, %170, %171 : vector<32x32xi32>
    %cst_99 = arith.constant dense<0.000000e+00> : vector<32x32xf32>
    %173 = tpu.matmul %145, %169, %cst_99 {dimension_numbers = #tpu.dot_dimension_numbers<[1], [0], [0], [1], [0, 0, 1, 1], [], []>} : vector<32x32xf32>, vector<32x32xf32>, vector<32x32xf32> -> vector<32x32xf32>
    %174 = arith.select %172, %169, %173 : vector<32x32xi1>, vector<32x32xf32>
    %cst_100 = arith.constant dense<0.000000e+00> : vector<2x32xf32>
    %175 = tpu.matmul %18, %174, %cst_100 {dimension_numbers = #tpu.dot_dimension_numbers<[1], [0], [0], [1], [0, 0, 1, 1], [], []>} : vector<2x32xf32>, vector<32x32xf32>, vector<2x32xf32> -> vector<2x32xf32>
    %176 = arith.mulf %175, %80 : vector<2x32xf32>
    %177 = arith.addf %124, %176 : vector<2x32xf32>
    %cst_101 = arith.constant dense<0.000000e+00> : vector<2x32xf32>
    %178 = tpu.matmul %177, %77, %cst_101 {dimension_numbers = #tpu.dot_dimension_numbers<[1], [0], [0], [1], [0, 0, 1, 1], [], []>} : vector<2x32xf32>, vector<32x32xf32>, vector<2x32xf32> -> vector<2x32xf32>
    %cst_102 = arith.constant dense<0.000000e+00> : vector<32x32xf32>
    %179 = tpu.matmul %174, %78, %cst_102 {dimension_numbers = #tpu.dot_dimension_numbers<[1], [0], [0], [1], [0, 0, 1, 1], [], []>} : vector<32x32xf32>, vector<32x32xf32>, vector<32x32xf32> -> vector<32x32xf32>
    %cst_103 = arith.constant dense<0.000000e+00> : vector<32x32xf32>
    %180 = tpu.matmul %25, %178, %cst_103 {dimension_numbers = #tpu.dot_dimension_numbers<[1], [0], [0], [1], [0, 0, 1, 1], [], []>} : vector<32x2xf32>, vector<2x32xf32>, vector<32x32xf32> -> vector<32x32xf32>
    %181 = arith.addf %179, %180 : vector<32x32xf32>
    %182 = vector.broadcast %79 : vector<1x32xf32> to vector<32x32xf32>
    %183 = arith.addf %181, %182 : vector<32x32xf32>
    %cst_104 = arith.constant 0.000000e+00 : f32
    %184 = vector.broadcast %cst_104 : f32 to vector<32x32xf32>
    %185 = arith.maximumf %183, %184 : vector<32x32xf32>
    %186 = arith.addf %185, %174 : vector<32x32xf32>
    %187 = tpu.iota {dimensions = array<i32: 0>} : vector<32x32xi32>
    %188 = tpu.iota {dimensions = array<i32: 1>} : vector<32x32xi32>
    %c30_i32_105 = arith.constant 30 : i32
    %189 = vector.broadcast %c30_i32_105 : i32 to vector<32x32xi32>
    %190 = arith.subi %189, %187 : vector<32x32xi32>
    %c1_i32_106 = arith.constant 1 : i32
    %191 = vector.broadcast %c1_i32_106 : i32 to vector<32x32xi32>
    %192 = arith.andi %187, %191 : vector<32x32xi32>
    %c2_i32_107 = arith.constant 2 : i32
    %193 = vector.broadcast %c2_i32_107 : i32 to vector<32x32xi32>
    %194 = arith.muli %193, %192 : vector<32x32xi32>
    %195 = arith.addi %190, %194 : vector<32x32xi32>
    %196 = arith.cmpi eq, %188, %195 : vector<32x32xi32>
    %197 = arith.extui %196 : vector<32x32xi1> to vector<32x32xi32>
    %198 = arith.sitofp %197 : vector<32x32xi32> to vector<32x32xf32>
    %c0_108 = arith.constant 0 : index
    %c0_109 = arith.constant 0 : index
    %199 = vector.load %arg7[%c0_108, %c0_109] : memref<32x128xf32, #tpu.memory_space<vmem>>, vector<32x128xf32>
    %cst_110 = arith.constant dense<0.000000e+00> : vector<32x128xf32>
    %200 = tpu.matmul %186, %199, %cst_110 {dimension_numbers = #tpu.dot_dimension_numbers<[1], [0], [0], [1], [0, 0, 1, 1], [], []>} : vector<32x32xf32>, vector<32x128xf32>, vector<32x128xf32> -> vector<32x128xf32>
    %c0_111 = arith.constant 0 : index
    %c0_112 = arith.constant 0 : index
    %201 = vector.load %arg9[%c0_111, %c0_112] : memref<1x128xf32, #tpu.memory_space<vmem>>, vector<1x128xf32>
    %202 = vector.broadcast %201 : vector<1x128xf32> to vector<32x128xf32>
    %203 = arith.addf %200, %202 : vector<32x128xf32>
    %204 = tpu.iota {dimensions = array<i32: 1>} : vector<32x128xi32>
    %c16_i32_113 = arith.constant 16 : i32
    %205 = vector.broadcast %c16_i32_113 : i32 to vector<32x128xi32>
    %206 = arith.andi %204, %205 : vector<32x128xi32>
    %c0_i32_114 = arith.constant 0 : i32
    %207 = vector.broadcast %c0_i32_114 : i32 to vector<32x128xi32>
    %208 = arith.cmpi ne, %206, %207 : vector<32x128xi32>
    %cst_115 = arith.constant dense<0.000000e+00> : vector<32x128xf32>
    %209 = tpu.matmul %198, %203, %cst_115 {dimension_numbers = #tpu.dot_dimension_numbers<[1], [0], [0], [1], [0, 0, 1, 1], [], []>} : vector<32x32xf32>, vector<32x128xf32>, vector<32x128xf32> -> vector<32x128xf32>
    %210 = arith.select %208, %209, %203 : vector<32x128xi1>, vector<32x128xf32>
    %c0_116 = arith.constant 0 : index
    %c0_117 = arith.constant 0 : index
    %211 = vector.load %arg23[%c0_116, %c0_117] : memref<32x128xf32, #tpu.memory_space<vmem>>, vector<32x128xf32>
    tpu.vector_store %arg23[%c0_116, %c0_117], %210 {strides = array<i32>} : memref<32x128xf32, #tpu.memory_space<vmem>>, vector<32x128xf32>,
    %c0_118 = arith.constant 0 : index
    %c0_119 = arith.constant 0 : index
    %212 = vector.load %arg8[%c0_118, %c0_119] : memref<32x128xf32, #tpu.memory_space<vmem>>, vector<32x128xf32>
    %213 = tpu.iota {dimensions = array<i32: 1>} : vector<2x128xi32>
    %c64_i32_120 = arith.constant 64 : i32
    %214 = vector.broadcast %c64_i32_120 : i32 to vector<2x128xi32>
    %215 = arith.cmpi sge, %213, %214 : vector<2x128xi32>
    %c96_i32_121 = arith.constant 96 : i32
    %216 = vector.broadcast %c96_i32_121 : i32 to vector<2x128xi32>
    %217 = arith.cmpi slt, %213, %216 : vector<2x128xi32>
    %218 = arith.andi %215, %217 : vector<2x128xi1>
    %cst_122 = arith.constant 0.000000e+00 : f32
    %219 = vector.broadcast %cst_122 : f32 to vector<2x32xf32>
    %c0_i32_123 = arith.constant 0 : i32
    %c4_i32_124 = arith.constant 4 : i32
    %220 = arith.addi %c0_i32_123, %c4_i32_124 : i32
    %c1_i32_125 = arith.constant 1 : i32
    %221:2 = scf.for %arg25 = %c0_i32_123 to %220 step %c1_i32_125 iter_args(%arg26 = %219, %arg27 = %219) -> (vector<2x32xf32>, vector<2x32xf32>)  : i32 {
      %c4_i32_199 = arith.constant 4 : i32
      %354 = arith.muli %arg25, %c4_i32_199 : i32
      %c0_i32_200 = arith.constant 0 : i32
      %355 = arith.addi %354, %c0_i32_200 : i32
      %c2_i32_201 = arith.constant 2 : i32
      %356 = arith.muli %355, %c2_i32_201 : i32
      %357 = tpu.assume_multiple %356, 2 : i32
      %358 = arith.index_cast %357 : i32 to index
      %c0_202 = arith.constant 0 : index
      %359 = vector.load %arg23[%358, %c0_202] : memref<32x128xf32, #tpu.memory_space<vmem>>, vector<2x128xf32>
      %cst_203 = arith.constant dense<0.000000e+00> : vector<2x128xf32>
      %360 = tpu.matmul %arg26, %212, %cst_203 {dimension_numbers = #tpu.dot_dimension_numbers<[1], [0], [0], [1], [0, 0, 1, 1], [], []>} : vector<2x32xf32>, vector<32x128xf32>, vector<2x128xf32> -> vector<2x128xf32>
      %361 = arith.addf %359, %360 : vector<2x128xf32>
      %362 = math.tanh %361 : vector<2x128xf32>
      %cst_204 = arith.constant 5.000000e-01 : f32
      %363 = vector.broadcast %cst_204 : f32 to vector<2x128xf32>
      %364 = arith.mulf %363, %362 : vector<2x128xf32>
      %cst_205 = arith.constant 5.000000e-01 : f32
      %365 = vector.broadcast %cst_205 : f32 to vector<2x128xf32>
      %366 = arith.addf %364, %365 : vector<2x128xf32>
      %367 = arith.select %218, %362, %366 : vector<2x128xi1>, vector<2x128xf32>
      %368 = vector.extract_strided_slice %367 {offsets = [0, 0], sizes = [2, 32], strides = [1, 1]} : vector<2x128xf32> to vector<2x32xf32>
      %369 = vector.extract_strided_slice %367 {offsets = [0, 32], sizes = [2, 32], strides = [1, 1]} : vector<2x128xf32> to vector<2x32xf32>
      %370 = vector.extract_strided_slice %367 {offsets = [0, 64], sizes = [2, 32], strides = [1, 1]} : vector<2x128xf32> to vector<2x32xf32>
      %371 = vector.extract_strided_slice %367 {offsets = [0, 96], sizes = [2, 32], strides = [1, 1]} : vector<2x128xf32> to vector<2x32xf32>
      %372 = arith.mulf %369, %arg27 : vector<2x32xf32>
      %373 = arith.mulf %368, %370 : vector<2x32xf32>
      %374 = arith.addf %372, %373 : vector<2x32xf32>
      %375 = math.tanh %374 : vector<2x32xf32>
      %376 = arith.mulf %371, %375 : vector<2x32xf32>
      %377 = arith.index_cast %357 : i32 to index
      %c0_206 = arith.constant 0 : index
      %378 = vector.load %arg24[%377, %c0_206] : memref<32x32xf32, #tpu.memory_space<vmem>>, vector<2x32xf32>
      tpu.vector_store %arg24[%377, %c0_206], %376 {strides = array<i32>} : memref<32x32xf32, #tpu.memory_space<vmem>>, vector<2x32xf32>,
      %c4_i32_207 = arith.constant 4 : i32
      %379 = arith.muli %arg25, %c4_i32_207 : i32
      %c1_i32_208 = arith.constant 1 : i32
      %380 = arith.addi %379, %c1_i32_208 : i32
      %c2_i32_209 = arith.constant 2 : i32
      %381 = arith.muli %380, %c2_i32_209 : i32
      %382 = tpu.assume_multiple %381, 2 : i32
      %383 = arith.index_cast %382 : i32 to index
      %c0_210 = arith.constant 0 : index
      %384 = vector.load %arg23[%383, %c0_210] : memref<32x128xf32, #tpu.memory_space<vmem>>, vector<2x128xf32>
      %cst_211 = arith.constant dense<0.000000e+00> : vector<2x128xf32>
      %385 = tpu.matmul %376, %212, %cst_211 {dimension_numbers = #tpu.dot_dimension_numbers<[1], [0], [0], [1], [0, 0, 1, 1], [], []>} : vector<2x32xf32>, vector<32x128xf32>, vector<2x128xf32> -> vector<2x128xf32>
      %386 = arith.addf %384, %385 : vector<2x128xf32>
      %387 = math.tanh %386 : vector<2x128xf32>
      %cst_212 = arith.constant 5.000000e-01 : f32
      %388 = vector.broadcast %cst_212 : f32 to vector<2x128xf32>
      %389 = arith.mulf %388, %387 : vector<2x128xf32>
      %cst_213 = arith.constant 5.000000e-01 : f32
      %390 = vector.broadcast %cst_213 : f32 to vector<2x128xf32>
      %391 = arith.addf %389, %390 : vector<2x128xf32>
      %392 = arith.select %218, %387, %391 : vector<2x128xi1>, vector<2x128xf32>
      %393 = vector.extract_strided_slice %392 {offsets = [0, 0], sizes = [2, 32], strides = [1, 1]} : vector<2x128xf32> to vector<2x32xf32>
      %394 = vector.extract_strided_slice %392 {offsets = [0, 32], sizes = [2, 32], strides = [1, 1]} : vector<2x128xf32> to vector<2x32xf32>
      %395 = vector.extract_strided_slice %392 {offsets = [0, 64], sizes = [2, 32], strides = [1, 1]} : vector<2x128xf32> to vector<2x32xf32>
      %396 = vector.extract_strided_slice %392 {offsets = [0, 96], sizes = [2, 32], strides = [1, 1]} : vector<2x128xf32> to vector<2x32xf32>
      %397 = arith.mulf %394, %374 : vector<2x32xf32>
      %398 = arith.mulf %393, %395 : vector<2x32xf32>
      %399 = arith.addf %397, %398 : vector<2x32xf32>
      %400 = math.tanh %399 : vector<2x32xf32>
      %401 = arith.mulf %396, %400 : vector<2x32xf32>
      %402 = arith.index_cast %382 : i32 to index
      %c0_214 = arith.constant 0 : index
      %403 = vector.load %arg24[%402, %c0_214] : memref<32x32xf32, #tpu.memory_space<vmem>>, vector<2x32xf32>
      tpu.vector_store %arg24[%402, %c0_214], %401 {strides = array<i32>} : memref<32x32xf32, #tpu.memory_space<vmem>>, vector<2x32xf32>,
      %c4_i32_215 = arith.constant 4 : i32
      %404 = arith.muli %arg25, %c4_i32_215 : i32
      %c2_i32_216 = arith.constant 2 : i32
      %405 = arith.addi %404, %c2_i32_216 : i32
      %c2_i32_217 = arith.constant 2 : i32
      %406 = arith.muli %405, %c2_i32_217 : i32
      %407 = tpu.assume_multiple %406, 2 : i32
      %408 = arith.index_cast %407 : i32 to index
      %c0_218 = arith.constant 0 : index
      %409 = vector.load %arg23[%408, %c0_218] : memref<32x128xf32, #tpu.memory_space<vmem>>, vector<2x128xf32>
      %cst_219 = arith.constant dense<0.000000e+00> : vector<2x128xf32>
      %410 = tpu.matmul %401, %212, %cst_219 {dimension_numbers = #tpu.dot_dimension_numbers<[1], [0], [0], [1], [0, 0, 1, 1], [], []>} : vector<2x32xf32>, vector<32x128xf32>, vector<2x128xf32> -> vector<2x128xf32>
      %411 = arith.addf %409, %410 : vector<2x128xf32>
      %412 = math.tanh %411 : vector<2x128xf32>
      %cst_220 = arith.constant 5.000000e-01 : f32
      %413 = vector.broadcast %cst_220 : f32 to vector<2x128xf32>
      %414 = arith.mulf %413, %412 : vector<2x128xf32>
      %cst_221 = arith.constant 5.000000e-01 : f32
      %415 = vector.broadcast %cst_221 : f32 to vector<2x128xf32>
      %416 = arith.addf %414, %415 : vector<2x128xf32>
      %417 = arith.select %218, %412, %416 : vector<2x128xi1>, vector<2x128xf32>
      %418 = vector.extract_strided_slice %417 {offsets = [0, 0], sizes = [2, 32], strides = [1, 1]} : vector<2x128xf32> to vector<2x32xf32>
      %419 = vector.extract_strided_slice %417 {offsets = [0, 32], sizes = [2, 32], strides = [1, 1]} : vector<2x128xf32> to vector<2x32xf32>
      %420 = vector.extract_strided_slice %417 {offsets = [0, 64], sizes = [2, 32], strides = [1, 1]} : vector<2x128xf32> to vector<2x32xf32>
      %421 = vector.extract_strided_slice %417 {offsets = [0, 96], sizes = [2, 32], strides = [1, 1]} : vector<2x128xf32> to vector<2x32xf32>
      %422 = arith.mulf %419, %399 : vector<2x32xf32>
      %423 = arith.mulf %418, %420 : vector<2x32xf32>
      %424 = arith.addf %422, %423 : vector<2x32xf32>
      %425 = math.tanh %424 : vector<2x32xf32>
      %426 = arith.mulf %421, %425 : vector<2x32xf32>
      %427 = arith.index_cast %407 : i32 to index
      %c0_222 = arith.constant 0 : index
      %428 = vector.load %arg24[%427, %c0_222] : memref<32x32xf32, #tpu.memory_space<vmem>>, vector<2x32xf32>
      tpu.vector_store %arg24[%427, %c0_222], %426 {strides = array<i32>} : memref<32x32xf32, #tpu.memory_space<vmem>>, vector<2x32xf32>,
      %c4_i32_223 = arith.constant 4 : i32
      %429 = arith.muli %arg25, %c4_i32_223 : i32
      %c3_i32 = arith.constant 3 : i32
      %430 = arith.addi %429, %c3_i32 : i32
      %c2_i32_224 = arith.constant 2 : i32
      %431 = arith.muli %430, %c2_i32_224 : i32
      %432 = tpu.assume_multiple %431, 2 : i32
      %433 = arith.index_cast %432 : i32 to index
      %c0_225 = arith.constant 0 : index
      %434 = vector.load %arg23[%433, %c0_225] : memref<32x128xf32, #tpu.memory_space<vmem>>, vector<2x128xf32>
      %cst_226 = arith.constant dense<0.000000e+00> : vector<2x128xf32>
      %435 = tpu.matmul %426, %212, %cst_226 {dimension_numbers = #tpu.dot_dimension_numbers<[1], [0], [0], [1], [0, 0, 1, 1], [], []>} : vector<2x32xf32>, vector<32x128xf32>, vector<2x128xf32> -> vector<2x128xf32>
      %436 = arith.addf %434, %435 : vector<2x128xf32>
      %437 = math.tanh %436 : vector<2x128xf32>
      %cst_227 = arith.constant 5.000000e-01 : f32
      %438 = vector.broadcast %cst_227 : f32 to vector<2x128xf32>
      %439 = arith.mulf %438, %437 : vector<2x128xf32>
      %cst_228 = arith.constant 5.000000e-01 : f32
      %440 = vector.broadcast %cst_228 : f32 to vector<2x128xf32>
      %441 = arith.addf %439, %440 : vector<2x128xf32>
      %442 = arith.select %218, %437, %441 : vector<2x128xi1>, vector<2x128xf32>
      %443 = vector.extract_strided_slice %442 {offsets = [0, 0], sizes = [2, 32], strides = [1, 1]} : vector<2x128xf32> to vector<2x32xf32>
      %444 = vector.extract_strided_slice %442 {offsets = [0, 32], sizes = [2, 32], strides = [1, 1]} : vector<2x128xf32> to vector<2x32xf32>
      %445 = vector.extract_strided_slice %442 {offsets = [0, 64], sizes = [2, 32], strides = [1, 1]} : vector<2x128xf32> to vector<2x32xf32>
      %446 = vector.extract_strided_slice %442 {offsets = [0, 96], sizes = [2, 32], strides = [1, 1]} : vector<2x128xf32> to vector<2x32xf32>
      %447 = arith.mulf %444, %424 : vector<2x32xf32>
      %448 = arith.mulf %443, %445 : vector<2x32xf32>
      %449 = arith.addf %447, %448 : vector<2x32xf32>
      %450 = math.tanh %449 : vector<2x32xf32>
      %451 = arith.mulf %446, %450 : vector<2x32xf32>
      %452 = arith.index_cast %432 : i32 to index
      %c0_229 = arith.constant 0 : index
      %453 = vector.load %arg24[%452, %c0_229] : memref<32x32xf32, #tpu.memory_space<vmem>>, vector<2x32xf32>
      tpu.vector_store %arg24[%452, %c0_229], %451 {strides = array<i32>} : memref<32x32xf32, #tpu.memory_space<vmem>>, vector<2x32xf32>,
      scf.yield %451, %449 : vector<2x32xf32>, vector<2x32xf32>
    }
    %c4_i32_126 = arith.constant 4 : i32
    %c0_127 = arith.constant 0 : index
    %c0_128 = arith.constant 0 : index
    %222 = vector.load %arg24[%c0_127, %c0_128] : memref<32x32xf32, #tpu.memory_space<vmem>>, vector<32x32xf32>
    %223 = tpu.iota {dimensions = array<i32: 1>} : vector<32x32xi32>
    %c16_i32_129 = arith.constant 16 : i32
    %224 = vector.broadcast %c16_i32_129 : i32 to vector<32x32xi32>
    %225 = arith.cmpi slt, %223, %224 : vector<32x32xi32>
    %cst_130 = arith.constant dense<0.000000e+00> : vector<32x32xf32>
    %226 = tpu.matmul %198, %222, %cst_130 {dimension_numbers = #tpu.dot_dimension_numbers<[1], [0], [0], [1], [0, 0, 1, 1], [], []>} : vector<32x32xf32>, vector<32x32xf32>, vector<32x32xf32> -> vector<32x32xf32>
    %227 = arith.select %225, %222, %226 : vector<32x32xi1>, vector<32x32xf32>
    %cst_131 = arith.constant dense<0.000000e+00> : vector<2x32xf32>
    %228 = tpu.matmul %18, %227, %cst_131 {dimension_numbers = #tpu.dot_dimension_numbers<[1], [0], [0], [1], [0, 0, 1, 1], [], []>} : vector<2x32xf32>, vector<32x32xf32>, vector<2x32xf32> -> vector<2x32xf32>
    %229 = arith.mulf %228, %80 : vector<2x32xf32>
    %230 = arith.addf %177, %229 : vector<2x32xf32>
    %cst_132 = arith.constant dense<0.000000e+00> : vector<2x32xf32>
    %231 = tpu.matmul %230, %77, %cst_132 {dimension_numbers = #tpu.dot_dimension_numbers<[1], [0], [0], [1], [0, 0, 1, 1], [], []>} : vector<2x32xf32>, vector<32x32xf32>, vector<2x32xf32> -> vector<2x32xf32>
    %cst_133 = arith.constant dense<0.000000e+00> : vector<32x32xf32>
    %232 = tpu.matmul %227, %78, %cst_133 {dimension_numbers = #tpu.dot_dimension_numbers<[1], [0], [0], [1], [0, 0, 1, 1], [], []>} : vector<32x32xf32>, vector<32x32xf32>, vector<32x32xf32> -> vector<32x32xf32>
    %cst_134 = arith.constant dense<0.000000e+00> : vector<32x32xf32>
    %233 = tpu.matmul %25, %231, %cst_134 {dimension_numbers = #tpu.dot_dimension_numbers<[1], [0], [0], [1], [0, 0, 1, 1], [], []>} : vector<32x2xf32>, vector<2x32xf32>, vector<32x32xf32> -> vector<32x32xf32>
    %234 = arith.addf %232, %233 : vector<32x32xf32>
    %235 = vector.broadcast %79 : vector<1x32xf32> to vector<32x32xf32>
    %236 = arith.addf %234, %235 : vector<32x32xf32>
    %cst_135 = arith.constant 0.000000e+00 : f32
    %237 = vector.broadcast %cst_135 : f32 to vector<32x32xf32>
    %238 = arith.maximumf %236, %237 : vector<32x32xf32>
    %239 = arith.addf %238, %227 : vector<32x32xf32>
    %240 = tpu.iota {dimensions = array<i32: 0>} : vector<32x32xi32>
    %241 = tpu.iota {dimensions = array<i32: 1>} : vector<32x32xi32>
    %c30_i32_136 = arith.constant 30 : i32
    %242 = vector.broadcast %c30_i32_136 : i32 to vector<32x32xi32>
    %243 = arith.subi %242, %240 : vector<32x32xi32>
    %c1_i32_137 = arith.constant 1 : i32
    %244 = vector.broadcast %c1_i32_137 : i32 to vector<32x32xi32>
    %245 = arith.andi %240, %244 : vector<32x32xi32>
    %c2_i32_138 = arith.constant 2 : i32
    %246 = vector.broadcast %c2_i32_138 : i32 to vector<32x32xi32>
    %247 = arith.muli %246, %245 : vector<32x32xi32>
    %248 = arith.addi %243, %247 : vector<32x32xi32>
    %249 = arith.cmpi eq, %241, %248 : vector<32x32xi32>
    %250 = arith.extui %249 : vector<32x32xi1> to vector<32x32xi32>
    %251 = arith.sitofp %250 : vector<32x32xi32> to vector<32x32xf32>
    %c0_139 = arith.constant 0 : index
    %c0_140 = arith.constant 0 : index
    %252 = vector.load %arg7[%c0_139, %c0_140] : memref<32x128xf32, #tpu.memory_space<vmem>>, vector<32x128xf32>
    %cst_141 = arith.constant dense<0.000000e+00> : vector<32x128xf32>
    %253 = tpu.matmul %239, %252, %cst_141 {dimension_numbers = #tpu.dot_dimension_numbers<[1], [0], [0], [1], [0, 0, 1, 1], [], []>} : vector<32x32xf32>, vector<32x128xf32>, vector<32x128xf32> -> vector<32x128xf32>
    %c0_142 = arith.constant 0 : index
    %c0_143 = arith.constant 0 : index
    %254 = vector.load %arg9[%c0_142, %c0_143] : memref<1x128xf32, #tpu.memory_space<vmem>>, vector<1x128xf32>
    %255 = vector.broadcast %254 : vector<1x128xf32> to vector<32x128xf32>
    %256 = arith.addf %253, %255 : vector<32x128xf32>
    %257 = tpu.iota {dimensions = array<i32: 1>} : vector<32x128xi32>
    %c16_i32_144 = arith.constant 16 : i32
    %258 = vector.broadcast %c16_i32_144 : i32 to vector<32x128xi32>
    %259 = arith.andi %257, %258 : vector<32x128xi32>
    %c0_i32_145 = arith.constant 0 : i32
    %260 = vector.broadcast %c0_i32_145 : i32 to vector<32x128xi32>
    %261 = arith.cmpi ne, %259, %260 : vector<32x128xi32>
    %cst_146 = arith.constant dense<0.000000e+00> : vector<32x128xf32>
    %262 = tpu.matmul %251, %256, %cst_146 {dimension_numbers = #tpu.dot_dimension_numbers<[1], [0], [0], [1], [0, 0, 1, 1], [], []>} : vector<32x32xf32>, vector<32x128xf32>, vector<32x128xf32> -> vector<32x128xf32>
    %263 = arith.select %261, %262, %256 : vector<32x128xi1>, vector<32x128xf32>
    %c0_147 = arith.constant 0 : index
    %c0_148 = arith.constant 0 : index
    %264 = vector.load %arg23[%c0_147, %c0_148] : memref<32x128xf32, #tpu.memory_space<vmem>>, vector<32x128xf32>
    tpu.vector_store %arg23[%c0_147, %c0_148], %263 {strides = array<i32>} : memref<32x128xf32, #tpu.memory_space<vmem>>, vector<32x128xf32>,
    %c0_149 = arith.constant 0 : index
    %c0_150 = arith.constant 0 : index
    %265 = vector.load %arg8[%c0_149, %c0_150] : memref<32x128xf32, #tpu.memory_space<vmem>>, vector<32x128xf32>
    %266 = tpu.iota {dimensions = array<i32: 1>} : vector<2x128xi32>
    %c64_i32_151 = arith.constant 64 : i32
    %267 = vector.broadcast %c64_i32_151 : i32 to vector<2x128xi32>
    %268 = arith.cmpi sge, %266, %267 : vector<2x128xi32>
    %c96_i32_152 = arith.constant 96 : i32
    %269 = vector.broadcast %c96_i32_152 : i32 to vector<2x128xi32>
    %270 = arith.cmpi slt, %266, %269 : vector<2x128xi32>
    %271 = arith.andi %268, %270 : vector<2x128xi1>
    %cst_153 = arith.constant 0.000000e+00 : f32
    %272 = vector.broadcast %cst_153 : f32 to vector<2x32xf32>
    %c0_i32_154 = arith.constant 0 : i32
    %c4_i32_155 = arith.constant 4 : i32
    %273 = arith.addi %c0_i32_154, %c4_i32_155 : i32
    %c1_i32_156 = arith.constant 1 : i32
    %274:2 = scf.for %arg25 = %c0_i32_154 to %273 step %c1_i32_156 iter_args(%arg26 = %272, %arg27 = %272) -> (vector<2x32xf32>, vector<2x32xf32>)  : i32 {
      %c4_i32_199 = arith.constant 4 : i32
      %354 = arith.muli %arg25, %c4_i32_199 : i32
      %c0_i32_200 = arith.constant 0 : i32
      %355 = arith.addi %354, %c0_i32_200 : i32
      %c2_i32_201 = arith.constant 2 : i32
      %356 = arith.muli %355, %c2_i32_201 : i32
      %357 = tpu.assume_multiple %356, 2 : i32
      %358 = arith.index_cast %357 : i32 to index
      %c0_202 = arith.constant 0 : index
      %359 = vector.load %arg23[%358, %c0_202] : memref<32x128xf32, #tpu.memory_space<vmem>>, vector<2x128xf32>
      %cst_203 = arith.constant dense<0.000000e+00> : vector<2x128xf32>
      %360 = tpu.matmul %arg26, %265, %cst_203 {dimension_numbers = #tpu.dot_dimension_numbers<[1], [0], [0], [1], [0, 0, 1, 1], [], []>} : vector<2x32xf32>, vector<32x128xf32>, vector<2x128xf32> -> vector<2x128xf32>
      %361 = arith.addf %359, %360 : vector<2x128xf32>
      %362 = math.tanh %361 : vector<2x128xf32>
      %cst_204 = arith.constant 5.000000e-01 : f32
      %363 = vector.broadcast %cst_204 : f32 to vector<2x128xf32>
      %364 = arith.mulf %363, %362 : vector<2x128xf32>
      %cst_205 = arith.constant 5.000000e-01 : f32
      %365 = vector.broadcast %cst_205 : f32 to vector<2x128xf32>
      %366 = arith.addf %364, %365 : vector<2x128xf32>
      %367 = arith.select %271, %362, %366 : vector<2x128xi1>, vector<2x128xf32>
      %368 = vector.extract_strided_slice %367 {offsets = [0, 0], sizes = [2, 32], strides = [1, 1]} : vector<2x128xf32> to vector<2x32xf32>
      %369 = vector.extract_strided_slice %367 {offsets = [0, 32], sizes = [2, 32], strides = [1, 1]} : vector<2x128xf32> to vector<2x32xf32>
      %370 = vector.extract_strided_slice %367 {offsets = [0, 64], sizes = [2, 32], strides = [1, 1]} : vector<2x128xf32> to vector<2x32xf32>
      %371 = vector.extract_strided_slice %367 {offsets = [0, 96], sizes = [2, 32], strides = [1, 1]} : vector<2x128xf32> to vector<2x32xf32>
      %372 = arith.mulf %369, %arg27 : vector<2x32xf32>
      %373 = arith.mulf %368, %370 : vector<2x32xf32>
      %374 = arith.addf %372, %373 : vector<2x32xf32>
      %375 = math.tanh %374 : vector<2x32xf32>
      %376 = arith.mulf %371, %375 : vector<2x32xf32>
      %377 = arith.index_cast %357 : i32 to index
      %c0_206 = arith.constant 0 : index
      %378 = vector.load %arg24[%377, %c0_206] : memref<32x32xf32, #tpu.memory_space<vmem>>, vector<2x32xf32>
      tpu.vector_store %arg24[%377, %c0_206], %376 {strides = array<i32>} : memref<32x32xf32, #tpu.memory_space<vmem>>, vector<2x32xf32>,
      %c4_i32_207 = arith.constant 4 : i32
      %379 = arith.muli %arg25, %c4_i32_207 : i32
      %c1_i32_208 = arith.constant 1 : i32
      %380 = arith.addi %379, %c1_i32_208 : i32
      %c2_i32_209 = arith.constant 2 : i32
      %381 = arith.muli %380, %c2_i32_209 : i32
      %382 = tpu.assume_multiple %381, 2 : i32
      %383 = arith.index_cast %382 : i32 to index
      %c0_210 = arith.constant 0 : index
      %384 = vector.load %arg23[%383, %c0_210] : memref<32x128xf32, #tpu.memory_space<vmem>>, vector<2x128xf32>
      %cst_211 = arith.constant dense<0.000000e+00> : vector<2x128xf32>
      %385 = tpu.matmul %376, %265, %cst_211 {dimension_numbers = #tpu.dot_dimension_numbers<[1], [0], [0], [1], [0, 0, 1, 1], [], []>} : vector<2x32xf32>, vector<32x128xf32>, vector<2x128xf32> -> vector<2x128xf32>
      %386 = arith.addf %384, %385 : vector<2x128xf32>
      %387 = math.tanh %386 : vector<2x128xf32>
      %cst_212 = arith.constant 5.000000e-01 : f32
      %388 = vector.broadcast %cst_212 : f32 to vector<2x128xf32>
      %389 = arith.mulf %388, %387 : vector<2x128xf32>
      %cst_213 = arith.constant 5.000000e-01 : f32
      %390 = vector.broadcast %cst_213 : f32 to vector<2x128xf32>
      %391 = arith.addf %389, %390 : vector<2x128xf32>
      %392 = arith.select %271, %387, %391 : vector<2x128xi1>, vector<2x128xf32>
      %393 = vector.extract_strided_slice %392 {offsets = [0, 0], sizes = [2, 32], strides = [1, 1]} : vector<2x128xf32> to vector<2x32xf32>
      %394 = vector.extract_strided_slice %392 {offsets = [0, 32], sizes = [2, 32], strides = [1, 1]} : vector<2x128xf32> to vector<2x32xf32>
      %395 = vector.extract_strided_slice %392 {offsets = [0, 64], sizes = [2, 32], strides = [1, 1]} : vector<2x128xf32> to vector<2x32xf32>
      %396 = vector.extract_strided_slice %392 {offsets = [0, 96], sizes = [2, 32], strides = [1, 1]} : vector<2x128xf32> to vector<2x32xf32>
      %397 = arith.mulf %394, %374 : vector<2x32xf32>
      %398 = arith.mulf %393, %395 : vector<2x32xf32>
      %399 = arith.addf %397, %398 : vector<2x32xf32>
      %400 = math.tanh %399 : vector<2x32xf32>
      %401 = arith.mulf %396, %400 : vector<2x32xf32>
      %402 = arith.index_cast %382 : i32 to index
      %c0_214 = arith.constant 0 : index
      %403 = vector.load %arg24[%402, %c0_214] : memref<32x32xf32, #tpu.memory_space<vmem>>, vector<2x32xf32>
      tpu.vector_store %arg24[%402, %c0_214], %401 {strides = array<i32>} : memref<32x32xf32, #tpu.memory_space<vmem>>, vector<2x32xf32>,
      %c4_i32_215 = arith.constant 4 : i32
      %404 = arith.muli %arg25, %c4_i32_215 : i32
      %c2_i32_216 = arith.constant 2 : i32
      %405 = arith.addi %404, %c2_i32_216 : i32
      %c2_i32_217 = arith.constant 2 : i32
      %406 = arith.muli %405, %c2_i32_217 : i32
      %407 = tpu.assume_multiple %406, 2 : i32
      %408 = arith.index_cast %407 : i32 to index
      %c0_218 = arith.constant 0 : index
      %409 = vector.load %arg23[%408, %c0_218] : memref<32x128xf32, #tpu.memory_space<vmem>>, vector<2x128xf32>
      %cst_219 = arith.constant dense<0.000000e+00> : vector<2x128xf32>
      %410 = tpu.matmul %401, %265, %cst_219 {dimension_numbers = #tpu.dot_dimension_numbers<[1], [0], [0], [1], [0, 0, 1, 1], [], []>} : vector<2x32xf32>, vector<32x128xf32>, vector<2x128xf32> -> vector<2x128xf32>
      %411 = arith.addf %409, %410 : vector<2x128xf32>
      %412 = math.tanh %411 : vector<2x128xf32>
      %cst_220 = arith.constant 5.000000e-01 : f32
      %413 = vector.broadcast %cst_220 : f32 to vector<2x128xf32>
      %414 = arith.mulf %413, %412 : vector<2x128xf32>
      %cst_221 = arith.constant 5.000000e-01 : f32
      %415 = vector.broadcast %cst_221 : f32 to vector<2x128xf32>
      %416 = arith.addf %414, %415 : vector<2x128xf32>
      %417 = arith.select %271, %412, %416 : vector<2x128xi1>, vector<2x128xf32>
      %418 = vector.extract_strided_slice %417 {offsets = [0, 0], sizes = [2, 32], strides = [1, 1]} : vector<2x128xf32> to vector<2x32xf32>
      %419 = vector.extract_strided_slice %417 {offsets = [0, 32], sizes = [2, 32], strides = [1, 1]} : vector<2x128xf32> to vector<2x32xf32>
      %420 = vector.extract_strided_slice %417 {offsets = [0, 64], sizes = [2, 32], strides = [1, 1]} : vector<2x128xf32> to vector<2x32xf32>
      %421 = vector.extract_strided_slice %417 {offsets = [0, 96], sizes = [2, 32], strides = [1, 1]} : vector<2x128xf32> to vector<2x32xf32>
      %422 = arith.mulf %419, %399 : vector<2x32xf32>
      %423 = arith.mulf %418, %420 : vector<2x32xf32>
      %424 = arith.addf %422, %423 : vector<2x32xf32>
      %425 = math.tanh %424 : vector<2x32xf32>
      %426 = arith.mulf %421, %425 : vector<2x32xf32>
      %427 = arith.index_cast %407 : i32 to index
      %c0_222 = arith.constant 0 : index
      %428 = vector.load %arg24[%427, %c0_222] : memref<32x32xf32, #tpu.memory_space<vmem>>, vector<2x32xf32>
      tpu.vector_store %arg24[%427, %c0_222], %426 {strides = array<i32>} : memref<32x32xf32, #tpu.memory_space<vmem>>, vector<2x32xf32>,
      %c4_i32_223 = arith.constant 4 : i32
      %429 = arith.muli %arg25, %c4_i32_223 : i32
      %c3_i32 = arith.constant 3 : i32
      %430 = arith.addi %429, %c3_i32 : i32
      %c2_i32_224 = arith.constant 2 : i32
      %431 = arith.muli %430, %c2_i32_224 : i32
      %432 = tpu.assume_multiple %431, 2 : i32
      %433 = arith.index_cast %432 : i32 to index
      %c0_225 = arith.constant 0 : index
      %434 = vector.load %arg23[%433, %c0_225] : memref<32x128xf32, #tpu.memory_space<vmem>>, vector<2x128xf32>
      %cst_226 = arith.constant dense<0.000000e+00> : vector<2x128xf32>
      %435 = tpu.matmul %426, %265, %cst_226 {dimension_numbers = #tpu.dot_dimension_numbers<[1], [0], [0], [1], [0, 0, 1, 1], [], []>} : vector<2x32xf32>, vector<32x128xf32>, vector<2x128xf32> -> vector<2x128xf32>
      %436 = arith.addf %434, %435 : vector<2x128xf32>
      %437 = math.tanh %436 : vector<2x128xf32>
      %cst_227 = arith.constant 5.000000e-01 : f32
      %438 = vector.broadcast %cst_227 : f32 to vector<2x128xf32>
      %439 = arith.mulf %438, %437 : vector<2x128xf32>
      %cst_228 = arith.constant 5.000000e-01 : f32
      %440 = vector.broadcast %cst_228 : f32 to vector<2x128xf32>
      %441 = arith.addf %439, %440 : vector<2x128xf32>
      %442 = arith.select %271, %437, %441 : vector<2x128xi1>, vector<2x128xf32>
      %443 = vector.extract_strided_slice %442 {offsets = [0, 0], sizes = [2, 32], strides = [1, 1]} : vector<2x128xf32> to vector<2x32xf32>
      %444 = vector.extract_strided_slice %442 {offsets = [0, 32], sizes = [2, 32], strides = [1, 1]} : vector<2x128xf32> to vector<2x32xf32>
      %445 = vector.extract_strided_slice %442 {offsets = [0, 64], sizes = [2, 32], strides = [1, 1]} : vector<2x128xf32> to vector<2x32xf32>
      %446 = vector.extract_strided_slice %442 {offsets = [0, 96], sizes = [2, 32], strides = [1, 1]} : vector<2x128xf32> to vector<2x32xf32>
      %447 = arith.mulf %444, %424 : vector<2x32xf32>
      %448 = arith.mulf %443, %445 : vector<2x32xf32>
      %449 = arith.addf %447, %448 : vector<2x32xf32>
      %450 = math.tanh %449 : vector<2x32xf32>
      %451 = arith.mulf %446, %450 : vector<2x32xf32>
      %452 = arith.index_cast %432 : i32 to index
      %c0_229 = arith.constant 0 : index
      %453 = vector.load %arg24[%452, %c0_229] : memref<32x32xf32, #tpu.memory_space<vmem>>, vector<2x32xf32>
      tpu.vector_store %arg24[%452, %c0_229], %451 {strides = array<i32>} : memref<32x32xf32, #tpu.memory_space<vmem>>, vector<2x32xf32>,
      scf.yield %451, %449 : vector<2x32xf32>, vector<2x32xf32>
    }
    %c4_i32_157 = arith.constant 4 : i32
    %c0_158 = arith.constant 0 : index
    %c0_159 = arith.constant 0 : index
    %275 = vector.load %arg24[%c0_158, %c0_159] : memref<32x32xf32, #tpu.memory_space<vmem>>, vector<32x32xf32>
    %276 = tpu.iota {dimensions = array<i32: 1>} : vector<32x32xi32>
    %c16_i32_160 = arith.constant 16 : i32
    %277 = vector.broadcast %c16_i32_160 : i32 to vector<32x32xi32>
    %278 = arith.cmpi slt, %276, %277 : vector<32x32xi32>
    %cst_161 = arith.constant dense<0.000000e+00> : vector<32x32xf32>
    %279 = tpu.matmul %251, %275, %cst_161 {dimension_numbers = #tpu.dot_dimension_numbers<[1], [0], [0], [1], [0, 0, 1, 1], [], []>} : vector<32x32xf32>, vector<32x32xf32>, vector<32x32xf32> -> vector<32x32xf32>
    %280 = arith.select %278, %275, %279 : vector<32x32xi1>, vector<32x32xf32>
    %cst_162 = arith.constant dense<0.000000e+00> : vector<2x32xf32>
    %281 = tpu.matmul %18, %280, %cst_162 {dimension_numbers = #tpu.dot_dimension_numbers<[1], [0], [0], [1], [0, 0, 1, 1], [], []>} : vector<2x32xf32>, vector<32x32xf32>, vector<2x32xf32> -> vector<2x32xf32>
    %282 = arith.mulf %281, %80 : vector<2x32xf32>
    %283 = arith.addf %230, %282 : vector<2x32xf32>
    %cst_163 = arith.constant dense<0.000000e+00> : vector<2x32xf32>
    %284 = tpu.matmul %283, %77, %cst_163 {dimension_numbers = #tpu.dot_dimension_numbers<[1], [0], [0], [1], [0, 0, 1, 1], [], []>} : vector<2x32xf32>, vector<32x32xf32>, vector<2x32xf32> -> vector<2x32xf32>
    %cst_164 = arith.constant dense<0.000000e+00> : vector<32x32xf32>
    %285 = tpu.matmul %280, %78, %cst_164 {dimension_numbers = #tpu.dot_dimension_numbers<[1], [0], [0], [1], [0, 0, 1, 1], [], []>} : vector<32x32xf32>, vector<32x32xf32>, vector<32x32xf32> -> vector<32x32xf32>
    %cst_165 = arith.constant dense<0.000000e+00> : vector<32x32xf32>
    %286 = tpu.matmul %25, %284, %cst_165 {dimension_numbers = #tpu.dot_dimension_numbers<[1], [0], [0], [1], [0, 0, 1, 1], [], []>} : vector<32x2xf32>, vector<2x32xf32>, vector<32x32xf32> -> vector<32x32xf32>
    %287 = arith.addf %285, %286 : vector<32x32xf32>
    %288 = vector.broadcast %79 : vector<1x32xf32> to vector<32x32xf32>
    %289 = arith.addf %287, %288 : vector<32x32xf32>
    %cst_166 = arith.constant 0.000000e+00 : f32
    %290 = vector.broadcast %cst_166 : f32 to vector<32x32xf32>
    %291 = arith.maximumf %289, %290 : vector<32x32xf32>
    %292 = arith.addf %291, %280 : vector<32x32xf32>
    %c0_167 = arith.constant 0 : index
    %c0_168 = arith.constant 0 : index
    %293 = vector.load %arg2[%c0_167, %c0_168] : memref<32x32xf32, #tpu.memory_space<vmem>>, vector<32x32xf32>
    %294 = arith.mulf %292, %293 : vector<32x32xf32>
    %c0_169 = arith.constant 0 : index
    %c0_170 = arith.constant 0 : index
    %295 = vector.load %arg16[%c0_169, %c0_170] : memref<32x64xf32, #tpu.memory_space<vmem>>, vector<32x64xf32>
    %cst_171 = arith.constant dense<0.000000e+00> : vector<2x64xf32>
    %296 = tpu.matmul %283, %295, %cst_171 {dimension_numbers = #tpu.dot_dimension_numbers<[1], [0], [0], [1], [0, 0, 1, 1], [], []>} : vector<2x32xf32>, vector<32x64xf32>, vector<2x64xf32> -> vector<2x64xf32>
    %c0_172 = arith.constant 0 : index
    %c0_173 = arith.constant 0 : index
    %297 = vector.load %arg17[%c0_172, %c0_173] : memref<1x64xf32, #tpu.memory_space<vmem>>, vector<1x64xf32>
    %298 = vector.broadcast %297 : vector<1x64xf32> to vector<2x64xf32>
    %299 = arith.addf %296, %298 : vector<2x64xf32>
    %300 = tpu.iota {dimensions = array<i32: 0>} : vector<32x32xi32>
    %301 = tpu.iota {dimensions = array<i32: 1>} : vector<32x32xi32>
    %c2_i32_174 = arith.constant 2 : i32
    %302 = vector.broadcast %c2_i32_174 : i32 to vector<32x32xi32>
    %303 = arith.subi %300, %302 : vector<32x32xi32>
    %304 = arith.cmpi eq, %301, %303 : vector<32x32xi32>
    %305 = arith.extui %304 : vector<32x32xi1> to vector<32x32xi32>
    %306 = arith.sitofp %305 : vector<32x32xi32> to vector<32x32xf32>
    %c2_i32_175 = arith.constant 2 : i32
    %307 = vector.broadcast %c2_i32_175 : i32 to vector<32x32xi32>
    %308 = arith.addi %300, %307 : vector<32x32xi32>
    %309 = arith.cmpi eq, %301, %308 : vector<32x32xi32>
    %310 = arith.extui %309 : vector<32x32xi1> to vector<32x32xi32>
    %311 = arith.sitofp %310 : vector<32x32xi32> to vector<32x32xf32>
    %c1 = arith.constant 1 : index
    %c0_176 = arith.constant 0 : index
    %c0_177 = arith.constant 0 : index
    %312 = vector.load %arg18[%c1, %c0_176, %c0_177] : memref<3x32x128xf32, #tpu.memory_space<vmem>>, vector<1x32x128xf32>
    %313 = vector.shape_cast %312 : vector<1x32x128xf32> to vector<32x128xf32>
    %cst_178 = arith.constant dense<0.000000e+00> : vector<32x128xf32>
    %314 = tpu.matmul %294, %313, %cst_178 {dimension_numbers = #tpu.dot_dimension_numbers<[1], [0], [0], [1], [0, 0, 1, 1], [], []>} : vector<32x32xf32>, vector<32x128xf32>, vector<32x128xf32> -> vector<32x128xf32>
    %cst_179 = arith.constant dense<0.000000e+00> : vector<32x32xf32>
    %315 = tpu.matmul %306, %294, %cst_179 {dimension_numbers = #tpu.dot_dimension_numbers<[1], [0], [0], [1], [0, 0, 1, 1], [], []>} : vector<32x32xf32>, vector<32x32xf32>, vector<32x32xf32> -> vector<32x32xf32>
    %c0_180 = arith.constant 0 : index
    %c0_181 = arith.constant 0 : index
    %c0_182 = arith.constant 0 : index
    %316 = vector.load %arg18[%c0_180, %c0_181, %c0_182] : memref<3x32x128xf32, #tpu.memory_space<vmem>>, vector<1x32x128xf32>
    %317 = vector.shape_cast %316 : vector<1x32x128xf32> to vector<32x128xf32>
    %cst_183 = arith.constant dense<0.000000e+00> : vector<32x128xf32>
    %318 = tpu.matmul %315, %317, %cst_183 {dimension_numbers = #tpu.dot_dimension_numbers<[1], [0], [0], [1], [0, 0, 1, 1], [], []>} : vector<32x32xf32>, vector<32x128xf32>, vector<32x128xf32> -> vector<32x128xf32>
    %319 = arith.addf %314, %318 : vector<32x128xf32>
    %cst_184 = arith.constant dense<0.000000e+00> : vector<32x32xf32>
    %320 = tpu.matmul %311, %294, %cst_184 {dimension_numbers = #tpu.dot_dimension_numbers<[1], [0], [0], [1], [0, 0, 1, 1], [], []>} : vector<32x32xf32>, vector<32x32xf32>, vector<32x32xf32> -> vector<32x32xf32>
    %c2 = arith.constant 2 : index
    %c0_185 = arith.constant 0 : index
    %c0_186 = arith.constant 0 : index
    %321 = vector.load %arg18[%c2, %c0_185, %c0_186] : memref<3x32x128xf32, #tpu.memory_space<vmem>>, vector<1x32x128xf32>
    %322 = vector.shape_cast %321 : vector<1x32x128xf32> to vector<32x128xf32>
    %cst_187 = arith.constant dense<0.000000e+00> : vector<32x128xf32>
    %323 = tpu.matmul %320, %322, %cst_187 {dimension_numbers = #tpu.dot_dimension_numbers<[1], [0], [0], [1], [0, 0, 1, 1], [], []>} : vector<32x32xf32>, vector<32x128xf32>, vector<32x128xf32> -> vector<32x128xf32>
    %324 = arith.addf %319, %323 : vector<32x128xf32>
    %c0_188 = arith.constant 0 : index
    %c0_189 = arith.constant 0 : index
    %325 = vector.load %arg19[%c0_188, %c0_189] : memref<1x128xf32, #tpu.memory_space<vmem>>, vector<1x128xf32>
    %326 = vector.broadcast %325 : vector<1x128xf32> to vector<32x128xf32>
    %327 = arith.addf %324, %326 : vector<32x128xf32>
    %328 = vector.extract_strided_slice %327 {offsets = [0, 0], sizes = [32, 64], strides = [1, 1]} : vector<32x128xf32> to vector<32x64xf32>
    %329 = vector.extract_strided_slice %327 {offsets = [0, 64], sizes = [32, 64], strides = [1, 1]} : vector<32x128xf32> to vector<32x64xf32>
    %cst_190 = arith.constant dense<0.000000e+00> : vector<32x64xf32>
    %330 = tpu.matmul %25, %299, %cst_190 {dimension_numbers = #tpu.dot_dimension_numbers<[1], [0], [0], [1], [0, 0, 1, 1], [], []>} : vector<32x2xf32>, vector<2x64xf32>, vector<32x64xf32> -> vector<32x64xf32>
    %331 = arith.addf %329, %330 : vector<32x64xf32>
    %332 = math.tanh %328 : vector<32x64xf32>
    %cst_191 = arith.constant 0.000000e+00 : f32
    %333 = vector.broadcast %cst_191 : f32 to vector<32x64xf32>
    %334 = arith.maximumf %331, %333 : vector<32x64xf32>
    %335 = arith.mulf %332, %334 : vector<32x64xf32>
    %336 = vector.extract_strided_slice %335 {offsets = [0, 0], sizes = [16, 64], strides = [1, 1]} : vector<32x64xf32> to vector<16x64xf32>
    %337 = vector.extract_strided_slice %335 {offsets = [16, 0], sizes = [16, 64], strides = [1, 1]} : vector<32x64xf32> to vector<16x64xf32>
    %338 = arith.maximumf %336, %337 : vector<16x64xf32>
    %339 = vector.extract_strided_slice %338 {offsets = [0, 0], sizes = [8, 64], strides = [1, 1]} : vector<16x64xf32> to vector<8x64xf32>
    %340 = vector.extract_strided_slice %338 {offsets = [8, 0], sizes = [8, 64], strides = [1, 1]} : vector<16x64xf32> to vector<8x64xf32>
    %341 = arith.maximumf %339, %340 : vector<8x64xf32>
    %342 = vector.extract_strided_slice %341 {offsets = [0, 0], sizes = [4, 64], strides = [1, 1]} : vector<8x64xf32> to vector<4x64xf32>
    %343 = vector.extract_strided_slice %341 {offsets = [4, 0], sizes = [4, 64], strides = [1, 1]} : vector<8x64xf32> to vector<4x64xf32>
    %344 = arith.maximumf %342, %343 : vector<4x64xf32>
    %345 = vector.extract_strided_slice %344 {offsets = [0, 0], sizes = [2, 64], strides = [1, 1]} : vector<4x64xf32> to vector<2x64xf32>
    %346 = vector.extract_strided_slice %344 {offsets = [2, 0], sizes = [2, 64], strides = [1, 1]} : vector<4x64xf32> to vector<2x64xf32>
    %347 = arith.maximumf %345, %346 : vector<2x64xf32>
    %c0_192 = arith.constant 0 : index
    %c0_193 = arith.constant 0 : index
    %348 = vector.load %arg20[%c0_192, %c0_193] : memref<64x3xf32, #tpu.memory_space<vmem>>, vector<64x3xf32>
    %cst_194 = arith.constant dense<0.000000e+00> : vector<2x3xf32>
    %349 = tpu.matmul %347, %348, %cst_194 {dimension_numbers = #tpu.dot_dimension_numbers<[1], [0], [0], [1], [0, 0, 1, 1], [], []>} : vector<2x64xf32>, vector<64x3xf32>, vector<2x3xf32> -> vector<2x3xf32>
    %c0_195 = arith.constant 0 : index
    %c0_196 = arith.constant 0 : index
    %350 = vector.load %arg21[%c0_195, %c0_196] : memref<1x3xf32, #tpu.memory_space<vmem>>, vector<1x3xf32>
    %351 = vector.broadcast %350 : vector<1x3xf32> to vector<2x3xf32>
    %352 = arith.addf %349, %351 : vector<2x3xf32>
    %c0_197 = arith.constant 0 : index
    %c0_198 = arith.constant 0 : index
    %353 = vector.load %arg22[%c0_197, %c0_198] : memref<2x3xf32, #tpu.memory_space<vmem>>, vector<2x3xf32>
    tpu.vector_store %arg22[%c0_197, %c0_198], %352 {strides = array<i32>} : memref<2x3xf32, #tpu.memory_space<vmem>>, vector<2x3xf32>,
    return
  }
}

</mosaic_0001>

<llo_original>
// kernel: metnet_forward.1
$region0: #{metnet_forward.1}
  #allocation0 [shape = 'u32[]', space=smem, size = 0x4, offset = 0x4, fixed_abs, tag = 'smem constant byte address 0x4 - core index']
  #allocation1 [shape = 'u32[72,128]{1,0:T(1,128)}', space=vmem, size = 0x9000, scoped, tag = 'internal scratch']
  #allocation2 [shape = 'f32[32,128]{1,0:T(8,128)}', space=vmem, size = 0x4000, scoped, tag = 'scratch operand']
  #allocation3 [shape = 'f32[32,32]{1,0:T(8,128)}', space=vmem, size = 0x4000, scoped, tag = 'scratch operand']
  %s0 = inlined_call_operand.vmem [shape: f32[32,32], index: 0, kind: input, shape index: {}]
  %s1 = inlined_call_operand.vmem [shape: f32[16,32], index: 1, kind: input, shape index: {}]
  %s2 = inlined_call_operand.vmem [shape: f32[32,32], index: 2, kind: input, shape index: {}]
  %s3 = inlined_call_operand.vmem [shape: f32[2,32], index: 3, kind: input, shape index: {}]
  %s4 = inlined_call_operand.vmem [shape: f32[2,32], index: 4, kind: input, shape index: {}]
  %s5 = inlined_call_operand.vmem [shape: f32[32,32], index: 5, kind: input, shape index: {}]
  %s6 = inlined_call_operand.vmem [shape: f32[1,32], index: 6, kind: input, shape index: {}]
  %s7 = inlined_call_operand.vmem [shape: f32[32,128], index: 7, kind: input, shape index: {}]
  %s8 = inlined_call_operand.vmem [shape: f32[32,128], index: 8, kind: input, shape index: {}]
  %s9 = inlined_call_operand.vmem [shape: f32[1,128], index: 9, kind: input, shape index: {}]
  %s10 = inlined_call_operand.vmem [shape: f32[32,128], index: 10, kind: input, shape index: {}]
  %s11 = inlined_call_operand.vmem [shape: f32[32,128], index: 11, kind: input, shape index: {}]
  %s12 = inlined_call_operand.vmem [shape: f32[1,128], index: 12, kind: input, shape index: {}]
  %s13 = inlined_call_operand.vmem [shape: f32[32,32], index: 13, kind: input, shape index: {}]
  %s14 = inlined_call_operand.vmem [shape: f32[32,32], index: 14, kind: input, shape index: {}]
  %s15 = inlined_call_operand.vmem [shape: f32[1,32], index: 15, kind: input, shape index: {}]
  %s16 = inlined_call_operand.vmem [shape: f32[32,64], index: 16, kind: input, shape index: {}]
  %s17 = inlined_call_operand.vmem [shape: f32[1,64], index: 17, kind: input, shape index: {}]
  %s18 = inlined_call_operand.vmem [shape: f32[3,32,128], index: 18, kind: input, shape index: {}]
  %s19 = inlined_call_operand.vmem [shape: f32[1,128], index: 19, kind: input, shape index: {}]
  %s20 = inlined_call_operand.vmem [shape: f32[64,3], index: 20, kind: input, shape index: {}]
  %s21 = inlined_call_operand.vmem [shape: f32[1,3], index: 21, kind: input, shape index: {}]
  %s22 = inlined_call_operand.hbm [shape: f32[2,3], index: 22, kind: output, shape index: {}]
  %s23 = sld [smem:[#allocation0]]
  $region133: #{metnet_forward.1} parent=0
    _
  %s25 = ssub.s32 1, %s23
  %s26 = scalar_select 0, %s25, %s23
  $region1: #{metnet_forward.1} parent=0
    #allocation4 [shape = 'u8[1024]{0}', space=vmem, size = 0x400, scoped, tag = 'output window, operand 0, single buffered']
    #allocation5 [shape = 's32[1]{0}', space=sflag, size = 0x4, scoped, tag = 'scoped memory for metnet_forward.1']
    %27 = vsyncpa [#allocation5], 0
    // Predicated region
    $region2: #{metnet_forward.1} parent=1 // pred_check
      _
    $region3: #{metnet_forward.1} parent=1 // pred_check_branch
      %29 = sbr.rel (0) target = $region5
    $region4: #{metnet_forward.1} parent=1 // pred_region
      _
    $region5: #{metnet_forward.1} parent=1 // pred_fallthru
      _
    // Predicated region
    $region6: #{metnet_forward.1} parent=1 // pred_check
      _
    $region7: #{metnet_forward.1} parent=1 // pred_check_branch
      %31 = sbr.rel (0) target = $region9
    $region8: #{metnet_forward.1} parent=1 // pred_region
      _
    $region9: #{metnet_forward.1} parent=1 // pred_fallthru
      _
    // Predicated region
    $region10: #{metnet_forward.1} parent=1 // pred_check
      _
    $region11: #{metnet_forward.1} parent=1 // pred_check_branch
      %33 = sbr.rel (0) target = $region13
    $region12: #{metnet_forward.1} parent=1 // pred_region
      _
    $region13: #{metnet_forward.1} parent=1 // pred_fallthru
      _
    // Predicated region
    $region14: #{metnet_forward.1} parent=1 // pred_check
      _
    $region15: #{metnet_forward.1} parent=1 // pred_check_branch
      %35 = sbr.rel (0) target = $region17
    $region16: #{metnet_forward.1} parent=1 // pred_region
      _
    $region17: #{metnet_forward.1} parent=1 // pred_fallthru
      _
    // Predicated region
    $region18: #{metnet_forward.1} parent=1 // pred_check
      _
    $region19: #{metnet_forward.1} parent=1 // pred_check_branch
      %37 = sbr.rel (0) target = $region21
    $region20: #{metnet_forward.1} parent=1 // pred_region
      _
    $region21: #{metnet_forward.1} parent=1 // pred_fallthru
      _
    // Predicated region
    $region22: #{metnet_forward.1} parent=1 // pred_check
      _
    $region23: #{metnet_forward.1} parent=1 // pred_check_branch
      %39 = sbr.rel (0) target = $region25
    $region24: #{metnet_forward.1} parent=1 // pred_region
      _
    $region25: #{metnet_forward.1} parent=1 // pred_fallthru
      _
    // Predicated region
    $region26: #{metnet_forward.1} parent=1 // pred_check
      _
    $region27: #{metnet_forward.1} parent=1 // pred_check_branch
      %41 = sbr.rel (0) target = $region29
    $region28: #{metnet_forward.1} parent=1 // pred_region
      _
    $region29: #{metnet_forward.1} parent=1 // pred_fallthru
      _
    // Predicated region
    $region30: #{metnet_forward.1} parent=1 // pred_check
      _
    $region31: #{metnet_forward.1} parent=1 // pred_check_branch
      %43 = sbr.rel (0) target = $region33
    $region32: #{metnet_forward.1} parent=1 // pred_region
      _
    $region33: #{metnet_forward.1} parent=1 // pred_fallthru
      _
    // Predicated region
    $region34: #{metnet_forward.1} parent=1 // pred_check
      _
    $region35: #{metnet_forward.1} parent=1 // pred_check_branch
      %45 = sbr.rel (0) target = $region37
    $region36: #{metnet_forward.1} parent=1 // pred_region
      _
    $region37: #{metnet_forward.1} parent=1 // pred_fallthru
      _
    // Predicated region
    $region38: #{metnet_forward.1} parent=1 // pred_check
      _
    $region39: #{metnet_forward.1} parent=1 // pred_check_branch
      %47 = sbr.rel (0) target = $region41
    $region40: #{metnet_forward.1} parent=1 // pred_region
      _
    $region41: #{metnet_forward.1} parent=1 // pred_fallthru
      _
    // Predicated region
    $region42: #{metnet_forward.1} parent=1 // pred_check
      _
    $region43: #{metnet_forward.1} parent=1 // pred_check_branch
      %49 = sbr.rel (0) target = $region45
    $region44: #{metnet_forward.1} parent=1 // pred_region
      _
    $region45: #{metnet_forward.1} parent=1 // pred_fallthru
      _
    // Predicated region
    $region46: #{metnet_forward.1} parent=1 // pred_check
      _
    $region47: #{metnet_forward.1} parent=1 // pred_check_branch
      %51 = sbr.rel (0) target = $region49
    $region48: #{metnet_forward.1} parent=1 // pred_region
      _
    $region49: #{metnet_forward.1} parent=1 // pred_fallthru
      _
    // Predicated region
    $region50: #{metnet_forward.1} parent=1 // pred_check
      _
    $region51: #{metnet_forward.1} parent=1 // pred_check_branch
      %53 = sbr.rel (0) target = $region53
    $region52: #{metnet_forward.1} parent=1 // pred_region
      _
    $region53: #{metnet_forward.1} parent=1 // pred_fallthru
      _
    // Predicated region
    $region54: #{metnet_forward.1} parent=1 // pred_check
      _
    $region55: #{metnet_forward.1} parent=1 // pred_check_branch
      %55 = sbr.rel (0) target = $region57
    $region56: #{metnet_forward.1} parent=1 // pred_region
      _
    $region57: #{metnet_forward.1} parent=1 // pred_fallthru
      _
    // Predicated region
    $region58: #{metnet_forward.1} parent=1 // pred_check
      _
    $region59: #{metnet_forward.1} parent=1 // pred_check_branch
      %57 = sbr.rel (0) target = $region61
    $region60: #{metnet_forward.1} parent=1 // pred_region
      _
    $region61: #{metnet_forward.1} parent=1 // pred_fallthru
      _
    // Predicated region
    $region62: #{metnet_forward.1} parent=1 // pred_check
      _
    $region63: #{metnet_forward.1} parent=1 // pred_check_branch
      %59 = sbr.rel (0) target = $region65
    $region64: #{metnet_forward.1} parent=1 // pred_region
      _
    $region65: #{metnet_forward.1} parent=1 // pred_fallthru
      _
    // Predicated region
    $region66: #{metnet_forward.1} parent=1 // pred_check
      _
    $region67: #{metnet_forward.1} parent=1 // pred_check_branch
      %61 = sbr.rel (0) target = $region69
    $region68: #{metnet_forward.1} parent=1 // pred_region
      _
    $region69: #{metnet_forward.1} parent=1 // pred_fallthru
      _
    // Predicated region
    $region70: #{metnet_forward.1} parent=1 // pred_check
      _
    $region71: #{metnet_forward.1} parent=1 // pred_check_branch
      %63 = sbr.rel (0) target = $region73
    $region72: #{metnet_forward.1} parent=1 // pred_region
      _
    $region73: #{metnet_forward.1} parent=1 // pred_fallthru
      _
    // Predicated region
    $region74: #{metnet_forward.1} parent=1 // pred_check
      _
    $region75: #{metnet_forward.1} parent=1 // pred_check_branch
      %65 = sbr.rel (0) target = $region77
    $region76: #{metnet_forward.1} parent=1 // pred_region
      _
    $region77: #{metnet_forward.1} parent=1 // pred_fallthru
      _
    // Predicated region
    $region78: #{metnet_forward.1} parent=1 // pred_check
      _
    $region79: #{metnet_forward.1} parent=1 // pred_check_branch
      %67 = sbr.rel (0) target = $region81
    $region80: #{metnet_forward.1} parent=1 // pred_region
      _
    $region81: #{metnet_forward.1} parent=1 // pred_fallthru
      _
    // Predicated region
    $region82: #{metnet_forward.1} parent=1 // pred_check
      _
    $region83: #{metnet_forward.1} parent=1 // pred_check_branch
      %69 = sbr.rel (0) target = $region85
    $region84: #{metnet_forward.1} parent=1 // pred_region
      _
    $region85: #{metnet_forward.1} parent=1 // pred_fallthru
      _
    // Predicated region
    $region86: #{metnet_forward.1} parent=1 // pred_check
      _
    $region87: #{metnet_forward.1} parent=1 // pred_check_branch
      %71 = sbr.rel (0) target = $region89
    $region88: #{metnet_forward.1} parent=1 // pred_region
      _
    $region89: #{metnet_forward.1} parent=1 // pred_fallthru
      _
    %v72 = vld [vmem:[%s0] sm:$0xff]
    %v73 = vld [vmem:[%s0 + $0x8] sm:$0xff]
    %v74 = vld [vmem:[%s0 + $0x10] sm:$0xff]
    %v75 = vld [vmem:[%s0 + $0x18] sm:$0xff]
    %v76 = vld [vmem:[%s5] sm:$0xff]
    %v77 = vld [vmem:[%s5 + $0x8] sm:$0xff]
    %v78 = vld [vmem:[%s5 + $0x10] sm:$0xff]
    %v79 = vld [vmem:[%s5 + $0x18] sm:$0xff]
    %v80 = vld [vmem:[%s6] sm:$0x1]
    %v82 = vperm.slane %v80, 0
    %vm84 = vcmask 261120
    %v86 = vsel %vm84, %v72, 0
    %v89 = vsel %vm84, %v73, 0
    %v92 = vsel %vm84, %v74, 0
    %v95 = vsel %vm84, %v75, 0
    %97 = vmatpush.msra.mxu0 0.0
    %98 = vmatpush.msra.mxu0 0.0
    %99 = vmatpush.msra.mxu0 0.0
    %100 = vmatpush.msra.mxu0 0.0
    %101 = vmatpush.msra.mxu0 0.0
    %102 = vmatpush.msra.mxu0 0.0
    %103 = vmatpush.msra.mxu0 0.0
    %104 = vmatpush.msra.mxu0 0.0
    %105 = vmatpush.msra.mxu0 0.0
    %106 = vmatpush.msra.mxu0 0.0
    %107 = vmatpush.msra.mxu0 0.0
    %108 = vmatpush.msra.mxu0 0.0
    %109 = vmatpush.msra.mxu0 %v79
    %110 = vmatpush.msra.mxu0 %v78
    %111 = vmatpush.msra.mxu0 %v77
    %112 = vmatpush.msra.mxu0 %v76
    %113 = vmatmul.f32.gmra.mxu0 %v86
    %v114 = vpop.f32.mrf.mxu0
    %v115 = vadd.f32 %v82, %v114
    %116 = vmatmul.f32.gmra.mxu0 %v89
    %v117 = vpop.f32.mrf.mxu0
    %v118 = vadd.f32 %v82, %v117
    %119 = vmatmul.f32.gmra.mxu0 %v92
    %v120 = vpop.f32.mrf.mxu0
    %v121 = vadd.f32 %v82, %v120
    %122 = vmatmul.f32.gmra.mxu0 %v95
    %v123 = vpop.f32.mrf.mxu0
    %v124 = vadd.f32 %v82, %v123
    %125 = vdwg.mxu0
    %v126 = vld [vmem:[%s1] sm:$0xff]
    %v127 = vld [vmem:[%s1 + $0x8] sm:$0xff]
    %v129 = vsel %vm84, %v126, 0
    %v132 = vsel %vm84, %v127, 0
    %134 = vmatpush.msra.mxu0 0.0
    %135 = vmatpush.msra.mxu0 0.0
    %136 = vmatpush.msra.mxu0 0.0
    %137 = vmatpush.msra.mxu0 0.0
    %138 = vmatpush.msra.mxu0 0.0
    %139 = vmatpush.msra.mxu0 0.0
    %140 = vmatpush.msra.mxu0 0.0
    %141 = vmatpush.msra.mxu0 0.0
    %142 = vmatpush.msra.mxu0 0.0
    %143 = vmatpush.msra.mxu0 0.0
    %144 = vmatpush.msra.mxu0 0.0
    %145 = vmatpush.msra.mxu0 0.0
    %146 = vmatpush.msra.mxu0 %v79
    %147 = vmatpush.msra.mxu0 %v78
    %148 = vmatpush.msra.mxu0 %v77
    %149 = vmatpush.msra.mxu0 %v76
    %150 = vmatmul.f32.gmra.mxu0 %v129
    %v151 = vpop.f32.mrf.mxu0
    %v152 = vadd.f32 %v82, %v151
    %153 = vmatmul.f32.gmra.mxu0 %v132
    %v154 = vpop.f32.mrf.mxu0
    %v155 = vadd.f32 %v82, %v154
    %156 = vdwg.mxu0
    %v157 = vlaneseq
    %v158 = vshrl.u32 %v157, 7
    %v159 = vlaneseq
    %v160 = vand.u32 %v159, 127
    %v161 = vand.u32 %v160, 1
    %vm162 = vcmp.eq.s32.totalorder %v161, %v158
    %v163 = vsel %vm162, 1, 0
    %v164 = vcvt.s32.f32 %v163
    %v165 = vadd.s32 %v158, 8
    %v166 = vadd.s32 %v158, 16
    %v167 = vadd.s32 %v158, 24
    %v168 = vand.u32 %v158, 1
    %v169 = vand.u32 %v165, 1
    %v170 = vand.u32 %v166, 1
    %v171 = vand.u32 %v167, 1
    %vm172 = vcmp.eq.s32.totalorder %v168, %v160
    %vm173 = vcmp.eq.s32.totalorder %v169, %v160
    %vm174 = vcmp.eq.s32.totalorder %v170, %v160
    %vm175 = vcmp.eq.s32.totalorder %v171, %v160
    %v176 = vsel %vm172, 1, 0
    %v177 = vsel %vm173, 1, 0
    %v178 = vsel %vm174, 1, 0
    %v179 = vsel %vm175, 1, 0
    %v180 = vcvt.s32.f32 %v176
    %v181 = vcvt.s32.f32 %v177
    %v182 = vcvt.s32.f32 %v178
    %v183 = vcvt.s32.f32 %v179
    %v184 = vsub.s32 14, %v158
    %v185 = vsub.s32 14, %v165
    %v186 = vmul.u32 %v168, 2
    %v187 = vmul.u32 %v169, 2
    %v188 = vadd.s32 %v184, %v186
    %v189 = vadd.s32 %v185, %v187
    %vm190 = vcmp.eq.s32.totalorder %v160, %v188
    %vm191 = vcmp.eq.s32.totalorder %v160, %v189
    %v192 = vsel %vm190, 1, 0
    %v193 = vsel %vm191, 1, 0
    %v194 = vcvt.s32.f32 %v192
    %v195 = vcvt.s32.f32 %v193
    %v196 = vld [vmem:[%s10] sm:$0xff]
    %v197 = vld [vmem:[%s10 + $0x8] sm:$0xff]
    %v198 = vld [vmem:[%s10 + $0x10] sm:$0xff]
    %v199 = vld [vmem:[%s10 + $0x18] sm:$0xff]
    %v200 = vld [vmem:[%s12] sm:$0x1]
    %v202 = vperm.slane %v200, 0
    %v205 = vsel %vm84, %v152, 0
    %v208 = vsel %vm84, %v155, 0
    %210 = vmatpush.msra.mxu0 0.0
    %211 = vmatpush.msra.mxu0 0.0
    %212 = vmatpush.msra.mxu0 0.0
    %213 = vmatpush.msra.mxu0 0.0
    %214 = vmatpush.msra.mxu0 0.0
    %215 = vmatpush.msra.mxu0 0.0
    %216 = vmatpush.msra.mxu0 0.0
    %217 = vmatpush.msra.mxu0 0.0
    %218 = vmatpush.msra.mxu0 0.0
    %219 = vmatpush.msra.mxu0 0.0
    %220 = vmatpush.msra.mxu0 0.0
    %221 = vmatpush.msra.mxu0 0.0
    %222 = vmatpush.msra.mxu0 %v199
    %223 = vmatpush.msra.mxu0 %v198
    %224 = vmatpush.msra.mxu0 %v197
    %225 = vmatpush.msra.mxu0 %v196
    %226 = vmatmul.f32.gmra.mxu0 %v205
    %v227 = vpop.f32.mrf.mxu0
    %v228 = vadd.f32 %v202, %v227
    %229 = vmatmul.f32.gmra.mxu0 %v208
    %v230 = vpop.f32.mrf.mxu0
    %v231 = vadd.f32 %v202, %v230
    %232 = vdwg.mxu0
    %v233 = vand.u32 %v160, 16
    %vm234 = vcmp.ne.s32.totalorder %v233, 0
    %vm235 = vcmask 130048
    %v237 = vsel %vm235, %v194, 0
    %v240 = vsel %vm235, %v195, 0
    %242 = vmatpush.msra.mxu0 0.0
    %243 = vmatpush.msra.mxu0 0.0
    %244 = vmatpush.msra.mxu0 0.0
    %245 = vmatpush.msra.mxu0 0.0
    %246 = vmatpush.msra.mxu0 0.0
    %247 = vmatpush.msra.mxu0 0.0
    %248 = vmatpush.msra.mxu0 0.0
    %249 = vmatpush.msra.mxu0 0.0
    %250 = vmatpush.msra.mxu0 0.0
    %251 = vmatpush.msra.mxu0 0.0
    %252 = vmatpush.msra.mxu0 0.0
    %253 = vmatpush.msra.mxu0 0.0
    %254 = vmatpush.msra.mxu0 0.0
    %255 = vmatpush.msra.mxu0 0.0
    %256 = vmatpush.msra.mxu0 %v231
    %257 = vmatpush.msra.mxu0 %v228
    %258 = vmatmul.f32.gmra.mxu0 %v237
    %v259 = vpop.f32.mrf.mxu0
    %v260 = vadd.f32 0.0, %v259
    %261 = vmatmul.f32.gmra.mxu0 %v240
    %v262 = vpop.f32.mrf.mxu0
    %v263 = vadd.f32 0.0, %v262
    %264 = vdwg.mxu0
    %v265 = vsel %vm234, %v260, %v228
    %v266 = vsel %vm234, %v263, %v231
    %267 = vst [vmem:[#allocation2] sm:$0xff] %v265
    %268 = vst [vmem:[#allocation2 + $0x8] sm:$0xff] %v266
    %v269 = vld [vmem:[%s11] sm:$0xff]
    %v270 = vld [vmem:[%s11 + $0x8] sm:$0xff]
    %v271 = vld [vmem:[%s11 + $0x10] sm:$0xff]
    %v272 = vld [vmem:[%s11 + $0x18] sm:$0xff]
    %vm273 = vcmp.ge.s32.totalorder %v160, 64
    %vm274 = vcmp.lt.s32.totalorder %v160, 96
    %vm275 = vmand %vm273, %vm274
    loop: start=0, step=1, limit=2
    $region90: #{metnet_forward.1} parent=1 // loop_pre_header
      _
    $region91: #{metnet_forward.1} parent=1 // loop_header
      %s277 = sphi 0, %s281
      %p278 = scmp.ge.s32.totalorder %s277, 2
      %v282 = vphi 0.0, %v497
      %v283 = vphi 0.0, %v491
    $region92: #{metnet_forward.1} parent=1 // loop_header_branch
      %280 = sbr.rel (%p278) target = $region96
    $region93: #{metnet_forward.1} parent=1 // loop_body
      %s284 = smul.u32 %s277, 8
      %s285 = scalar_lea.vmem [#allocation2], %s284
      %v286 = vld [vmem:[%s285] sm:$0x3]
      %288 = vrot.lane.b32.xlu0 %v282, 32
      %v289 = vpop.permute.xlu0 %288
      %v290 = vsel %vm84, %v289, 0
      %292 = vmatpush.msra.mxu0 0.0
      %293 = vmatpush.msra.mxu0 0.0
      %294 = vmatpush.msra.mxu0 0.0
      %295 = vmatpush.msra.mxu0 0.0
      %296 = vmatpush.msra.mxu0 0.0
      %297 = vmatpush.msra.mxu0 0.0
      %298 = vmatpush.msra.mxu0 0.0
      %299 = vmatpush.msra.mxu0 0.0
      %300 = vmatpush.msra.mxu0 0.0
      %301 = vmatpush.msra.mxu0 0.0
      %302 = vmatpush.msra.mxu0 0.0
      %303 = vmatpush.msra.mxu0 0.0
      %304 = vmatpush.msra.mxu0 %v272
      %305 = vmatpush.msra.mxu0 %v271
      %306 = vmatpush.msra.mxu0 %v270
      %307 = vmatpush.msra.mxu0 %v269
      %308 = vmatmul.f32.gmra.mxu0 %v290
      %v309 = vpop.f32.mrf.mxu0
      %v310 = vadd.f32 0.0, %v309
      %311 = vdwg.mxu0
      %v312 = vadd.f32 %v286, %v310
      %v313 = vtanh.pop %v312
      %v314 = vmul.f32 %v313, 0.5
      %v315 = vadd.f32 %v314, 0.5
      %v316 = vsel %vm275, %v313, %v315
      %v317 = vmul.f32 %v316, %v283
      %319 = vrot.lane.b32.xlu0 %v316, 64
      %v320 = vpop.permute.xlu0 %319
      %v322 = vmul.f32 %v316, %v320
      %324 = vrot.lane.b32.xlu0 %v322, 32
      %v325 = vpop.permute.xlu0 %324
      %v327 = vadd.f32 %v317, %v325
      %v328 = vtanh.pop %v327
      %330 = vrot.lane.b32.xlu0 %v328, 64
      %v331 = vpop.permute.xlu0 %330
      %v333 = vmul.f32 %v316, %v331
      %335 = vrot.lane.b32.xlu0 %v333, 32
      %v336 = vpop.permute.xlu0 %335
      %s338 = scalar_lea.vmem [#allocation3], %s284
      %vm339 = vcmask 254976
      %340 = vst.msk [vmem:[%s338] sm:$0x3] %vm339, %v336
      %s341 = smul.u32 %s277, 4
      %s342 = sadd.s32 %s341, 1
      %s343 = smul.u32 %s342, 2
      %s344 = scalar_lea.vmem [#allocation2], %s343
      %v345 = vld [vmem:[%s344] sm:$0x3]
      %v346 = vsel %vm84, %v336, 0
      %348 = vmatpush.msra.mxu0 0.0
      %349 = vmatpush.msra.mxu0 0.0
      %350 = vmatpush.msra.mxu0 0.0
      %351 = vmatpush.msra.mxu0 0.0
      %352 = vmatpush.msra.mxu0 0.0
      %353 = vmatpush.msra.mxu0 0.0
      %354 = vmatpush.msra.mxu0 0.0
      %355 = vmatpush.msra.mxu0 0.0
      %356 = vmatpush.msra.mxu0 0.0
      %357 = vmatpush.msra.mxu0 0.0
      %358 = vmatpush.msra.mxu0 0.0
      %359 = vmatpush.msra.mxu0 0.0
      %360 = vmatpush.msra.mxu0 %v272
      %361 = vmatpush.msra.mxu0 %v271
      %362 = vmatpush.msra.mxu0 %v270
      %363 = vmatpush.msra.mxu0 %v269
      %364 = vmatmul.f32.gmra.mxu0 %v346
      %v365 = vpop.f32.mrf.mxu0
      %v366 = vadd.f32 0.0, %v365
      %367 = vdwg.mxu0
      %v368 = vadd.f32 %v345, %v366
      %v369 = vtanh.pop %v368
      %v370 = vmul.f32 %v369, 0.5
      %v371 = vadd.f32 %v370, 0.5
      %v372 = vsel %vm275, %v369, %v371
      %v373 = vmul.f32 %v372, %v327
      %375 = vrot.lane.b32.xlu0 %v372, 64
      %v376 = vpop.permute.xlu0 %375
      %v378 = vmul.f32 %v372, %v376
      %380 = vrot.lane.b32.xlu0 %v378, 32
      %v381 = vpop.permute.xlu0 %380
      %v383 = vadd.f32 %v373, %v381
      %v384 = vtanh.pop %v383
      %386 = vrot.lane.b32.xlu0 %v384, 64
      %v387 = vpop.permute.xlu0 %386
      %v389 = vmul.f32 %v372, %v387
      %391 = vrot.lane.b32.xlu0 %v389, 32
      %v392 = vpop.permute.xlu0 %391
      %s394 = scalar_lea.vmem [#allocation3], %s343
      %395 = vst.msk [vmem:[%s394] sm:$0x3] %vm339, %v392
      %s396 = sadd.s32 %s341, 2
      %s397 = smul.u32 %s396, 2
      %s398 = scalar_lea.vmem [#allocation2], %s397
      %v399 = vld [vmem:[%s398] sm:$0x3]
      %v400 = vsel %vm84, %v392, 0
      %402 = vmatpush.msra.mxu0 0.0
      %403 = vmatpush.msra.mxu0 0.0
      %404 = vmatpush.msra.mxu0 0.0
      %405 = vmatpush.msra.mxu0 0.0
      %406 = vmatpush.msra.mxu0 0.0
      %407 = vmatpush.msra.mxu0 0.0
      %408 = vmatpush.msra.mxu0 0.0
      %409 = vmatpush.msra.mxu0 0.0
      %410 = vmatpush.msra.mxu0 0.0
      %411 = vmatpush.msra.mxu0 0.0
      %412 = vmatpush.msra.mxu0 0.0
      %413 = vmatpush.msra.mxu0 0.0
      %414 = vmatpush.msra.mxu0 %v272
      %415 = vmatpush.msra.mxu0 %v271
      %416 = vmatpush.msra.mxu0 %v270
      %417 = vmatpush.msra.mxu0 %v269
      %418 = vmatmul.f32.gmra.mxu0 %v400
      %v419 = vpop.f32.mrf.mxu0
      %v420 = vadd.f32 0.0, %v419
      %421 = vdwg.mxu0
      %v422 = vadd.f32 %v399, %v420
      %v423 = vtanh.pop %v422
      %v424 = vmul.f32 %v423, 0.5
      %v425 = vadd.f32 %v424, 0.5
      %v426 = vsel %vm275, %v423, %v425
      %v427 = vmul.f32 %v426, %v383
      %429 = vrot.lane.b32.xlu0 %v426, 64
      %v430 = vpop.permute.xlu0 %429
      %v432 = vmul.f32 %v426, %v430
      %434 = vrot.lane.b32.xlu0 %v432, 32
      %v435 = vpop.permute.xlu0 %434
      %v437 = vadd.f32 %v427, %v435
      %v438 = vtanh.pop %v437
      %440 = vrot.lane.b32.xlu0 %v438, 64
      %v441 = vpop.permute.xlu0 %440
      %v443 = vmul.f32 %v426, %v441
      %445 = vrot.lane.b32.xlu0 %v443, 32
      %v446 = vpop.permute.xlu0 %445
      %s448 = scalar_lea.vmem [#allocation3], %s397
      %449 = vst.msk [vmem:[%s448] sm:$0x3] %vm339, %v446
      %s450 = sadd.s32 %s341, 3
      %s451 = smul.u32 %s450, 2
      %s452 = scalar_lea.vmem [#allocation2], %s451
      %v453 = vld [vmem:[%s452] sm:$0x3]
      %v454 = vsel %vm84, %v446, 0
      %456 = vmatpush.msra.mxu0 0.0
      %457 = vmatpush.msra.mxu0 0.0
      %458 = vmatpush.msra.mxu0 0.0
      %459 = vmatpush.msra.mxu0 0.0
      %460 = vmatpush.msra.mxu0 0.0
      %461 = vmatpush.msra.mxu0 0.0
      %462 = vmatpush.msra.mxu0 0.0
      %463 = vmatpush.msra.mxu0 0.0
      %464 = vmatpush.msra.mxu0 0.0
      %465 = vmatpush.msra.mxu0 0.0
      %466 = vmatpush.msra.mxu0 0.0
      %467 = vmatpush.msra.mxu0 0.0
      %468 = vmatpush.msra.mxu0 %v272
      %469 = vmatpush.msra.mxu0 %v271
      %470 = vmatpush.msra.mxu0 %v270
      %471 = vmatpush.msra.mxu0 %v269
      %472 = vmatmul.f32.gmra.mxu0 %v454
      %v473 = vpop.f32.mrf.mxu0
      %v474 = vadd.f32 0.0, %v473
      %475 = vdwg.mxu0
      %v476 = vadd.f32 %v453, %v474
      %v477 = vtanh.pop %v476
      %v478 = vmul.f32 %v477, 0.5
      %v479 = vadd.f32 %v478, 0.5
      %v480 = vsel %vm275, %v477, %v479
      %v481 = vmul.f32 %v480, %v437
      %483 = vrot.lane.b32.xlu0 %v480, 64
      %v484 = vpop.permute.xlu0 %483
      %v486 = vmul.f32 %v480, %v484
      %488 = vrot.lane.b32.xlu0 %v486, 32
      %v489 = vpop.permute.xlu0 %488
      %v491 = vadd.f32 %v481, %v489
      %v492 = vtanh.pop %v491
      %494 = vrot.lane.b32.xlu0 %v492, 64
      %v495 = vpop.permute.xlu0 %494
      %v497 = vmul.f32 %v480, %v495
      %499 = vrot.lane.b32.xlu0 %v497, 32
      %v500 = vpop.permute.xlu0 %499
      %s502 = scalar_lea.vmem [#allocation3], %s451
      %503 = vst.msk [vmem:[%s502] sm:$0x3] %vm339, %v500
    $region94: #{metnet_forward.1} parent=1 // loop_footer
      %s281 = sadd.s32 1, %s277
    $region95: #{metnet_forward.1} parent=1 // loop_footer_branch
      %276 = sbr.rel target = $region91
    $region96: #{metnet_forward.1} parent=1 // loop_exit
      _
    %v504 = vld [vmem:[#allocation3] sm:$0xff]
    %v505 = vld [vmem:[#allocation3 + $0x8] sm:$0xff]
    %vm506 = vcmp.lt.s32.totalorder %v160, 16
    %507 = vmatpush.msra.mxu0 0.0
    %508 = vmatpush.msra.mxu0 0.0
    %509 = vmatpush.msra.mxu0 0.0
    %510 = vmatpush.msra.mxu0 0.0
    %511 = vmatpush.msra.mxu0 0.0
    %512 = vmatpush.msra.mxu0 0.0
    %513 = vmatpush.msra.mxu0 0.0
    %514 = vmatpush.msra.mxu0 0.0
    %515 = vmatpush.msra.mxu0 0.0
    %516 = vmatpush.msra.mxu0 0.0
    %517 = vmatpush.msra.mxu0 0.0
    %518 = vmatpush.msra.mxu0 0.0
    %519 = vmatpush.msra.mxu0 0.0
    %520 = vmatpush.msra.mxu0 0.0
    %521 = vmatpush.msra.mxu0 %v505
    %522 = vmatpush.msra.mxu0 %v504
    %523 = vmatmul.f32.gmra.mxu0 %v237
    %v524 = vpop.f32.mrf.mxu0
    %v525 = vadd.f32 0.0, %v524
    %526 = vmatmul.f32.gmra.mxu0 %v240
    %v527 = vpop.f32.mrf.mxu0
    %v528 = vadd.f32 0.0, %v527
    %529 = vdwg.mxu0
    %v530 = vsel %vm506, %v504, %v525
    %v531 = vsel %vm506, %v505, %v528
    %v533 = vsel %vm235, %v164, 0
    %535 = vmatpush.msra.mxu0 0.0
    %536 = vmatpush.msra.mxu0 0.0
    %537 = vmatpush.msra.mxu0 0.0
    %538 = vmatpush.msra.mxu0 0.0
    %539 = vmatpush.msra.mxu0 0.0
    %540 = vmatpush.msra.mxu0 0.0
    %541 = vmatpush.msra.mxu0 0.0
    %542 = vmatpush.msra.mxu0 0.0
    %543 = vmatpush.msra.mxu0 0.0
    %544 = vmatpush.msra.mxu0 0.0
    %545 = vmatpush.msra.mxu0 0.0
    %546 = vmatpush.msra.mxu0 0.0
    %547 = vmatpush.msra.mxu0 0.0
    %548 = vmatpush.msra.mxu0 0.0
    %549 = vmatpush.msra.mxu0 %v531
    %550 = vmatpush.msra.mxu0 %v530
    %551 = vmatmul.f32.gmra.mxu0 %v533
    %v552 = vpop.f32.mrf.mxu0
    %v553 = vadd.f32 0.0, %v552
    %554 = vdwg.mxu0
    %v555 = vld [vmem:[%s4] sm:$0x3]
    %v556 = vmul.f32 %v553, %v555
    %v557 = vld [vmem:[%s13] sm:$0xff]
    %v558 = vld [vmem:[%s13 + $0x8] sm:$0xff]
    %v559 = vld [vmem:[%s13 + $0x10] sm:$0xff]
    %v560 = vld [vmem:[%s13 + $0x18] sm:$0xff]
    %v561 = vld [vmem:[%s14] sm:$0xff]
    %v562 = vld [vmem:[%s14 + $0x8] sm:$0xff]
    %v563 = vld [vmem:[%s14 + $0x10] sm:$0xff]
    %v564 = vld [vmem:[%s14 + $0x18] sm:$0xff]
    %v565 = vld [vmem:[%s15] sm:$0x1]
    %v566 = vld [vmem:[%s3] sm:$0x3]
    %v567 = vsub.s32 30, %v158
    %v568 = vsub.s32 30, %v165
    %v569 = vsub.s32 30, %v166
    %v570 = vsub.s32 30, %v167
    %v571 = vmul.u32 %v170, 2
    %v572 = vmul.u32 %v171, 2
    %v573 = vadd.s32 %v567, %v186
    %v574 = vadd.s32 %v568, %v187
    %v575 = vadd.s32 %v569, %v571
    %v576 = vadd.s32 %v570, %v572
    %vm577 = vcmp.eq.s32.totalorder %v160, %v573
    %vm578 = vcmp.eq.s32.totalorder %v160, %v574
    %vm579 = vcmp.eq.s32.totalorder %v160, %v575
    %vm580 = vcmp.eq.s32.totalorder %v160, %v576
    %v581 = vsel %vm577, 1, 0
    %v582 = vsel %vm578, 1, 0
    %v583 = vsel %vm579, 1, 0
    %v584 = vsel %vm580, 1, 0
    %v585 = vcvt.s32.f32 %v581
    %v586 = vcvt.s32.f32 %v582
    %v587 = vcvt.s32.f32 %v583
    %v588 = vcvt.s32.f32 %v584
    %v589 = vld [vmem:[%s7] sm:$0xff]
    %v590 = vld [vmem:[%s7 + $0x8] sm:$0xff]
    %v591 = vld [vmem:[%s7 + $0x10] sm:$0xff]
    %v592 = vld [vmem:[%s7 + $0x18] sm:$0xff]
    %v593 = vld [vmem:[%s9] sm:$0x1]
    %v595 = vperm.slane %v593, 0
    %v598 = vsel %vm84, %v115, 0
    %v601 = vsel %vm84, %v118, 0
    %v604 = vsel %vm84, %v121, 0
    %v607 = vsel %vm84, %v124, 0
    %609 = vmatpush.msra.mxu0 0.0
    %610 = vmatpush.msra.mxu0 0.0
    %611 = vmatpush.msra.mxu0 0.0
    %612 = vmatpush.msra.mxu0 0.0
    %613 = vmatpush.msra.mxu0 0.0
    %614 = vmatpush.msra.mxu0 0.0
    %615 = vmatpush.msra.mxu0 0.0
    %616 = vmatpush.msra.mxu0 0.0
    %617 = vmatpush.msra.mxu0 0.0
    %618 = vmatpush.msra.mxu0 0.0
    %619 = vmatpush.msra.mxu0 0.0
    %620 = vmatpush.msra.mxu0 0.0
    %621 = vmatpush.msra.mxu0 %v592
    %622 = vmatpush.msra.mxu0 %v591
    %623 = vmatpush.msra.mxu0 %v590
    %624 = vmatpush.msra.mxu0 %v589
    %625 = vmatmul.f32.gmra.mxu0 %v598
    %v626 = vpop.f32.mrf.mxu0
    %v627 = vadd.f32 %v595, %v626
    %628 = vmatmul.f32.gmra.mxu0 %v601
    %v629 = vpop.f32.mrf.mxu0
    %v630 = vadd.f32 %v595, %v629
    %631 = vmatmul.f32.gmra.mxu0 %v604
    %v632 = vpop.f32.mrf.mxu0
    %v633 = vadd.f32 %v595, %v632
    %634 = vmatmul.f32.gmra.mxu0 %v607
    %v635 = vpop.f32.mrf.mxu0
    %v636 = vadd.f32 %v595, %v635
    %637 = vdwg.mxu0
    %v639 = vsel %vm84, %v585, 0
    %v642 = vsel %vm84, %v586, 0
    %v645 = vsel %vm84, %v587, 0
    %v648 = vsel %vm84, %v588, 0
    %650 = vmatpush.msra.mxu0 0.0
    %651 = vmatpush.msra.mxu0 0.0
    %652 = vmatpush.msra.mxu0 0.0
    %653 = vmatpush.msra.mxu0 0.0
    %654 = vmatpush.msra.mxu0 0.0
    %655 = vmatpush.msra.mxu0 0.0
    %656 = vmatpush.msra.mxu0 0.0
    %657 = vmatpush.msra.mxu0 0.0
    %658 = vmatpush.msra.mxu0 0.0
    %659 = vmatpush.msra.mxu0 0.0
    %660 = vmatpush.msra.mxu0 0.0
    %661 = vmatpush.msra.mxu0 0.0
    %662 = vmatpush.msra.mxu0 %v636
    %663 = vmatpush.msra.mxu0 %v633
    %664 = vmatpush.msra.mxu0 %v630
    %665 = vmatpush.msra.mxu0 %v627
    %666 = vmatmul.f32.gmra.mxu0 %v639
    %v667 = vpop.f32.mrf.mxu0
    %v668 = vadd.f32 0.0, %v667
    %669 = vmatmul.f32.gmra.mxu0 %v642
    %v670 = vpop.f32.mrf.mxu0
    %v671 = vadd.f32 0.0, %v670
    %672 = vmatmul.f32.gmra.mxu0 %v645
    %v673 = vpop.f32.mrf.mxu0
    %v674 = vadd.f32 0.0, %v673
    %675 = vmatmul.f32.gmra.mxu0 %v648
    %v676 = vpop.f32.mrf.mxu0
    %v677 = vadd.f32 0.0, %v676
    %678 = vdwg.mxu0
    %v679 = vsel %vm234, %v668, %v627
    %v680 = vsel %vm234, %v671, %v630
    %v681 = vsel %vm234, %v674, %v633
    %v682 = vsel %vm234, %v677, %v636
    %683 = vst [vmem:[#allocation2] sm:$0xff] %v679
    %684 = vst [vmem:[#allocation2 + $0x8] sm:$0xff] %v680
    %685 = vst [vmem:[#allocation2 + $0x10] sm:$0xff] %v681
    %686 = vst [vmem:[#allocation2 + $0x18] sm:$0xff] %v682
    %v687 = vld [vmem:[%s8] sm:$0xff]
    %v688 = vld [vmem:[%s8 + $0x8] sm:$0xff]
    %v689 = vld [vmem:[%s8 + $0x10] sm:$0xff]
    %v690 = vld [vmem:[%s8 + $0x18] sm:$0xff]
    loop: start=0, step=1, limit=4
    $region97: #{metnet_forward.1} parent=1 // loop_pre_header
      _
    $region98: #{metnet_forward.1} parent=1 // loop_header
      %s692 = sphi 0, %s696
      %p693 = scmp.ge.s32.totalorder %s692, 4
      %v697 = vphi 0.0, %v912
      %v698 = vphi 0.0, %v906
    $region99: #{metnet_forward.1} parent=1 // loop_header_branch
      %695 = sbr.rel (%p693) target = $region103
    $region100: #{metnet_forward.1} parent=1 // loop_body
      %s699 = smul.u32 %s692, 8
      %s700 = scalar_lea.vmem [#allocation2], %s699
      %v701 = vld [vmem:[%s700] sm:$0x3]
      %703 = vrot.lane.b32.xlu0 %v697, 32
      %v704 = vpop.permute.xlu0 %703
      %v705 = vsel %vm84, %v704, 0
      %707 = vmatpush.msra.mxu0 0.0
      %708 = vmatpush.msra.mxu0 0.0
      %709 = vmatpush.msra.mxu0 0.0
      %710 = vmatpush.msra.mxu0 0.0
      %711 = vmatpush.msra.mxu0 0.0
      %712 = vmatpush.msra.mxu0 0.0
      %713 = vmatpush.msra.mxu0 0.0
      %714 = vmatpush.msra.mxu0 0.0
      %715 = vmatpush.msra.mxu0 0.0
      %716 = vmatpush.msra.mxu0 0.0
      %717 = vmatpush.msra.mxu0 0.0
      %718 = vmatpush.msra.mxu0 0.0
      %719 = vmatpush.msra.mxu0 %v690
      %720 = vmatpush.msra.mxu0 %v689
      %721 = vmatpush.msra.mxu0 %v688
      %722 = vmatpush.msra.mxu0 %v687
      %723 = vmatmul.f32.gmra.mxu0 %v705
      %v724 = vpop.f32.mrf.mxu0
      %v725 = vadd.f32 0.0, %v724
      %726 = vdwg.mxu0
      %v727 = vadd.f32 %v701, %v725
      %v728 = vtanh.pop %v727
      %v729 = vmul.f32 %v728, 0.5
      %v730 = vadd.f32 %v729, 0.5
      %v731 = vsel %vm275, %v728, %v730
      %v732 = vmul.f32 %v731, %v698
      %734 = vrot.lane.b32.xlu0 %v731, 64
      %v735 = vpop.permute.xlu0 %734
      %v737 = vmul.f32 %v731, %v735
      %739 = vrot.lane.b32.xlu0 %v737, 32
      %v740 = vpop.permute.xlu0 %739
      %v742 = vadd.f32 %v732, %v740
      %v743 = vtanh.pop %v742
      %745 = vrot.lane.b32.xlu0 %v743, 64
      %v746 = vpop.permute.xlu0 %745
      %v748 = vmul.f32 %v731, %v746
      %750 = vrot.lane.b32.xlu0 %v748, 32
      %v751 = vpop.permute.xlu0 %750
      %s753 = scalar_lea.vmem [#allocation3], %s699
      %vm754 = vcmask 254976
      %755 = vst.msk [vmem:[%s753] sm:$0x3] %vm754, %v751
      %s756 = smul.u32 %s692, 4
      %s757 = sadd.s32 %s756, 1
      %s758 = smul.u32 %s757, 2
      %s759 = scalar_lea.vmem [#allocation2], %s758
      %v760 = vld [vmem:[%s759] sm:$0x3]
      %v761 = vsel %vm84, %v751, 0
      %763 = vmatpush.msra.mxu0 0.0
      %764 = vmatpush.msra.mxu0 0.0
      %765 = vmatpush.msra.mxu0 0.0
      %766 = vmatpush.msra.mxu0 0.0
      %767 = vmatpush.msra.mxu0 0.0
      %768 = vmatpush.msra.mxu0 0.0
      %769 = vmatpush.msra.mxu0 0.0
      %770 = vmatpush.msra.mxu0 0.0
      %771 = vmatpush.msra.mxu0 0.0
      %772 = vmatpush.msra.mxu0 0.0
      %773 = vmatpush.msra.mxu0 0.0
      %774 = vmatpush.msra.mxu0 0.0
      %775 = vmatpush.msra.mxu0 %v690
      %776 = vmatpush.msra.mxu0 %v689
      %777 = vmatpush.msra.mxu0 %v688
      %778 = vmatpush.msra.mxu0 %v687
      %779 = vmatmul.f32.gmra.mxu0 %v761
      %v780 = vpop.f32.mrf.mxu0
      %v781 = vadd.f32 0.0, %v780
      %782 = vdwg.mxu0
      %v783 = vadd.f32 %v760, %v781
      %v784 = vtanh.pop %v783
      %v785 = vmul.f32 %v784, 0.5
      %v786 = vadd.f32 %v785, 0.5
      %v787 = vsel %vm275, %v784, %v786
      %v788 = vmul.f32 %v787, %v742
      %790 = vrot.lane.b32.xlu0 %v787, 64
      %v791 = vpop.permute.xlu0 %790
      %v793 = vmul.f32 %v787, %v791
      %795 = vrot.lane.b32.xlu0 %v793, 32
      %v796 = vpop.permute.xlu0 %795
      %v798 = vadd.f32 %v788, %v796
      %v799 = vtanh.pop %v798
      %801 = vrot.lane.b32.xlu0 %v799, 64
      %v802 = vpop.permute.xlu0 %801
      %v804 = vmul.f32 %v787, %v802
      %806 = vrot.lane.b32.xlu0 %v804, 32
      %v807 = vpop.permute.xlu0 %806
      %s809 = scalar_lea.vmem [#allocation3], %s758
      %810 = vst.msk [vmem:[%s809] sm:$0x3] %vm754, %v807
      %s811 = sadd.s32 %s756, 2
      %s812 = smul.u32 %s811, 2
      %s813 = scalar_lea.vmem [#allocation2], %s812
      %v814 = vld [vmem:[%s813] sm:$0x3]
      %v815 = vsel %vm84, %v807, 0
      %817 = vmatpush.msra.mxu0 0.0
      %818 = vmatpush.msra.mxu0 0.0
      %819 = vmatpush.msra.mxu0 0.0
      %820 = vmatpush.msra.mxu0 0.0
      %821 = vmatpush.msra.mxu0 0.0
      %822 = vmatpush.msra.mxu0 0.0
      %823 = vmatpush.msra.mxu0 0.0
      %824 = vmatpush.msra.mxu0 0.0
      %825 = vmatpush.msra.mxu0 0.0
      %826 = vmatpush.msra.mxu0 0.0
      %827 = vmatpush.msra.mxu0 0.0
      %828 = vmatpush.msra.mxu0 0.0
      %829 = vmatpush.msra.mxu0 %v690
      %830 = vmatpush.msra.mxu0 %v689
      %831 = vmatpush.msra.mxu0 %v688
      %832 = vmatpush.msra.mxu0 %v687
      %833 = vmatmul.f32.gmra.mxu0 %v815
      %v834 = vpop.f32.mrf.mxu0
      %v835 = vadd.f32 0.0, %v834
      %836 = vdwg.mxu0
      %v837 = vadd.f32 %v814, %v835
      %v838 = vtanh.pop %v837
      %v839 = vmul.f32 %v838, 0.5
      %v840 = vadd.f32 %v839, 0.5
      %v841 = vsel %vm275, %v838, %v840
      %v842 = vmul.f32 %v841, %v798
      %844 = vrot.lane.b32.xlu0 %v841, 64
      %v845 = vpop.permute.xlu0 %844
      %v847 = vmul.f32 %v841, %v845
      %849 = vrot.lane.b32.xlu0 %v847, 32
      %v850 = vpop.permute.xlu0 %849
      %v852 = vadd.f32 %v842, %v850
      %v853 = vtanh.pop %v852
      %855 = vrot.lane.b32.xlu0 %v853, 64
      %v856 = vpop.permute.xlu0 %855
      %v858 = vmul.f32 %v841, %v856
      %860 = vrot.lane.b32.xlu0 %v858, 32
      %v861 = vpop.permute.xlu0 %860
      %s863 = scalar_lea.vmem [#allocation3], %s812
      %864 = vst.msk [vmem:[%s863] sm:$0x3] %vm754, %v861
      %s865 = sadd.s32 %s756, 3
      %s866 = smul.u32 %s865, 2
      %s867 = scalar_lea.vmem [#allocation2], %s866
      %v868 = vld [vmem:[%s867] sm:$0x3]
      %v869 = vsel %vm84, %v861, 0
      %871 = vmatpush.msra.mxu0 0.0
      %872 = vmatpush.msra.mxu0 0.0
      %873 = vmatpush.msra.mxu0 0.0
      %874 = vmatpush.msra.mxu0 0.0
      %875 = vmatpush.msra.mxu0 0.0
      %876 = vmatpush.msra.mxu0 0.0
      %877 = vmatpush.msra.mxu0 0.0
      %878 = vmatpush.msra.mxu0 0.0
      %879 = vmatpush.msra.mxu0 0.0
      %880 = vmatpush.msra.mxu0 0.0
      %881 = vmatpush.msra.mxu0 0.0
      %882 = vmatpush.msra.mxu0 0.0
      %883 = vmatpush.msra.mxu0 %v690
      %884 = vmatpush.msra.mxu0 %v689
      %885 = vmatpush.msra.mxu0 %v688
      %886 = vmatpush.msra.mxu0 %v687
      %887 = vmatmul.f32.gmra.mxu0 %v869
      %v888 = vpop.f32.mrf.mxu0
      %v889 = vadd.f32 0.0, %v888
      %890 = vdwg.mxu0
      %v891 = vadd.f32 %v868, %v889
      %v892 = vtanh.pop %v891
      %v893 = vmul.f32 %v892, 0.5
      %v894 = vadd.f32 %v893, 0.5
      %v895 = vsel %vm275, %v892, %v894
      %v896 = vmul.f32 %v895, %v852
      %898 = vrot.lane.b32.xlu0 %v895, 64
      %v899 = vpop.permute.xlu0 %898
      %v901 = vmul.f32 %v895, %v899
      %903 = vrot.lane.b32.xlu0 %v901, 32
      %v904 = vpop.permute.xlu0 %903
      %v906 = vadd.f32 %v896, %v904
      %v907 = vtanh.pop %v906
      %909 = vrot.lane.b32.xlu0 %v907, 64
      %v910 = vpop.permute.xlu0 %909
      %v912 = vmul.f32 %v895, %v910
      %914 = vrot.lane.b32.xlu0 %v912, 32
      %v915 = vpop.permute.xlu0 %914
      %s917 = scalar_lea.vmem [#allocation3], %s866
      %918 = vst.msk [vmem:[%s917] sm:$0x3] %vm754, %v915
    $region101: #{metnet_forward.1} parent=1 // loop_footer
      %s696 = sadd.s32 1, %s692
    $region102: #{metnet_forward.1} parent=1 // loop_footer_branch
      %691 = sbr.rel target = $region98
    $region103: #{metnet_forward.1} parent=1 // loop_exit
      _
    %v919 = vld [vmem:[#allocation3] sm:$0xff]
    %v920 = vld [vmem:[#allocation3 + $0x8] sm:$0xff]
    %v921 = vld [vmem:[#allocation3 + $0x10] sm:$0xff]
    %v922 = vld [vmem:[#allocation3 + $0x18] sm:$0xff]
    %923 = vmatpush.msra.mxu0 0.0
    %924 = vmatpush.msra.mxu0 0.0
    %925 = vmatpush.msra.mxu0 0.0
    %926 = vmatpush.msra.mxu0 0.0
    %927 = vmatpush.msra.mxu0 0.0
    %928 = vmatpush.msra.mxu0 0.0
    %929 = vmatpush.msra.mxu0 0.0
    %930 = vmatpush.msra.mxu0 0.0
    %931 = vmatpush.msra.mxu0 0.0
    %932 = vmatpush.msra.mxu0 0.0
    %933 = vmatpush.msra.mxu0 0.0
    %934 = vmatpush.msra.mxu0 0.0
    %935 = vmatpush.msra.mxu0 %v922
    %936 = vmatpush.msra.mxu0 %v921
    %937 = vmatpush.msra.mxu0 %v920
    %938 = vmatpush.msra.mxu0 %v919
    %939 = vmatmul.f32.gmra.mxu0 %v639
    %v940 = vpop.f32.mrf.mxu0
    %v941 = vadd.f32 0.0, %v940
    %942 = vmatmul.f32.gmra.mxu0 %v642
    %v943 = vpop.f32.mrf.mxu0
    %v944 = vadd.f32 0.0, %v943
    %945 = vmatmul.f32.gmra.mxu0 %v645
    %v946 = vpop.f32.mrf.mxu0
    %v947 = vadd.f32 0.0, %v946
    %948 = vmatmul.f32.gmra.mxu0 %v648
    %v949 = vpop.f32.mrf.mxu0
    %v950 = vadd.f32 0.0, %v949
    %951 = vdwg.mxu0
    %v952 = vsel %vm506, %v919, %v941
    %v953 = vsel %vm506, %v920, %v944
    %v954 = vsel %vm506, %v921, %v947
    %v955 = vsel %vm506, %v922, %v950
    %v956 = vsel %vm84, %v164, 0
    %958 = vmatpush.msra.mxu0 0.0
    %959 = vmatpush.msra.mxu0 0.0
    %960 = vmatpush.msra.mxu0 0.0
    %961 = vmatpush.msra.mxu0 0.0
    %962 = vmatpush.msra.mxu0 0.0
    %963 = vmatpush.msra.mxu0 0.0
    %964 = vmatpush.msra.mxu0 0.0
    %965 = vmatpush.msra.mxu0 0.0
    %966 = vmatpush.msra.mxu0 0.0
    %967 = vmatpush.msra.mxu0 0.0
    %968 = vmatpush.msra.mxu0 0.0
    %969 = vmatpush.msra.mxu0 0.0
    %970 = vmatpush.msra.mxu0 %v955
    %971 = vmatpush.msra.mxu0 %v954
    %972 = vmatpush.msra.mxu0 %v953
    %973 = vmatpush.msra.mxu0 %v952
    %974 = vmatmul.f32.gmra.mxu0 %v956
    %v975 = vpop.f32.mrf.mxu0
    %v976 = vadd.f32 0.0, %v975
    %977 = vdwg.mxu0
    %v978 = vmul.f32 %v976, %v566
    %v979 = vadd.f32 %v556, %v978
    %v981 = vsel %vm84, %v979, 0
    %983 = vmatpush.msra.mxu0 0.0
    %984 = vmatpush.msra.mxu0 0.0
    %985 = vmatpush.msra.mxu0 0.0
    %986 = vmatpush.msra.mxu0 0.0
    %987 = vmatpush.msra.mxu0 0.0
    %988 = vmatpush.msra.mxu0 0.0
    %989 = vmatpush.msra.mxu0 0.0
    %990 = vmatpush.msra.mxu0 0.0
    %991 = vmatpush.msra.mxu0 0.0
    %992 = vmatpush.msra.mxu0 0.0
    %993 = vmatpush.msra.mxu0 0.0
    %994 = vmatpush.msra.mxu0 0.0
    %995 = vmatpush.msra.mxu0 %v560
    %996 = vmatpush.msra.mxu0 %v559
    %997 = vmatpush.msra.mxu0 %v558
    %998 = vmatpush.msra.mxu0 %v557
    %999 = vmatmul.f32.gmra.mxu0 %v981
    %v1000 = vpop.f32.mrf.mxu0
    %v1001 = vadd.f32 0.0, %v1000
    %1002 = vdwg.mxu0
    %vm1003 = vcmask 15360
    %v1005 = vsel %vm1003, %v180, 0
    %v1008 = vsel %vm1003, %v181, 0
    %v1011 = vsel %vm1003, %v182, 0
    %v1014 = vsel %vm1003, %v183, 0
    %vm1016 = vcmask 1041408
    %v1018 = vsel %vm1016, %v1001, 0
    %1020 = vmatpush.msra.mxu0 0.0
    %1021 = vmatpush.msra.mxu0 0.0
    %1022 = vmatpush.msra.mxu0 0.0
    %1023 = vmatpush.msra.mxu0 0.0
    %1024 = vmatpush.msra.mxu0 0.0
    %1025 = vmatpush.msra.mxu0 0.0
    %1026 = vmatpush.msra.mxu0 0.0
    %1027 = vmatpush.msra.mxu0 0.0
    %1028 = vmatpush.msra.mxu0 0.0
    %1029 = vmatpush.msra.mxu0 0.0
    %1030 = vmatpush.msra.mxu0 0.0
    %1031 = vmatpush.msra.mxu0 0.0
    %1032 = vmatpush.msra.mxu0 0.0
    %1033 = vmatpush.msra.mxu0 0.0
    %1034 = vmatpush.msra.mxu0 0.0
    %1035 = vmatpush.msra.mxu0 %v1018
    %1036 = vmatmul.f32.gmra.mxu0 %v1005
    %v1037 = vpop.f32.mrf.mxu0
    %v1038 = vadd.f32 0.0, %v1037
    %1039 = vmatmul.f32.gmra.mxu0 %v1008
    %v1040 = vpop.f32.mrf.mxu0
    %v1041 = vadd.f32 0.0, %v1040
    %1042 = vmatmul.f32.gmra.mxu0 %v1011
    %v1043 = vpop.f32.mrf.mxu0
    %v1044 = vadd.f32 0.0, %v1043
    %1045 = vmatmul.f32.gmra.mxu0 %v1014
    %v1046 = vpop.f32.mrf.mxu0
    %v1047 = vadd.f32 0.0, %v1046
    %1048 = vdwg.mxu0
    %v1050 = vsel %vm84, %v952, 0
    %v1053 = vsel %vm84, %v953, 0
    %v1056 = vsel %vm84, %v954, 0
    %v1059 = vsel %vm84, %v955, 0
    %1061 = vmatpush.msra.mxu0 0.0
    %1062 = vmatpush.msra.mxu0 0.0
    %1063 = vmatpush.msra.mxu0 0.0
    %1064 = vmatpush.msra.mxu0 0.0
    %1065 = vmatpush.msra.mxu0 0.0
    %1066 = vmatpush.msra.mxu0 0.0
    %1067 = vmatpush.msra.mxu0 0.0
    %1068 = vmatpush.msra.mxu0 0.0
    %1069 = vmatpush.msra.mxu0 0.0
    %1070 = vmatpush.msra.mxu0 0.0
    %1071 = vmatpush.msra.mxu0 0.0
    %1072 = vmatpush.msra.mxu0 0.0
    %1073 = vmatpush.msra.mxu0 %v564
    %1074 = vmatpush.msra.mxu0 %v563
    %1075 = vmatpush.msra.mxu0 %v562
    %1076 = vmatpush.msra.mxu0 %v561
    %1077 = vmatmul.f32.gmra.mxu0 %v1050
    %v1078 = vpop.f32.mrf.mxu0
    %v1079 = vadd.f32 %v1038, %v1078
    %1080 = vmatmul.f32.gmra.mxu0 %v1053
    %v1081 = vpop.f32.mrf.mxu0
    %v1082 = vadd.f32 %v1041, %v1081
    %1083 = vmatmul.f32.gmra.mxu0 %v1056
    %v1084 = vpop.f32.mrf.mxu0
    %v1085 = vadd.f32 %v1044, %v1084
    %1086 = vmatmul.f32.gmra.mxu0 %v1059
    %v1087 = vpop.f32.mrf.mxu0
    %v1088 = vadd.f32 %v1047, %v1087
    %1089 = vdwg.mxu0
    %v1091 = vperm.slane %v565, 0
    %v1093 = vadd.f32 %v1079, %v1091
    %v1094 = vadd.f32 %v1082, %v1091
    %v1095 = vadd.f32 %v1085, %v1091
    %v1096 = vadd.f32 %v1088, %v1091
    %v1097 = vmax.f32 %v1093, 0.0
    %v1098 = vmax.f32 %v1094, 0.0
    %v1099 = vmax.f32 %v1095, 0.0
    %v1100 = vmax.f32 %v1096, 0.0
    %v1101 = vadd.f32 %v1097, %v952
    %v1102 = vadd.f32 %v1098, %v953
    %v1103 = vadd.f32 %v1099, %v954
    %v1104 = vadd.f32 %v1100, %v955
    %v1105 = vld [vmem:[%s7] sm:$0xff]
    %v1106 = vld [vmem:[%s7 + $0x8] sm:$0xff]
    %v1107 = vld [vmem:[%s7 + $0x10] sm:$0xff]
    %v1108 = vld [vmem:[%s7 + $0x18] sm:$0xff]
    %v1109 = vld [vmem:[%s9] sm:$0x1]
    %v1111 = vperm.slane %v1109, 0
    %v1114 = vsel %vm84, %v1101, 0
    %v1117 = vsel %vm84, %v1102, 0
    %v1120 = vsel %vm84, %v1103, 0
    %v1123 = vsel %vm84, %v1104, 0
    %1125 = vmatpush.msra.mxu0 0.0
    %1126 = vmatpush.msra.mxu0 0.0
    %1127 = vmatpush.msra.mxu0 0.0
    %1128 = vmatpush.msra.mxu0 0.0
    %1129 = vmatpush.msra.mxu0 0.0
    %1130 = vmatpush.msra.mxu0 0.0
    %1131 = vmatpush.msra.mxu0 0.0
    %1132 = vmatpush.msra.mxu0 0.0
    %1133 = vmatpush.msra.mxu0 0.0
    %1134 = vmatpush.msra.mxu0 0.0
    %1135 = vmatpush.msra.mxu0 0.0
    %1136 = vmatpush.msra.mxu0 0.0
    %1137 = vmatpush.msra.mxu0 %v1108
    %1138 = vmatpush.msra.mxu0 %v1107
    %1139 = vmatpush.msra.mxu0 %v1106
    %1140 = vmatpush.msra.mxu0 %v1105
    %1141 = vmatmul.f32.gmra.mxu0 %v1114
    %v1142 = vpop.f32.mrf.mxu0
    %v1143 = vadd.f32 %v1111, %v1142
    %1144 = vmatmul.f32.gmra.mxu0 %v1117
    %v1145 = vpop.f32.mrf.mxu0
    %v1146 = vadd.f32 %v1111, %v1145
    %1147 = vmatmul.f32.gmra.mxu0 %v1120
    %v1148 = vpop.f32.mrf.mxu0
    %v1149 = vadd.f32 %v1111, %v1148
    %1150 = vmatmul.f32.gmra.mxu0 %v1123
    %v1151 = vpop.f32.mrf.mxu0
    %v1152 = vadd.f32 %v1111, %v1151
    %1153 = vdwg.mxu0
    %1154 = vmatpush.msra.mxu0 0.0
    %1155 = vmatpush.msra.mxu0 0.0
    %1156 = vmatpush.msra.mxu0 0.0
    %1157 = vmatpush.msra.mxu0 0.0
    %1158 = vmatpush.msra.mxu0 0.0
    %1159 = vmatpush.msra.mxu0 0.0
    %1160 = vmatpush.msra.mxu0 0.0
    %1161 = vmatpush.msra.mxu0 0.0
    %1162 = vmatpush.msra.mxu0 0.0
    %1163 = vmatpush.msra.mxu0 0.0
    %1164 = vmatpush.msra.mxu0 0.0
    %1165 = vmatpush.msra.mxu0 0.0
    %1166 = vmatpush.msra.mxu0 %v1152
    %1167 = vmatpush.msra.mxu0 %v1149
    %1168 = vmatpush.msra.mxu0 %v1146
    %1169 = vmatpush.msra.mxu0 %v1143
    %1170 = vmatmul.f32.gmra.mxu0 %v639
    %v1171 = vpop.f32.mrf.mxu0
    %v1172 = vadd.f32 0.0, %v1171
    %1173 = vmatmul.f32.gmra.mxu0 %v642
    %v1174 = vpop.f32.mrf.mxu0
    %v1175 = vadd.f32 0.0, %v1174
    %1176 = vmatmul.f32.gmra.mxu0 %v645
    %v1177 = vpop.f32.mrf.mxu0
    %v1178 = vadd.f32 0.0, %v1177
    %1179 = vmatmul.f32.gmra.mxu0 %v648
    %v1180 = vpop.f32.mrf.mxu0
    %v1181 = vadd.f32 0.0, %v1180
    %1182 = vdwg.mxu0
    %v1183 = vsel %vm234, %v1172, %v1143
    %v1184 = vsel %vm234, %v1175, %v1146
    %v1185 = vsel %vm234, %v1178, %v1149
    %v1186 = vsel %vm234, %v1181, %v1152
    %1187 = vst [vmem:[#allocation2] sm:$0xff] %v1183
    %1188 = vst [vmem:[#allocation2 + $0x8] sm:$0xff] %v1184
    %1189 = vst [vmem:[#allocation2 + $0x10] sm:$0xff] %v1185
    %1190 = vst [vmem:[#allocation2 + $0x18] sm:$0xff] %v1186
    %v1191 = vld [vmem:[%s8] sm:$0xff]
    %v1192 = vld [vmem:[%s8 + $0x8] sm:$0xff]
    %v1193 = vld [vmem:[%s8 + $0x10] sm:$0xff]
    %v1194 = vld [vmem:[%s8 + $0x18] sm:$0xff]
    loop: start=0, step=1, limit=4
    $region104: #{metnet_forward.1} parent=1 // loop_pre_header
      _
    $region105: #{metnet_forward.1} parent=1 // loop_header
      %s1196 = sphi 0, %s1200
      %p1197 = scmp.ge.s32.totalorder %s1196, 4
      %v1201 = vphi 0.0, %v1416
      %v1202 = vphi 0.0, %v1410
    $region106: #{metnet_forward.1} parent=1 // loop_header_branch
      %1199 = sbr.rel (%p1197) target = $region110
    $region107: #{metnet_forward.1} parent=1 // loop_body
      %s1203 = smul.u32 %s1196, 8
      %s1204 = scalar_lea.vmem [#allocation2], %s1203
      %v1205 = vld [vmem:[%s1204] sm:$0x3]
      %1207 = vrot.lane.b32.xlu0 %v1201, 32
      %v1208 = vpop.permute.xlu0 %1207
      %v1209 = vsel %vm84, %v1208, 0
      %1211 = vmatpush.msra.mxu0 0.0
      %1212 = vmatpush.msra.mxu0 0.0
      %1213 = vmatpush.msra.mxu0 0.0
      %1214 = vmatpush.msra.mxu0 0.0
      %1215 = vmatpush.msra.mxu0 0.0
      %1216 = vmatpush.msra.mxu0 0.0
      %1217 = vmatpush.msra.mxu0 0.0
      %1218 = vmatpush.msra.mxu0 0.0
      %1219 = vmatpush.msra.mxu0 0.0
      %1220 = vmatpush.msra.mxu0 0.0
      %1221 = vmatpush.msra.mxu0 0.0
      %1222 = vmatpush.msra.mxu0 0.0
      %1223 = vmatpush.msra.mxu0 %v1194
      %1224 = vmatpush.msra.mxu0 %v1193
      %1225 = vmatpush.msra.mxu0 %v1192
      %1226 = vmatpush.msra.mxu0 %v1191
      %1227 = vmatmul.f32.gmra.mxu0 %v1209
      %v1228 = vpop.f32.mrf.mxu0
      %v1229 = vadd.f32 0.0, %v1228
      %1230 = vdwg.mxu0
      %v1231 = vadd.f32 %v1205, %v1229
      %v1232 = vtanh.pop %v1231
      %v1233 = vmul.f32 %v1232, 0.5
      %v1234 = vadd.f32 %v1233, 0.5
      %v1235 = vsel %vm275, %v1232, %v1234
      %v1236 = vmul.f32 %v1235, %v1202
      %1238 = vrot.lane.b32.xlu0 %v1235, 64
      %v1239 = vpop.permute.xlu0 %1238
      %v1241 = vmul.f32 %v1235, %v1239
      %1243 = vrot.lane.b32.xlu0 %v1241, 32
      %v1244 = vpop.permute.xlu0 %1243
      %v1246 = vadd.f32 %v1236, %v1244
      %v1247 = vtanh.pop %v1246
      %1249 = vrot.lane.b32.xlu0 %v1247, 64
      %v1250 = vpop.permute.xlu0 %1249
      %v1252 = vmul.f32 %v1235, %v1250
      %1254 = vrot.lane.b32.xlu0 %v1252, 32
      %v1255 = vpop.permute.xlu0 %1254
      %s1257 = scalar_lea.vmem [#allocation3], %s1203
      %vm1258 = vcmask 254976
      %1259 = vst.msk [vmem:[%s1257] sm:$0x3] %vm1258, %v1255
      %s1260 = smul.u32 %s1196, 4
      %s1261 = sadd.s32 %s1260, 1
      %s1262 = smul.u32 %s1261, 2
      %s1263 = scalar_lea.vmem [#allocation2], %s1262
      %v1264 = vld [vmem:[%s1263] sm:$0x3]
      %v1265 = vsel %vm84, %v1255, 0
      %1267 = vmatpush.msra.mxu0 0.0
      %1268 = vmatpush.msra.mxu0 0.0
      %1269 = vmatpush.msra.mxu0 0.0
      %1270 = vmatpush.msra.mxu0 0.0
      %1271 = vmatpush.msra.mxu0 0.0
      %1272 = vmatpush.msra.mxu0 0.0
      %1273 = vmatpush.msra.mxu0 0.0
      %1274 = vmatpush.msra.mxu0 0.0
      %1275 = vmatpush.msra.mxu0 0.0
      %1276 = vmatpush.msra.mxu0 0.0
      %1277 = vmatpush.msra.mxu0 0.0
      %1278 = vmatpush.msra.mxu0 0.0
      %1279 = vmatpush.msra.mxu0 %v1194
      %1280 = vmatpush.msra.mxu0 %v1193
      %1281 = vmatpush.msra.mxu0 %v1192
      %1282 = vmatpush.msra.mxu0 %v1191
      %1283 = vmatmul.f32.gmra.mxu0 %v1265
      %v1284 = vpop.f32.mrf.mxu0
      %v1285 = vadd.f32 0.0, %v1284
      %1286 = vdwg.mxu0
      %v1287 = vadd.f32 %v1264, %v1285
      %v1288 = vtanh.pop %v1287
      %v1289 = vmul.f32 %v1288, 0.5
      %v1290 = vadd.f32 %v1289, 0.5
      %v1291 = vsel %vm275, %v1288, %v1290
      %v1292 = vmul.f32 %v1291, %v1246
      %1294 = vrot.lane.b32.xlu0 %v1291, 64
      %v1295 = vpop.permute.xlu0 %1294
      %v1297 = vmul.f32 %v1291, %v1295
      %1299 = vrot.lane.b32.xlu0 %v1297, 32
      %v1300 = vpop.permute.xlu0 %1299
      %v1302 = vadd.f32 %v1292, %v1300
      %v1303 = vtanh.pop %v1302
      %1305 = vrot.lane.b32.xlu0 %v1303, 64
      %v1306 = vpop.permute.xlu0 %1305
      %v1308 = vmul.f32 %v1291, %v1306
      %1310 = vrot.lane.b32.xlu0 %v1308, 32
      %v1311 = vpop.permute.xlu0 %1310
      %s1313 = scalar_lea.vmem [#allocation3], %s1262
      %1314 = vst.msk [vmem:[%s1313] sm:$0x3] %vm1258, %v1311
      %s1315 = sadd.s32 %s1260, 2
      %s1316 = smul.u32 %s1315, 2
      %s1317 = scalar_lea.vmem [#allocation2], %s1316
      %v1318 = vld [vmem:[%s1317] sm:$0x3]
      %v1319 = vsel %vm84, %v1311, 0
      %1321 = vmatpush.msra.mxu0 0.0
      %1322 = vmatpush.msra.mxu0 0.0
      %1323 = vmatpush.msra.mxu0 0.0
      %1324 = vmatpush.msra.mxu0 0.0
      %1325 = vmatpush.msra.mxu0 0.0
      %1326 = vmatpush.msra.mxu0 0.0
      %1327 = vmatpush.msra.mxu0 0.0
      %1328 = vmatpush.msra.mxu0 0.0
      %1329 = vmatpush.msra.mxu0 0.0
      %1330 = vmatpush.msra.mxu0 0.0
      %1331 = vmatpush.msra.mxu0 0.0
      %1332 = vmatpush.msra.mxu0 0.0
      %1333 = vmatpush.msra.mxu0 %v1194
      %1334 = vmatpush.msra.mxu0 %v1193
      %1335 = vmatpush.msra.mxu0 %v1192
      %1336 = vmatpush.msra.mxu0 %v1191
      %1337 = vmatmul.f32.gmra.mxu0 %v1319
      %v1338 = vpop.f32.mrf.mxu0
      %v1339 = vadd.f32 0.0, %v1338
      %1340 = vdwg.mxu0
      %v1341 = vadd.f32 %v1318, %v1339
      %v1342 = vtanh.pop %v1341
      %v1343 = vmul.f32 %v1342, 0.5
      %v1344 = vadd.f32 %v1343, 0.5
      %v1345 = vsel %vm275, %v1342, %v1344
      %v1346 = vmul.f32 %v1345, %v1302
      %1348 = vrot.lane.b32.xlu0 %v1345, 64
      %v1349 = vpop.permute.xlu0 %1348
      %v1351 = vmul.f32 %v1345, %v1349
      %1353 = vrot.lane.b32.xlu0 %v1351, 32
      %v1354 = vpop.permute.xlu0 %1353
      %v1356 = vadd.f32 %v1346, %v1354
      %v1357 = vtanh.pop %v1356
      %1359 = vrot.lane.b32.xlu0 %v1357, 64
      %v1360 = vpop.permute.xlu0 %1359
      %v1362 = vmul.f32 %v1345, %v1360
      %1364 = vrot.lane.b32.xlu0 %v1362, 32
      %v1365 = vpop.permute.xlu0 %1364
      %s1367 = scalar_lea.vmem [#allocation3], %s1316
      %1368 = vst.msk [vmem:[%s1367] sm:$0x3] %vm1258, %v1365
      %s1369 = sadd.s32 %s1260, 3
      %s1370 = smul.u32 %s1369, 2
      %s1371 = scalar_lea.vmem [#allocation2], %s1370
      %v1372 = vld [vmem:[%s1371] sm:$0x3]
      %v1373 = vsel %vm84, %v1365, 0
      %1375 = vmatpush.msra.mxu0 0.0
      %1376 = vmatpush.msra.mxu0 0.0
      %1377 = vmatpush.msra.mxu0 0.0
      %1378 = vmatpush.msra.mxu0 0.0
      %1379 = vmatpush.msra.mxu0 0.0
      %1380 = vmatpush.msra.mxu0 0.0
      %1381 = vmatpush.msra.mxu0 0.0
      %1382 = vmatpush.msra.mxu0 0.0
      %1383 = vmatpush.msra.mxu0 0.0
      %1384 = vmatpush.msra.mxu0 0.0
      %1385 = vmatpush.msra.mxu0 0.0
      %1386 = vmatpush.msra.mxu0 0.0
      %1387 = vmatpush.msra.mxu0 %v1194
      %1388 = vmatpush.msra.mxu0 %v1193
      %1389 = vmatpush.msra.mxu0 %v1192
      %1390 = vmatpush.msra.mxu0 %v1191
      %1391 = vmatmul.f32.gmra.mxu0 %v1373
      %v1392 = vpop.f32.mrf.mxu0
      %v1393 = vadd.f32 0.0, %v1392
      %1394 = vdwg.mxu0
      %v1395 = vadd.f32 %v1372, %v1393
      %v1396 = vtanh.pop %v1395
      %v1397 = vmul.f32 %v1396, 0.5
      %v1398 = vadd.f32 %v1397, 0.5
      %v1399 = vsel %vm275, %v1396, %v1398
      %v1400 = vmul.f32 %v1399, %v1356
      %1402 = vrot.lane.b32.xlu0 %v1399, 64
      %v1403 = vpop.permute.xlu0 %1402
      %v1405 = vmul.f32 %v1399, %v1403
      %1407 = vrot.lane.b32.xlu0 %v1405, 32
      %v1408 = vpop.permute.xlu0 %1407
      %v1410 = vadd.f32 %v1400, %v1408
      %v1411 = vtanh.pop %v1410
      %1413 = vrot.lane.b32.xlu0 %v1411, 64
      %v1414 = vpop.permute.xlu0 %1413
      %v1416 = vmul.f32 %v1399, %v1414
      %1418 = vrot.lane.b32.xlu0 %v1416, 32
      %v1419 = vpop.permute.xlu0 %1418
      %s1421 = scalar_lea.vmem [#allocation3], %s1370
      %1422 = vst.msk [vmem:[%s1421] sm:$0x3] %vm1258, %v1419
    $region108: #{metnet_forward.1} parent=1 // loop_footer
      %s1200 = sadd.s32 1, %s1196
    $region109: #{metnet_forward.1} parent=1 // loop_footer_branch
      %1195 = sbr.rel target = $region105
    $region110: #{metnet_forward.1} parent=1 // loop_exit
      _
    %v1423 = vld [vmem:[#allocation3] sm:$0xff]
    %v1424 = vld [vmem:[#allocation3 + $0x8] sm:$0xff]
    %v1425 = vld [vmem:[#allocation3 + $0x10] sm:$0xff]
    %v1426 = vld [vmem:[#allocation3 + $0x18] sm:$0xff]
    %1427 = vmatpush.msra.mxu0 0.0
    %1428 = vmatpush.msra.mxu0 0.0
    %1429 = vmatpush.msra.mxu0 0.0
    %1430 = vmatpush.msra.mxu0 0.0
    %1431 = vmatpush.msra.mxu0 0.0
    %1432 = vmatpush.msra.mxu0 0.0
    %1433 = vmatpush.msra.mxu0 0.0
    %1434 = vmatpush.msra.mxu0 0.0
    %1435 = vmatpush.msra.mxu0 0.0
    %1436 = vmatpush.msra.mxu0 0.0
    %1437 = vmatpush.msra.mxu0 0.0
    %1438 = vmatpush.msra.mxu0 0.0
    %1439 = vmatpush.msra.mxu0 %v1426
    %1440 = vmatpush.msra.mxu0 %v1425
    %1441 = vmatpush.msra.mxu0 %v1424
    %1442 = vmatpush.msra.mxu0 %v1423
    %1443 = vmatmul.f32.gmra.mxu0 %v639
    %v1444 = vpop.f32.mrf.mxu0
    %v1445 = vadd.f32 0.0, %v1444
    %1446 = vmatmul.f32.gmra.mxu0 %v642
    %v1447 = vpop.f32.mrf.mxu0
    %v1448 = vadd.f32 0.0, %v1447
    %1449 = vmatmul.f32.gmra.mxu0 %v645
    %v1450 = vpop.f32.mrf.mxu0
    %v1451 = vadd.f32 0.0, %v1450
    %1452 = vmatmul.f32.gmra.mxu0 %v648
    %v1453 = vpop.f32.mrf.mxu0
    %v1454 = vadd.f32 0.0, %v1453
    %1455 = vdwg.mxu0
    %v1456 = vsel %vm506, %v1423, %v1445
    %v1457 = vsel %vm506, %v1424, %v1448
    %v1458 = vsel %vm506, %v1425, %v1451
    %v1459 = vsel %vm506, %v1426, %v1454
    %1460 = vmatpush.msra.mxu0 0.0
    %1461 = vmatpush.msra.mxu0 0.0
    %1462 = vmatpush.msra.mxu0 0.0
    %1463 = vmatpush.msra.mxu0 0.0
    %1464 = vmatpush.msra.mxu0 0.0
    %1465 = vmatpush.msra.mxu0 0.0
    %1466 = vmatpush.msra.mxu0 0.0
    %1467 = vmatpush.msra.mxu0 0.0
    %1468 = vmatpush.msra.mxu0 0.0
    %1469 = vmatpush.msra.mxu0 0.0
    %1470 = vmatpush.msra.mxu0 0.0
    %1471 = vmatpush.msra.mxu0 0.0
    %1472 = vmatpush.msra.mxu0 %v1459
    %1473 = vmatpush.msra.mxu0 %v1458
    %1474 = vmatpush.msra.mxu0 %v1457
    %1475 = vmatpush.msra.mxu0 %v1456
    %1476 = vmatmul.f32.gmra.mxu0 %v956
    %v1477 = vpop.f32.mrf.mxu0
    %v1478 = vadd.f32 0.0, %v1477
    %1479 = vdwg.mxu0
    %v1480 = vmul.f32 %v1478, %v566
    %v1481 = vadd.f32 %v979, %v1480
    %v1483 = vsel %vm84, %v1481, 0
    %1485 = vmatpush.msra.mxu0 0.0
    %1486 = vmatpush.msra.mxu0 0.0
    %1487 = vmatpush.msra.mxu0 0.0
    %1488 = vmatpush.msra.mxu0 0.0
    %1489 = vmatpush.msra.mxu0 0.0
    %1490 = vmatpush.msra.mxu0 0.0
    %1491 = vmatpush.msra.mxu0 0.0
    %1492 = vmatpush.msra.mxu0 0.0
    %1493 = vmatpush.msra.mxu0 0.0
    %1494 = vmatpush.msra.mxu0 0.0
    %1495 = vmatpush.msra.mxu0 0.0
    %1496 = vmatpush.msra.mxu0 0.0
    %1497 = vmatpush.msra.mxu0 %v560
    %1498 = vmatpush.msra.mxu0 %v559
    %1499 = vmatpush.msra.mxu0 %v558
    %1500 = vmatpush.msra.mxu0 %v557
    %1501 = vmatmul.f32.gmra.mxu0 %v1483
    %v1502 = vpop.f32.mrf.mxu0
    %v1503 = vadd.f32 0.0, %v1502
    %1504 = vdwg.mxu0
    %v1506 = vsel %vm1016, %v1503, 0
    %1508 = vmatpush.msra.mxu0 0.0
    %1509 = vmatpush.msra.mxu0 0.0
    %1510 = vmatpush.msra.mxu0 0.0
    %1511 = vmatpush.msra.mxu0 0.0
    %1512 = vmatpush.msra.mxu0 0.0
    %1513 = vmatpush.msra.mxu0 0.0
    %1514 = vmatpush.msra.mxu0 0.0
    %1515 = vmatpush.msra.mxu0 0.0
    %1516 = vmatpush.msra.mxu0 0.0
    %1517 = vmatpush.msra.mxu0 0.0
    %1518 = vmatpush.msra.mxu0 0.0
    %1519 = vmatpush.msra.mxu0 0.0
    %1520 = vmatpush.msra.mxu0 0.0
    %1521 = vmatpush.msra.mxu0 0.0
    %1522 = vmatpush.msra.mxu0 0.0
    %1523 = vmatpush.msra.mxu0 %v1506
    %1524 = vmatmul.f32.gmra.mxu0 %v1005
    %v1525 = vpop.f32.mrf.mxu0
    %v1526 = vadd.f32 0.0, %v1525
    %1527 = vmatmul.f32.gmra.mxu0 %v1008
    %v1528 = vpop.f32.mrf.mxu0
    %v1529 = vadd.f32 0.0, %v1528
    %1530 = vmatmul.f32.gmra.mxu0 %v1011
    %v1531 = vpop.f32.mrf.mxu0
    %v1532 = vadd.f32 0.0, %v1531
    %1533 = vmatmul.f32.gmra.mxu0 %v1014
    %v1534 = vpop.f32.mrf.mxu0
    %v1535 = vadd.f32 0.0, %v1534
    %1536 = vdwg.mxu0
    %v1538 = vsel %vm84, %v1456, 0
    %v1541 = vsel %vm84, %v1457, 0
    %v1544 = vsel %vm84, %v1458, 0
    %v1547 = vsel %vm84, %v1459, 0
    %1549 = vmatpush.msra.mxu0 0.0
    %1550 = vmatpush.msra.mxu0 0.0
    %1551 = vmatpush.msra.mxu0 0.0
    %1552 = vmatpush.msra.mxu0 0.0
    %1553 = vmatpush.msra.mxu0 0.0
    %1554 = vmatpush.msra.mxu0 0.0
    %1555 = vmatpush.msra.mxu0 0.0
    %1556 = vmatpush.msra.mxu0 0.0
    %1557 = vmatpush.msra.mxu0 0.0
    %1558 = vmatpush.msra.mxu0 0.0
    %1559 = vmatpush.msra.mxu0 0.0
    %1560 = vmatpush.msra.mxu0 0.0
    %1561 = vmatpush.msra.mxu0 %v564
    %1562 = vmatpush.msra.mxu0 %v563
    %1563 = vmatpush.msra.mxu0 %v562
    %1564 = vmatpush.msra.mxu0 %v561
    %1565 = vmatmul.f32.gmra.mxu0 %v1538
    %v1566 = vpop.f32.mrf.mxu0
    %v1567 = vadd.f32 %v1526, %v1566
    %1568 = vmatmul.f32.gmra.mxu0 %v1541
    %v1569 = vpop.f32.mrf.mxu0
    %v1570 = vadd.f32 %v1529, %v1569
    %1571 = vmatmul.f32.gmra.mxu0 %v1544
    %v1572 = vpop.f32.mrf.mxu0
    %v1573 = vadd.f32 %v1532, %v1572
    %1574 = vmatmul.f32.gmra.mxu0 %v1547
    %v1575 = vpop.f32.mrf.mxu0
    %v1576 = vadd.f32 %v1535, %v1575
    %1577 = vdwg.mxu0
    %v1578 = vadd.f32 %v1567, %v1091
    %v1579 = vadd.f32 %v1570, %v1091
    %v1580 = vadd.f32 %v1573, %v1091
    %v1581 = vadd.f32 %v1576, %v1091
    %v1582 = vmax.f32 %v1578, 0.0
    %v1583 = vmax.f32 %v1579, 0.0
    %v1584 = vmax.f32 %v1580, 0.0
    %v1585 = vmax.f32 %v1581, 0.0
    %v1586 = vadd.f32 %v1582, %v1456
    %v1587 = vadd.f32 %v1583, %v1457
    %v1588 = vadd.f32 %v1584, %v1458
    %v1589 = vadd.f32 %v1585, %v1459
    %v1590 = vld [vmem:[%s7] sm:$0xff]
    %v1591 = vld [vmem:[%s7 + $0x8] sm:$0xff]
    %v1592 = vld [vmem:[%s7 + $0x10] sm:$0xff]
    %v1593 = vld [vmem:[%s7 + $0x18] sm:$0xff]
    %v1594 = vld [vmem:[%s9] sm:$0x1]
    %v1596 = vperm.slane %v1594, 0
    %v1599 = vsel %vm84, %v1586, 0
    %v1602 = vsel %vm84, %v1587, 0
    %v1605 = vsel %vm84, %v1588, 0
    %v1608 = vsel %vm84, %v1589, 0
    %1610 = vmatpush.msra.mxu0 0.0
    %1611 = vmatpush.msra.mxu0 0.0
    %1612 = vmatpush.msra.mxu0 0.0
    %1613 = vmatpush.msra.mxu0 0.0
    %1614 = vmatpush.msra.mxu0 0.0
    %1615 = vmatpush.msra.mxu0 0.0
    %1616 = vmatpush.msra.mxu0 0.0
    %1617 = vmatpush.msra.mxu0 0.0
    %1618 = vmatpush.msra.mxu0 0.0
    %1619 = vmatpush.msra.mxu0 0.0
    %1620 = vmatpush.msra.mxu0 0.0
    %1621 = vmatpush.msra.mxu0 0.0
    %1622 = vmatpush.msra.mxu0 %v1593
    %1623 = vmatpush.msra.mxu0 %v1592
    %1624 = vmatpush.msra.mxu0 %v1591
    %1625 = vmatpush.msra.mxu0 %v1590
    %1626 = vmatmul.f32.gmra.mxu0 %v1599
    %v1627 = vpop.f32.mrf.mxu0
    %v1628 = vadd.f32 %v1596, %v1627
    %1629 = vmatmul.f32.gmra.mxu0 %v1602
    %v1630 = vpop.f32.mrf.mxu0
    %v1631 = vadd.f32 %v1596, %v1630
    %1632 = vmatmul.f32.gmra.mxu0 %v1605
    %v1633 = vpop.f32.mrf.mxu0
    %v1634 = vadd.f32 %v1596, %v1633
    %1635 = vmatmul.f32.gmra.mxu0 %v1608
    %v1636 = vpop.f32.mrf.mxu0
    %v1637 = vadd.f32 %v1596, %v1636
    %1638 = vdwg.mxu0
    %1639 = vmatpush.msra.mxu0 0.0
    %1640 = vmatpush.msra.mxu0 0.0
    %1641 = vmatpush.msra.mxu0 0.0
    %1642 = vmatpush.msra.mxu0 0.0
    %1643 = vmatpush.msra.mxu0 0.0
    %1644 = vmatpush.msra.mxu0 0.0
    %1645 = vmatpush.msra.mxu0 0.0
    %1646 = vmatpush.msra.mxu0 0.0
    %1647 = vmatpush.msra.mxu0 0.0
    %1648 = vmatpush.msra.mxu0 0.0
    %1649 = vmatpush.msra.mxu0 0.0
    %1650 = vmatpush.msra.mxu0 0.0
    %1651 = vmatpush.msra.mxu0 %v1637
    %1652 = vmatpush.msra.mxu0 %v1634
    %1653 = vmatpush.msra.mxu0 %v1631
    %1654 = vmatpush.msra.mxu0 %v1628
    %1655 = vmatmul.f32.gmra.mxu0 %v639
    %v1656 = vpop.f32.mrf.mxu0
    %v1657 = vadd.f32 0.0, %v1656
    %1658 = vmatmul.f32.gmra.mxu0 %v642
    %v1659 = vpop.f32.mrf.mxu0
    %v1660 = vadd.f32 0.0, %v1659
    %1661 = vmatmul.f32.gmra.mxu0 %v645
    %v1662 = vpop.f32.mrf.mxu0
    %v1663 = vadd.f32 0.0, %v1662
    %1664 = vmatmul.f32.gmra.mxu0 %v648
    %v1665 = vpop.f32.mrf.mxu0
    %v1666 = vadd.f32 0.0, %v1665
    %1667 = vdwg.mxu0
    %v1668 = vsel %vm234, %v1657, %v1628
    %v1669 = vsel %vm234, %v1660, %v1631
    %v1670 = vsel %vm234, %v1663, %v1634
    %v1671 = vsel %vm234, %v1666, %v1637
    %1672 = vst [vmem:[#allocation2] sm:$0xff] %v1668
    %1673 = vst [vmem:[#allocation2 + $0x8] sm:$0xff] %v1669
    %1674 = vst [vmem:[#allocation2 + $0x10] sm:$0xff] %v1670
    %1675 = vst [vmem:[#allocation2 + $0x18] sm:$0xff] %v1671
    %v1676 = vld [vmem:[%s8] sm:$0xff]
    %v1677 = vld [vmem:[%s8 + $0x8] sm:$0xff]
    %v1678 = vld [vmem:[%s8 + $0x10] sm:$0xff]
    %v1679 = vld [vmem:[%s8 + $0x18] sm:$0xff]
    loop: start=0, step=1, limit=4
    $region111: #{metnet_forward.1} parent=1 // loop_pre_header
      _
    $region112: #{metnet_forward.1} parent=1 // loop_header
      %s1681 = sphi 0, %s1685
      %p1682 = scmp.ge.s32.totalorder %s1681, 4
      %v1686 = vphi 0.0, %v1901
      %v1687 = vphi 0.0, %v1895
    $region113: #{metnet_forward.1} parent=1 // loop_header_branch
      %1684 = sbr.rel (%p1682) target = $region117
    $region114: #{metnet_forward.1} parent=1 // loop_body
      %s1688 = smul.u32 %s1681, 8
      %s1689 = scalar_lea.vmem [#allocation2], %s1688
      %v1690 = vld [vmem:[%s1689] sm:$0x3]
      %1692 = vrot.lane.b32.xlu0 %v1686, 32
      %v1693 = vpop.permute.xlu0 %1692
      %v1694 = vsel %vm84, %v1693, 0
      %1696 = vmatpush.msra.mxu0 0.0
      %1697 = vmatpush.msra.mxu0 0.0
      %1698 = vmatpush.msra.mxu0 0.0
      %1699 = vmatpush.msra.mxu0 0.0
      %1700 = vmatpush.msra.mxu0 0.0
      %1701 = vmatpush.msra.mxu0 0.0
      %1702 = vmatpush.msra.mxu0 0.0
      %1703 = vmatpush.msra.mxu0 0.0
      %1704 = vmatpush.msra.mxu0 0.0
      %1705 = vmatpush.msra.mxu0 0.0
      %1706 = vmatpush.msra.mxu0 0.0
      %1707 = vmatpush.msra.mxu0 0.0
      %1708 = vmatpush.msra.mxu0 %v1679
      %1709 = vmatpush.msra.mxu0 %v1678
      %1710 = vmatpush.msra.mxu0 %v1677
      %1711 = vmatpush.msra.mxu0 %v1676
      %1712 = vmatmul.f32.gmra.mxu0 %v1694
      %v1713 = vpop.f32.mrf.mxu0
      %v1714 = vadd.f32 0.0, %v1713
      %1715 = vdwg.mxu0
      %v1716 = vadd.f32 %v1690, %v1714
      %v1717 = vtanh.pop %v1716
      %v1718 = vmul.f32 %v1717, 0.5
      %v1719 = vadd.f32 %v1718, 0.5
      %v1720 = vsel %vm275, %v1717, %v1719
      %v1721 = vmul.f32 %v1720, %v1687
      %1723 = vrot.lane.b32.xlu0 %v1720, 64
      %v1724 = vpop.permute.xlu0 %1723
      %v1726 = vmul.f32 %v1720, %v1724
      %1728 = vrot.lane.b32.xlu0 %v1726, 32
      %v1729 = vpop.permute.xlu0 %1728
      %v1731 = vadd.f32 %v1721, %v1729
      %v1732 = vtanh.pop %v1731
      %1734 = vrot.lane.b32.xlu0 %v1732, 64
      %v1735 = vpop.permute.xlu0 %1734
      %v1737 = vmul.f32 %v1720, %v1735
      %1739 = vrot.lane.b32.xlu0 %v1737, 32
      %v1740 = vpop.permute.xlu0 %1739
      %s1742 = scalar_lea.vmem [#allocation3], %s1688
      %vm1743 = vcmask 254976
      %1744 = vst.msk [vmem:[%s1742] sm:$0x3] %vm1743, %v1740
      %s1745 = smul.u32 %s1681, 4
      %s1746 = sadd.s32 %s1745, 1
      %s1747 = smul.u32 %s1746, 2
      %s1748 = scalar_lea.vmem [#allocation2], %s1747
      %v1749 = vld [vmem:[%s1748] sm:$0x3]
      %v1750 = vsel %vm84, %v1740, 0
      %1752 = vmatpush.msra.mxu0 0.0
      %1753 = vmatpush.msra.mxu0 0.0
      %1754 = vmatpush.msra.mxu0 0.0
      %1755 = vmatpush.msra.mxu0 0.0
      %1756 = vmatpush.msra.mxu0 0.0
      %1757 = vmatpush.msra.mxu0 0.0
      %1758 = vmatpush.msra.mxu0 0.0
      %1759 = vmatpush.msra.mxu0 0.0
      %1760 = vmatpush.msra.mxu0 0.0
      %1761 = vmatpush.msra.mxu0 0.0
      %1762 = vmatpush.msra.mxu0 0.0
      %1763 = vmatpush.msra.mxu0 0.0
      %1764 = vmatpush.msra.mxu0 %v1679
      %1765 = vmatpush.msra.mxu0 %v1678
      %1766 = vmatpush.msra.mxu0 %v1677
      %1767 = vmatpush.msra.mxu0 %v1676
      %1768 = vmatmul.f32.gmra.mxu0 %v1750
      %v1769 = vpop.f32.mrf.mxu0
      %v1770 = vadd.f32 0.0, %v1769
      %1771 = vdwg.mxu0
      %v1772 = vadd.f32 %v1749, %v1770
      %v1773 = vtanh.pop %v1772
      %v1774 = vmul.f32 %v1773, 0.5
      %v1775 = vadd.f32 %v1774, 0.5
      %v1776 = vsel %vm275, %v1773, %v1775
      %v1777 = vmul.f32 %v1776, %v1731
      %1779 = vrot.lane.b32.xlu0 %v1776, 64
      %v1780 = vpop.permute.xlu0 %1779
      %v1782 = vmul.f32 %v1776, %v1780
      %1784 = vrot.lane.b32.xlu0 %v1782, 32
      %v1785 = vpop.permute.xlu0 %1784
      %v1787 = vadd.f32 %v1777, %v1785
      %v1788 = vtanh.pop %v1787
      %1790 = vrot.lane.b32.xlu0 %v1788, 64
      %v1791 = vpop.permute.xlu0 %1790
      %v1793 = vmul.f32 %v1776, %v1791
      %1795 = vrot.lane.b32.xlu0 %v1793, 32
      %v1796 = vpop.permute.xlu0 %1795
      %s1798 = scalar_lea.vmem [#allocation3], %s1747
      %1799 = vst.msk [vmem:[%s1798] sm:$0x3] %vm1743, %v1796
      %s1800 = sadd.s32 %s1745, 2
      %s1801 = smul.u32 %s1800, 2
      %s1802 = scalar_lea.vmem [#allocation2], %s1801
      %v1803 = vld [vmem:[%s1802] sm:$0x3]
      %v1804 = vsel %vm84, %v1796, 0
      %1806 = vmatpush.msra.mxu0 0.0
      %1807 = vmatpush.msra.mxu0 0.0
      %1808 = vmatpush.msra.mxu0 0.0
      %1809 = vmatpush.msra.mxu0 0.0
      %1810 = vmatpush.msra.mxu0 0.0
      %1811 = vmatpush.msra.mxu0 0.0
      %1812 = vmatpush.msra.mxu0 0.0
      %1813 = vmatpush.msra.mxu0 0.0
      %1814 = vmatpush.msra.mxu0 0.0
      %1815 = vmatpush.msra.mxu0 0.0
      %1816 = vmatpush.msra.mxu0 0.0
      %1817 = vmatpush.msra.mxu0 0.0
      %1818 = vmatpush.msra.mxu0 %v1679
      %1819 = vmatpush.msra.mxu0 %v1678
      %1820 = vmatpush.msra.mxu0 %v1677
      %1821 = vmatpush.msra.mxu0 %v1676
      %1822 = vmatmul.f32.gmra.mxu0 %v1804
      %v1823 = vpop.f32.mrf.mxu0
      %v1824 = vadd.f32 0.0, %v1823
      %1825 = vdwg.mxu0
      %v1826 = vadd.f32 %v1803, %v1824
      %v1827 = vtanh.pop %v1826
      %v1828 = vmul.f32 %v1827, 0.5
      %v1829 = vadd.f32 %v1828, 0.5
      %v1830 = vsel %vm275, %v1827, %v1829
      %v1831 = vmul.f32 %v1830, %v1787
      %1833 = vrot.lane.b32.xlu0 %v1830, 64
      %v1834 = vpop.permute.xlu0 %1833
      %v1836 = vmul.f32 %v1830, %v1834
      %1838 = vrot.lane.b32.xlu0 %v1836, 32
      %v1839 = vpop.permute.xlu0 %1838
      %v1841 = vadd.f32 %v1831, %v1839
      %v1842 = vtanh.pop %v1841
      %1844 = vrot.lane.b32.xlu0 %v1842, 64
      %v1845 = vpop.permute.xlu0 %1844
      %v1847 = vmul.f32 %v1830, %v1845
      %1849 = vrot.lane.b32.xlu0 %v1847, 32
      %v1850 = vpop.permute.xlu0 %1849
      %s1852 = scalar_lea.vmem [#allocation3], %s1801
      %1853 = vst.msk [vmem:[%s1852] sm:$0x3] %vm1743, %v1850
      %s1854 = sadd.s32 %s1745, 3
      %s1855 = smul.u32 %s1854, 2
      %s1856 = scalar_lea.vmem [#allocation2], %s1855
      %v1857 = vld [vmem:[%s1856] sm:$0x3]
      %v1858 = vsel %vm84, %v1850, 0
      %1860 = vmatpush.msra.mxu0 0.0
      %1861 = vmatpush.msra.mxu0 0.0
      %1862 = vmatpush.msra.mxu0 0.0
      %1863 = vmatpush.msra.mxu0 0.0
      %1864 = vmatpush.msra.mxu0 0.0
      %1865 = vmatpush.msra.mxu0 0.0
      %1866 = vmatpush.msra.mxu0 0.0
      %1867 = vmatpush.msra.mxu0 0.0
      %1868 = vmatpush.msra.mxu0 0.0
      %1869 = vmatpush.msra.mxu0 0.0
      %1870 = vmatpush.msra.mxu0 0.0
      %1871 = vmatpush.msra.mxu0 0.0
      %1872 = vmatpush.msra.mxu0 %v1679
      %1873 = vmatpush.msra.mxu0 %v1678
      %1874 = vmatpush.msra.mxu0 %v1677
      %1875 = vmatpush.msra.mxu0 %v1676
      %1876 = vmatmul.f32.gmra.mxu0 %v1858
      %v1877 = vpop.f32.mrf.mxu0
      %v1878 = vadd.f32 0.0, %v1877
      %1879 = vdwg.mxu0
      %v1880 = vadd.f32 %v1857, %v1878
      %v1881 = vtanh.pop %v1880
      %v1882 = vmul.f32 %v1881, 0.5
      %v1883 = vadd.f32 %v1882, 0.5
      %v1884 = vsel %vm275, %v1881, %v1883
      %v1885 = vmul.f32 %v1884, %v1841
      %1887 = vrot.lane.b32.xlu0 %v1884, 64
      %v1888 = vpop.permute.xlu0 %1887
      %v1890 = vmul.f32 %v1884, %v1888
      %1892 = vrot.lane.b32.xlu0 %v1890, 32
      %v1893 = vpop.permute.xlu0 %1892
      %v1895 = vadd.f32 %v1885, %v1893
      %v1896 = vtanh.pop %v1895
      %1898 = vrot.lane.b32.xlu0 %v1896, 64
      %v1899 = vpop.permute.xlu0 %1898
      %v1901 = vmul.f32 %v1884, %v1899
      %1903 = vrot.lane.b32.xlu0 %v1901, 32
      %v1904 = vpop.permute.xlu0 %1903
      %s1906 = scalar_lea.vmem [#allocation3], %s1855
      %1907 = vst.msk [vmem:[%s1906] sm:$0x3] %vm1743, %v1904
    $region115: #{metnet_forward.1} parent=1 // loop_footer
      %s1685 = sadd.s32 1, %s1681
    $region116: #{metnet_forward.1} parent=1 // loop_footer_branch
      %1680 = sbr.rel target = $region112
    $region117: #{metnet_forward.1} parent=1 // loop_exit
      _
    %v1908 = vld [vmem:[#allocation3] sm:$0xff]
    %v1909 = vld [vmem:[#allocation3 + $0x8] sm:$0xff]
    %v1910 = vld [vmem:[#allocation3 + $0x10] sm:$0xff]
    %v1911 = vld [vmem:[#allocation3 + $0x18] sm:$0xff]
    %1912 = vmatpush.msra.mxu0 0.0
    %1913 = vmatpush.msra.mxu0 0.0
    %1914 = vmatpush.msra.mxu0 0.0
    %1915 = vmatpush.msra.mxu0 0.0
    %1916 = vmatpush.msra.mxu0 0.0
    %1917 = vmatpush.msra.mxu0 0.0
    %1918 = vmatpush.msra.mxu0 0.0
    %1919 = vmatpush.msra.mxu0 0.0
    %1920 = vmatpush.msra.mxu0 0.0
    %1921 = vmatpush.msra.mxu0 0.0
    %1922 = vmatpush.msra.mxu0 0.0
    %1923 = vmatpush.msra.mxu0 0.0
    %1924 = vmatpush.msra.mxu0 %v1911
    %1925 = vmatpush.msra.mxu0 %v1910
    %1926 = vmatpush.msra.mxu0 %v1909
    %1927 = vmatpush.msra.mxu0 %v1908
    %1928 = vmatmul.f32.gmra.mxu0 %v639
    %v1929 = vpop.f32.mrf.mxu0
    %v1930 = vadd.f32 0.0, %v1929
    %1931 = vmatmul.f32.gmra.mxu0 %v642
    %v1932 = vpop.f32.mrf.mxu0
    %v1933 = vadd.f32 0.0, %v1932
    %1934 = vmatmul.f32.gmra.mxu0 %v645
    %v1935 = vpop.f32.mrf.mxu0
    %v1936 = vadd.f32 0.0, %v1935
    %1937 = vmatmul.f32.gmra.mxu0 %v648
    %v1938 = vpop.f32.mrf.mxu0
    %v1939 = vadd.f32 0.0, %v1938
    %1940 = vdwg.mxu0
    %v1941 = vsel %vm506, %v1908, %v1930
    %v1942 = vsel %vm506, %v1909, %v1933
    %v1943 = vsel %vm506, %v1910, %v1936
    %v1944 = vsel %vm506, %v1911, %v1939
    %1945 = vmatpush.msra.mxu0 0.0
    %1946 = vmatpush.msra.mxu0 0.0
    %1947 = vmatpush.msra.mxu0 0.0
    %1948 = vmatpush.msra.mxu0 0.0
    %1949 = vmatpush.msra.mxu0 0.0
    %1950 = vmatpush.msra.mxu0 0.0
    %1951 = vmatpush.msra.mxu0 0.0
    %1952 = vmatpush.msra.mxu0 0.0
    %1953 = vmatpush.msra.mxu0 0.0
    %1954 = vmatpush.msra.mxu0 0.0
    %1955 = vmatpush.msra.mxu0 0.0
    %1956 = vmatpush.msra.mxu0 0.0
    %1957 = vmatpush.msra.mxu0 %v1944
    %1958 = vmatpush.msra.mxu0 %v1943
    %1959 = vmatpush.msra.mxu0 %v1942
    %1960 = vmatpush.msra.mxu0 %v1941
    %1961 = vmatmul.f32.gmra.mxu0 %v956
    %v1962 = vpop.f32.mrf.mxu0
    %v1963 = vadd.f32 0.0, %v1962
    %1964 = vdwg.mxu0
    %v1965 = vmul.f32 %v1963, %v566
    %v1966 = vadd.f32 %v1481, %v1965
    %v1968 = vsel %vm84, %v1966, 0
    %1970 = vmatpush.msra.mxu0 0.0
    %1971 = vmatpush.msra.mxu0 0.0
    %1972 = vmatpush.msra.mxu0 0.0
    %1973 = vmatpush.msra.mxu0 0.0
    %1974 = vmatpush.msra.mxu0 0.0
    %1975 = vmatpush.msra.mxu0 0.0
    %1976 = vmatpush.msra.mxu0 0.0
    %1977 = vmatpush.msra.mxu0 0.0
    %1978 = vmatpush.msra.mxu0 0.0
    %1979 = vmatpush.msra.mxu0 0.0
    %1980 = vmatpush.msra.mxu0 0.0
    %1981 = vmatpush.msra.mxu0 0.0
    %1982 = vmatpush.msra.mxu0 %v560
    %1983 = vmatpush.msra.mxu0 %v559
    %1984 = vmatpush.msra.mxu0 %v558
    %1985 = vmatpush.msra.mxu0 %v557
    %1986 = vmatmul.f32.gmra.mxu0 %v1968
    %v1987 = vpop.f32.mrf.mxu0
    %v1988 = vadd.f32 0.0, %v1987
    %1989 = vdwg.mxu0
    %v1991 = vsel %vm1016, %v1988, 0
    %1993 = vmatpush.msra.mxu0 0.0
    %1994 = vmatpush.msra.mxu0 0.0
    %1995 = vmatpush.msra.mxu0 0.0
    %1996 = vmatpush.msra.mxu0 0.0
    %1997 = vmatpush.msra.mxu0 0.0
    %1998 = vmatpush.msra.mxu0 0.0
    %1999 = vmatpush.msra.mxu0 0.0
    %2000 = vmatpush.msra.mxu0 0.0
    %2001 = vmatpush.msra.mxu0 0.0
    %2002 = vmatpush.msra.mxu0 0.0
    %2003 = vmatpush.msra.mxu0 0.0
    %2004 = vmatpush.msra.mxu0 0.0
    %2005 = vmatpush.msra.mxu0 0.0
    %2006 = vmatpush.msra.mxu0 0.0
    %2007 = vmatpush.msra.mxu0 0.0
    %2008 = vmatpush.msra.mxu0 %v1991
    %2009 = vmatmul.f32.gmra.mxu0 %v1005
    %v2010 = vpop.f32.mrf.mxu0
    %v2011 = vadd.f32 0.0, %v2010
    %2012 = vmatmul.f32.gmra.mxu0 %v1008
    %v2013 = vpop.f32.mrf.mxu0
    %v2014 = vadd.f32 0.0, %v2013
    %2015 = vmatmul.f32.gmra.mxu0 %v1011
    %v2016 = vpop.f32.mrf.mxu0
    %v2017 = vadd.f32 0.0, %v2016
    %2018 = vmatmul.f32.gmra.mxu0 %v1014
    %v2019 = vpop.f32.mrf.mxu0
    %v2020 = vadd.f32 0.0, %v2019
    %2021 = vdwg.mxu0
    %v2023 = vsel %vm84, %v1941, 0
    %v2026 = vsel %vm84, %v1942, 0
    %v2029 = vsel %vm84, %v1943, 0
    %v2032 = vsel %vm84, %v1944, 0
    %2034 = vmatpush.msra.mxu0 0.0
    %2035 = vmatpush.msra.mxu0 0.0
    %2036 = vmatpush.msra.mxu0 0.0
    %2037 = vmatpush.msra.mxu0 0.0
    %2038 = vmatpush.msra.mxu0 0.0
    %2039 = vmatpush.msra.mxu0 0.0
    %2040 = vmatpush.msra.mxu0 0.0
    %2041 = vmatpush.msra.mxu0 0.0
    %2042 = vmatpush.msra.mxu0 0.0
    %2043 = vmatpush.msra.mxu0 0.0
    %2044 = vmatpush.msra.mxu0 0.0
    %2045 = vmatpush.msra.mxu0 0.0
    %2046 = vmatpush.msra.mxu0 %v564
    %2047 = vmatpush.msra.mxu0 %v563
    %2048 = vmatpush.msra.mxu0 %v562
    %2049 = vmatpush.msra.mxu0 %v561
    %2050 = vmatmul.f32.gmra.mxu0 %v2023
    %v2051 = vpop.f32.mrf.mxu0
    %v2052 = vadd.f32 %v2011, %v2051
    %2053 = vmatmul.f32.gmra.mxu0 %v2026
    %v2054 = vpop.f32.mrf.mxu0
    %v2055 = vadd.f32 %v2014, %v2054
    %2056 = vmatmul.f32.gmra.mxu0 %v2029
    %v2057 = vpop.f32.mrf.mxu0
    %v2058 = vadd.f32 %v2017, %v2057
    %2059 = vmatmul.f32.gmra.mxu0 %v2032
    %v2060 = vpop.f32.mrf.mxu0
    %v2061 = vadd.f32 %v2020, %v2060
    %2062 = vdwg.mxu0
    %v2063 = vadd.f32 %v2052, %v1091
    %v2064 = vadd.f32 %v2055, %v1091
    %v2065 = vadd.f32 %v2058, %v1091
    %v2066 = vadd.f32 %v2061, %v1091
    %v2067 = vmax.f32 %v2063, 0.0
    %v2068 = vmax.f32 %v2064, 0.0
    %v2069 = vmax.f32 %v2065, 0.0
    %v2070 = vmax.f32 %v2066, 0.0
    %v2071 = vadd.f32 %v2067, %v1941
    %v2072 = vadd.f32 %v2068, %v1942
    %v2073 = vadd.f32 %v2069, %v1943
    %v2074 = vadd.f32 %v2070, %v1944
    %v2075 = vld [vmem:[%s7] sm:$0xff]
    %v2076 = vld [vmem:[%s7 + $0x8] sm:$0xff]
    %v2077 = vld [vmem:[%s7 + $0x10] sm:$0xff]
    %v2078 = vld [vmem:[%s7 + $0x18] sm:$0xff]
    %v2079 = vld [vmem:[%s9] sm:$0x1]
    %v2081 = vperm.slane %v2079, 0
    %v2084 = vsel %vm84, %v2071, 0
    %v2087 = vsel %vm84, %v2072, 0
    %v2090 = vsel %vm84, %v2073, 0
    %v2093 = vsel %vm84, %v2074, 0
    %2095 = vmatpush.msra.mxu0 0.0
    %2096 = vmatpush.msra.mxu0 0.0
    %2097 = vmatpush.msra.mxu0 0.0
    %2098 = vmatpush.msra.mxu0 0.0
    %2099 = vmatpush.msra.mxu0 0.0
    %2100 = vmatpush.msra.mxu0 0.0
    %2101 = vmatpush.msra.mxu0 0.0
    %2102 = vmatpush.msra.mxu0 0.0
    %2103 = vmatpush.msra.mxu0 0.0
    %2104 = vmatpush.msra.mxu0 0.0
    %2105 = vmatpush.msra.mxu0 0.0
    %2106 = vmatpush.msra.mxu0 0.0
    %2107 = vmatpush.msra.mxu0 %v2078
    %2108 = vmatpush.msra.mxu0 %v2077
    %2109 = vmatpush.msra.mxu0 %v2076
    %2110 = vmatpush.msra.mxu0 %v2075
    %2111 = vmatmul.f32.gmra.mxu0 %v2084
    %v2112 = vpop.f32.mrf.mxu0
    %v2113 = vadd.f32 %v2081, %v2112
    %2114 = vmatmul.f32.gmra.mxu0 %v2087
    %v2115 = vpop.f32.mrf.mxu0
    %v2116 = vadd.f32 %v2081, %v2115
    %2117 = vmatmul.f32.gmra.mxu0 %v2090
    %v2118 = vpop.f32.mrf.mxu0
    %v2119 = vadd.f32 %v2081, %v2118
    %2120 = vmatmul.f32.gmra.mxu0 %v2093
    %v2121 = vpop.f32.mrf.mxu0
    %v2122 = vadd.f32 %v2081, %v2121
    %2123 = vdwg.mxu0
    %2124 = vmatpush.msra.mxu0 0.0
    %2125 = vmatpush.msra.mxu0 0.0
    %2126 = vmatpush.msra.mxu0 0.0
    %2127 = vmatpush.msra.mxu0 0.0
    %2128 = vmatpush.msra.mxu0 0.0
    %2129 = vmatpush.msra.mxu0 0.0
    %2130 = vmatpush.msra.mxu0 0.0
    %2131 = vmatpush.msra.mxu0 0.0
    %2132 = vmatpush.msra.mxu0 0.0
    %2133 = vmatpush.msra.mxu0 0.0
    %2134 = vmatpush.msra.mxu0 0.0
    %2135 = vmatpush.msra.mxu0 0.0
    %2136 = vmatpush.msra.mxu0 %v2122
    %2137 = vmatpush.msra.mxu0 %v2119
    %2138 = vmatpush.msra.mxu0 %v2116
    %2139 = vmatpush.msra.mxu0 %v2113
    %2140 = vmatmul.f32.gmra.mxu0 %v639
    %v2141 = vpop.f32.mrf.mxu0
    %v2142 = vadd.f32 0.0, %v2141
    %2143 = vmatmul.f32.gmra.mxu0 %v642
    %v2144 = vpop.f32.mrf.mxu0
    %v2145 = vadd.f32 0.0, %v2144
    %2146 = vmatmul.f32.gmra.mxu0 %v645
    %v2147 = vpop.f32.mrf.mxu0
    %v2148 = vadd.f32 0.0, %v2147
    %2149 = vmatmul.f32.gmra.mxu0 %v648
    %v2150 = vpop.f32.mrf.mxu0
    %v2151 = vadd.f32 0.0, %v2150
    %2152 = vdwg.mxu0
    %v2153 = vsel %vm234, %v2142, %v2113
    %v2154 = vsel %vm234, %v2145, %v2116
    %v2155 = vsel %vm234, %v2148, %v2119
    %v2156 = vsel %vm234, %v2151, %v2122
    %2157 = vst [vmem:[#allocation2] sm:$0xff] %v2153
    %2158 = vst [vmem:[#allocation2 + $0x8] sm:$0xff] %v2154
    %2159 = vst [vmem:[#allocation2 + $0x10] sm:$0xff] %v2155
    %2160 = vst [vmem:[#allocation2 + $0x18] sm:$0xff] %v2156
    %v2161 = vld [vmem:[%s8] sm:$0xff]
    %v2162 = vld [vmem:[%s8 + $0x8] sm:$0xff]
    %v2163 = vld [vmem:[%s8 + $0x10] sm:$0xff]
    %v2164 = vld [vmem:[%s8 + $0x18] sm:$0xff]
    loop: start=0, step=1, limit=4
    $region118: #{metnet_forward.1} parent=1 // loop_pre_header
      _
    $region119: #{metnet_forward.1} parent=1 // loop_header
      %s2166 = sphi 0, %s2170
      %p2167 = scmp.ge.s32.totalorder %s2166, 4
      %v2171 = vphi 0.0, %v2386
      %v2172 = vphi 0.0, %v2380
    $region120: #{metnet_forward.1} parent=1 // loop_header_branch
      %2169 = sbr.rel (%p2167) target = $region124
    $region121: #{metnet_forward.1} parent=1 // loop_body
      %s2173 = smul.u32 %s2166, 8
      %s2174 = scalar_lea.vmem [#allocation2], %s2173
      %v2175 = vld [vmem:[%s2174] sm:$0x3]
      %2177 = vrot.lane.b32.xlu0 %v2171, 32
      %v2178 = vpop.permute.xlu0 %2177
      %v2179 = vsel %vm84, %v2178, 0
      %2181 = vmatpush.msra.mxu0 0.0
      %2182 = vmatpush.msra.mxu0 0.0
      %2183 = vmatpush.msra.mxu0 0.0
      %2184 = vmatpush.msra.mxu0 0.0
      %2185 = vmatpush.msra.mxu0 0.0
      %2186 = vmatpush.msra.mxu0 0.0
      %2187 = vmatpush.msra.mxu0 0.0
      %2188 = vmatpush.msra.mxu0 0.0
      %2189 = vmatpush.msra.mxu0 0.0
      %2190 = vmatpush.msra.mxu0 0.0
      %2191 = vmatpush.msra.mxu0 0.0
      %2192 = vmatpush.msra.mxu0 0.0
      %2193 = vmatpush.msra.mxu0 %v2164
      %2194 = vmatpush.msra.mxu0 %v2163
      %2195 = vmatpush.msra.mxu0 %v2162
      %2196 = vmatpush.msra.mxu0 %v2161
      %2197 = vmatmul.f32.gmra.mxu0 %v2179
      %v2198 = vpop.f32.mrf.mxu0
      %v2199 = vadd.f32 0.0, %v2198
      %2200 = vdwg.mxu0
      %v2201 = vadd.f32 %v2175, %v2199
      %v2202 = vtanh.pop %v2201
      %v2203 = vmul.f32 %v2202, 0.5
      %v2204 = vadd.f32 %v2203, 0.5
      %v2205 = vsel %vm275, %v2202, %v2204
      %v2206 = vmul.f32 %v2205, %v2172
      %2208 = vrot.lane.b32.xlu0 %v2205, 64
      %v2209 = vpop.permute.xlu0 %2208
      %v2211 = vmul.f32 %v2205, %v2209
      %2213 = vrot.lane.b32.xlu0 %v2211, 32
      %v2214 = vpop.permute.xlu0 %2213
      %v2216 = vadd.f32 %v2206, %v2214
      %v2217 = vtanh.pop %v2216
      %2219 = vrot.lane.b32.xlu0 %v2217, 64
      %v2220 = vpop.permute.xlu0 %2219
      %v2222 = vmul.f32 %v2205, %v2220
      %2224 = vrot.lane.b32.xlu0 %v2222, 32
      %v2225 = vpop.permute.xlu0 %2224
      %s2227 = scalar_lea.vmem [#allocation3], %s2173
      %vm2228 = vcmask 254976
      %2229 = vst.msk [vmem:[%s2227] sm:$0x3] %vm2228, %v2225
      %s2230 = smul.u32 %s2166, 4
      %s2231 = sadd.s32 %s2230, 1
      %s2232 = smul.u32 %s2231, 2
      %s2233 = scalar_lea.vmem [#allocation2], %s2232
      %v2234 = vld [vmem:[%s2233] sm:$0x3]
      %v2235 = vsel %vm84, %v2225, 0
      %2237 = vmatpush.msra.mxu0 0.0
      %2238 = vmatpush.msra.mxu0 0.0
      %2239 = vmatpush.msra.mxu0 0.0
      %2240 = vmatpush.msra.mxu0 0.0
      %2241 = vmatpush.msra.mxu0 0.0
      %2242 = vmatpush.msra.mxu0 0.0
      %2243 = vmatpush.msra.mxu0 0.0
      %2244 = vmatpush.msra.mxu0 0.0
      %2245 = vmatpush.msra.mxu0 0.0
      %2246 = vmatpush.msra.mxu0 0.0
      %2247 = vmatpush.msra.mxu0 0.0
      %2248 = vmatpush.msra.mxu0 0.0
      %2249 = vmatpush.msra.mxu0 %v2164
      %2250 = vmatpush.msra.mxu0 %v2163
      %2251 = vmatpush.msra.mxu0 %v2162
      %2252 = vmatpush.msra.mxu0 %v2161
      %2253 = vmatmul.f32.gmra.mxu0 %v2235
      %v2254 = vpop.f32.mrf.mxu0
      %v2255 = vadd.f32 0.0, %v2254
      %2256 = vdwg.mxu0
      %v2257 = vadd.f32 %v2234, %v2255
      %v2258 = vtanh.pop %v2257
      %v2259 = vmul.f32 %v2258, 0.5
      %v2260 = vadd.f32 %v2259, 0.5
      %v2261 = vsel %vm275, %v2258, %v2260
      %v2262 = vmul.f32 %v2261, %v2216
      %2264 = vrot.lane.b32.xlu0 %v2261, 64
      %v2265 = vpop.permute.xlu0 %2264
      %v2267 = vmul.f32 %v2261, %v2265
      %2269 = vrot.lane.b32.xlu0 %v2267, 32
      %v2270 = vpop.permute.xlu0 %2269
      %v2272 = vadd.f32 %v2262, %v2270
      %v2273 = vtanh.pop %v2272
      %2275 = vrot.lane.b32.xlu0 %v2273, 64
      %v2276 = vpop.permute.xlu0 %2275
      %v2278 = vmul.f32 %v2261, %v2276
      %2280 = vrot.lane.b32.xlu0 %v2278, 32
      %v2281 = vpop.permute.xlu0 %2280
      %s2283 = scalar_lea.vmem [#allocation3], %s2232
      %2284 = vst.msk [vmem:[%s2283] sm:$0x3] %vm2228, %v2281
      %s2285 = sadd.s32 %s2230, 2
      %s2286 = smul.u32 %s2285, 2
      %s2287 = scalar_lea.vmem [#allocation2], %s2286
      %v2288 = vld [vmem:[%s2287] sm:$0x3]
      %v2289 = vsel %vm84, %v2281, 0
      %2291 = vmatpush.msra.mxu0 0.0
      %2292 = vmatpush.msra.mxu0 0.0
      %2293 = vmatpush.msra.mxu0 0.0
      %2294 = vmatpush.msra.mxu0 0.0
      %2295 = vmatpush.msra.mxu0 0.0
      %2296 = vmatpush.msra.mxu0 0.0
      %2297 = vmatpush.msra.mxu0 0.0
      %2298 = vmatpush.msra.mxu0 0.0
      %2299 = vmatpush.msra.mxu0 0.0
      %2300 = vmatpush.msra.mxu0 0.0
      %2301 = vmatpush.msra.mxu0 0.0
      %2302 = vmatpush.msra.mxu0 0.0
      %2303 = vmatpush.msra.mxu0 %v2164
      %2304 = vmatpush.msra.mxu0 %v2163
      %2305 = vmatpush.msra.mxu0 %v2162
      %2306 = vmatpush.msra.mxu0 %v2161
      %2307 = vmatmul.f32.gmra.mxu0 %v2289
      %v2308 = vpop.f32.mrf.mxu0
      %v2309 = vadd.f32 0.0, %v2308
      %2310 = vdwg.mxu0
      %v2311 = vadd.f32 %v2288, %v2309
      %v2312 = vtanh.pop %v2311
      %v2313 = vmul.f32 %v2312, 0.5
      %v2314 = vadd.f32 %v2313, 0.5
      %v2315 = vsel %vm275, %v2312, %v2314
      %v2316 = vmul.f32 %v2315, %v2272
      %2318 = vrot.lane.b32.xlu0 %v2315, 64
      %v2319 = vpop.permute.xlu0 %2318
      %v2321 = vmul.f32 %v2315, %v2319
      %2323 = vrot.lane.b32.xlu0 %v2321, 32
      %v2324 = vpop.permute.xlu0 %2323
      %v2326 = vadd.f32 %v2316, %v2324
      %v2327 = vtanh.pop %v2326
      %2329 = vrot.lane.b32.xlu0 %v2327, 64
      %v2330 = vpop.permute.xlu0 %2329
      %v2332 = vmul.f32 %v2315, %v2330
      %2334 = vrot.lane.b32.xlu0 %v2332, 32
      %v2335 = vpop.permute.xlu0 %2334
      %s2337 = scalar_lea.vmem [#allocation3], %s2286
      %2338 = vst.msk [vmem:[%s2337] sm:$0x3] %vm2228, %v2335
      %s2339 = sadd.s32 %s2230, 3
      %s2340 = smul.u32 %s2339, 2
      %s2341 = scalar_lea.vmem [#allocation2], %s2340
      %v2342 = vld [vmem:[%s2341] sm:$0x3]
      %v2343 = vsel %vm84, %v2335, 0
      %2345 = vmatpush.msra.mxu0 0.0
      %2346 = vmatpush.msra.mxu0 0.0
      %2347 = vmatpush.msra.mxu0 0.0
      %2348 = vmatpush.msra.mxu0 0.0
      %2349 = vmatpush.msra.mxu0 0.0
      %2350 = vmatpush.msra.mxu0 0.0
      %2351 = vmatpush.msra.mxu0 0.0
      %2352 = vmatpush.msra.mxu0 0.0
      %2353 = vmatpush.msra.mxu0 0.0
      %2354 = vmatpush.msra.mxu0 0.0
      %2355 = vmatpush.msra.mxu0 0.0
      %2356 = vmatpush.msra.mxu0 0.0
      %2357 = vmatpush.msra.mxu0 %v2164
      %2358 = vmatpush.msra.mxu0 %v2163
      %2359 = vmatpush.msra.mxu0 %v2162
      %2360 = vmatpush.msra.mxu0 %v2161
      %2361 = vmatmul.f32.gmra.mxu0 %v2343
      %v2362 = vpop.f32.mrf.mxu0
      %v2363 = vadd.f32 0.0, %v2362
      %2364 = vdwg.mxu0
      %v2365 = vadd.f32 %v2342, %v2363
      %v2366 = vtanh.pop %v2365
      %v2367 = vmul.f32 %v2366, 0.5
      %v2368 = vadd.f32 %v2367, 0.5
      %v2369 = vsel %vm275, %v2366, %v2368
      %v2370 = vmul.f32 %v2369, %v2326
      %2372 = vrot.lane.b32.xlu0 %v2369, 64
      %v2373 = vpop.permute.xlu0 %2372
      %v2375 = vmul.f32 %v2369, %v2373
      %2377 = vrot.lane.b32.xlu0 %v2375, 32
      %v2378 = vpop.permute.xlu0 %2377
      %v2380 = vadd.f32 %v2370, %v2378
      %v2381 = vtanh.pop %v2380
      %2383 = vrot.lane.b32.xlu0 %v2381, 64
      %v2384 = vpop.permute.xlu0 %2383
      %v2386 = vmul.f32 %v2369, %v2384
      %2388 = vrot.lane.b32.xlu0 %v2386, 32
      %v2389 = vpop.permute.xlu0 %2388
      %s2391 = scalar_lea.vmem [#allocation3], %s2340
      %2392 = vst.msk [vmem:[%s2391] sm:$0x3] %vm2228, %v2389
    $region122: #{metnet_forward.1} parent=1 // loop_footer
      %s2170 = sadd.s32 1, %s2166
    $region123: #{metnet_forward.1} parent=1 // loop_footer_branch
      %2165 = sbr.rel target = $region119
    $region124: #{metnet_forward.1} parent=1 // loop_exit
      _
    %v2393 = vld [vmem:[#allocation3] sm:$0xff]
    %v2394 = vld [vmem:[#allocation3 + $0x8] sm:$0xff]
    %v2395 = vld [vmem:[#allocation3 + $0x10] sm:$0xff]
    %v2396 = vld [vmem:[#allocation3 + $0x18] sm:$0xff]
    %2397 = vmatpush.msra.mxu0 0.0
    %2398 = vmatpush.msra.mxu0 0.0
    %2399 = vmatpush.msra.mxu0 0.0
    %2400 = vmatpush.msra.mxu0 0.0
    %2401 = vmatpush.msra.mxu0 0.0
    %2402 = vmatpush.msra.mxu0 0.0
    %2403 = vmatpush.msra.mxu0 0.0
    %2404 = vmatpush.msra.mxu0 0.0
    %2405 = vmatpush.msra.mxu0 0.0
    %2406 = vmatpush.msra.mxu0 0.0
    %2407 = vmatpush.msra.mxu0 0.0
    %2408 = vmatpush.msra.mxu0 0.0
    %2409 = vmatpush.msra.mxu0 %v2396
    %2410 = vmatpush.msra.mxu0 %v2395
    %2411 = vmatpush.msra.mxu0 %v2394
    %2412 = vmatpush.msra.mxu0 %v2393
    %2413 = vmatmul.f32.gmra.mxu0 %v639
    %v2414 = vpop.f32.mrf.mxu0
    %v2415 = vadd.f32 0.0, %v2414
    %2416 = vmatmul.f32.gmra.mxu0 %v642
    %v2417 = vpop.f32.mrf.mxu0
    %v2418 = vadd.f32 0.0, %v2417
    %2419 = vmatmul.f32.gmra.mxu0 %v645
    %v2420 = vpop.f32.mrf.mxu0
    %v2421 = vadd.f32 0.0, %v2420
    %2422 = vmatmul.f32.gmra.mxu0 %v648
    %v2423 = vpop.f32.mrf.mxu0
    %v2424 = vadd.f32 0.0, %v2423
    %2425 = vdwg.mxu0
    %v2426 = vsel %vm506, %v2393, %v2415
    %v2427 = vsel %vm506, %v2394, %v2418
    %v2428 = vsel %vm506, %v2395, %v2421
    %v2429 = vsel %vm506, %v2396, %v2424
    %2430 = vmatpush.msra.mxu0 0.0
    %2431 = vmatpush.msra.mxu0 0.0
    %2432 = vmatpush.msra.mxu0 0.0
    %2433 = vmatpush.msra.mxu0 0.0
    %2434 = vmatpush.msra.mxu0 0.0
    %2435 = vmatpush.msra.mxu0 0.0
    %2436 = vmatpush.msra.mxu0 0.0
    %2437 = vmatpush.msra.mxu0 0.0
    %2438 = vmatpush.msra.mxu0 0.0
    %2439 = vmatpush.msra.mxu0 0.0
    %2440 = vmatpush.msra.mxu0 0.0
    %2441 = vmatpush.msra.mxu0 0.0
    %2442 = vmatpush.msra.mxu0 %v2429
    %2443 = vmatpush.msra.mxu0 %v2428
    %2444 = vmatpush.msra.mxu0 %v2427
    %2445 = vmatpush.msra.mxu0 %v2426
    %2446 = vmatmul.f32.gmra.mxu0 %v956
    %v2447 = vpop.f32.mrf.mxu0
    %v2448 = vadd.f32 0.0, %v2447
    %2449 = vdwg.mxu0
    %v2450 = vmul.f32 %v2448, %v566
    %v2451 = vadd.f32 %v1966, %v2450
    %v2453 = vsel %vm84, %v2451, 0
    %2455 = vmatpush.msra.mxu0 0.0
    %2456 = vmatpush.msra.mxu0 0.0
    %2457 = vmatpush.msra.mxu0 0.0
    %2458 = vmatpush.msra.mxu0 0.0
    %2459 = vmatpush.msra.mxu0 0.0
    %2460 = vmatpush.msra.mxu0 0.0
    %2461 = vmatpush.msra.mxu0 0.0
    %2462 = vmatpush.msra.mxu0 0.0
    %2463 = vmatpush.msra.mxu0 0.0
    %2464 = vmatpush.msra.mxu0 0.0
    %2465 = vmatpush.msra.mxu0 0.0
    %2466 = vmatpush.msra.mxu0 0.0
    %2467 = vmatpush.msra.mxu0 %v560
    %2468 = vmatpush.msra.mxu0 %v559
    %2469 = vmatpush.msra.mxu0 %v558
    %2470 = vmatpush.msra.mxu0 %v557
    %2471 = vmatmul.f32.gmra.mxu0 %v2453
    %v2472 = vpop.f32.mrf.mxu0
    %v2473 = vadd.f32 0.0, %v2472
    %2474 = vdwg.mxu0
    %v2476 = vsel %vm1016, %v2473, 0
    %2478 = vmatpush.msra.mxu0 0.0
    %2479 = vmatpush.msra.mxu0 0.0
    %2480 = vmatpush.msra.mxu0 0.0
    %2481 = vmatpush.msra.mxu0 0.0
    %2482 = vmatpush.msra.mxu0 0.0
    %2483 = vmatpush.msra.mxu0 0.0
    %2484 = vmatpush.msra.mxu0 0.0
    %2485 = vmatpush.msra.mxu0 0.0
    %2486 = vmatpush.msra.mxu0 0.0
    %2487 = vmatpush.msra.mxu0 0.0
    %2488 = vmatpush.msra.mxu0 0.0
    %2489 = vmatpush.msra.mxu0 0.0
    %2490 = vmatpush.msra.mxu0 0.0
    %2491 = vmatpush.msra.mxu0 0.0
    %2492 = vmatpush.msra.mxu0 0.0
    %2493 = vmatpush.msra.mxu0 %v2476
    %2494 = vmatmul.f32.gmra.mxu0 %v1005
    %v2495 = vpop.f32.mrf.mxu0
    %v2496 = vadd.f32 0.0, %v2495
    %2497 = vmatmul.f32.gmra.mxu0 %v1008
    %v2498 = vpop.f32.mrf.mxu0
    %v2499 = vadd.f32 0.0, %v2498
    %2500 = vmatmul.f32.gmra.mxu0 %v1011
    %v2501 = vpop.f32.mrf.mxu0
    %v2502 = vadd.f32 0.0, %v2501
    %2503 = vmatmul.f32.gmra.mxu0 %v1014
    %v2504 = vpop.f32.mrf.mxu0
    %v2505 = vadd.f32 0.0, %v2504
    %2506 = vdwg.mxu0
    %v2508 = vsel %vm84, %v2426, 0
    %v2511 = vsel %vm84, %v2427, 0
    %v2514 = vsel %vm84, %v2428, 0
    %v2517 = vsel %vm84, %v2429, 0
    %2519 = vmatpush.msra.mxu0 0.0
    %2520 = vmatpush.msra.mxu0 0.0
    %2521 = vmatpush.msra.mxu0 0.0
    %2522 = vmatpush.msra.mxu0 0.0
    %2523 = vmatpush.msra.mxu0 0.0
    %2524 = vmatpush.msra.mxu0 0.0
    %2525 = vmatpush.msra.mxu0 0.0
    %2526 = vmatpush.msra.mxu0 0.0
    %2527 = vmatpush.msra.mxu0 0.0
    %2528 = vmatpush.msra.mxu0 0.0
    %2529 = vmatpush.msra.mxu0 0.0
    %2530 = vmatpush.msra.mxu0 0.0
    %2531 = vmatpush.msra.mxu0 %v564
    %2532 = vmatpush.msra.mxu0 %v563
    %2533 = vmatpush.msra.mxu0 %v562
    %2534 = vmatpush.msra.mxu0 %v561
    %2535 = vmatmul.f32.gmra.mxu0 %v2508
    %v2536 = vpop.f32.mrf.mxu0
    %v2537 = vadd.f32 %v2496, %v2536
    %2538 = vmatmul.f32.gmra.mxu0 %v2511
    %v2539 = vpop.f32.mrf.mxu0
    %v2540 = vadd.f32 %v2499, %v2539
    %2541 = vmatmul.f32.gmra.mxu0 %v2514
    %v2542 = vpop.f32.mrf.mxu0
    %v2543 = vadd.f32 %v2502, %v2542
    %2544 = vmatmul.f32.gmra.mxu0 %v2517
    %v2545 = vpop.f32.mrf.mxu0
    %v2546 = vadd.f32 %v2505, %v2545
    %2547 = vdwg.mxu0
    %v2548 = vadd.f32 %v2537, %v1091
    %v2549 = vadd.f32 %v2540, %v1091
    %v2550 = vadd.f32 %v2543, %v1091
    %v2551 = vadd.f32 %v2546, %v1091
    %v2552 = vmax.f32 %v2548, 0.0
    %v2553 = vmax.f32 %v2549, 0.0
    %v2554 = vmax.f32 %v2550, 0.0
    %v2555 = vmax.f32 %v2551, 0.0
    %v2556 = vadd.f32 %v2552, %v2426
    %v2557 = vadd.f32 %v2553, %v2427
    %v2558 = vadd.f32 %v2554, %v2428
    %v2559 = vadd.f32 %v2555, %v2429
    %v2560 = vld [vmem:[%s2] sm:$0xff]
    %v2561 = vld [vmem:[%s2 + $0x8] sm:$0xff]
    %v2562 = vld [vmem:[%s2 + $0x10] sm:$0xff]
    %v2563 = vld [vmem:[%s2 + $0x18] sm:$0xff]
    %v2564 = vmul.f32 %v2556, %v2560
    %v2565 = vmul.f32 %v2557, %v2561
    %v2566 = vmul.f32 %v2558, %v2562
    %v2567 = vmul.f32 %v2559, %v2563
    %v2568 = vld [vmem:[%s16] sm:$0xff]
    %v2569 = vld [vmem:[%s16 + $0x8] sm:$0xff]
    %v2570 = vld [vmem:[%s16 + $0x10] sm:$0xff]
    %v2571 = vld [vmem:[%s16 + $0x18] sm:$0xff]
    %v2572 = vld [vmem:[%s17] sm:$0x1]
    %v2574 = vperm.slane %v2572, 0
    %2576 = vmatpush.msra.mxu0 0.0
    %2577 = vmatpush.msra.mxu0 0.0
    %2578 = vmatpush.msra.mxu0 0.0
    %2579 = vmatpush.msra.mxu0 0.0
    %2580 = vmatpush.msra.mxu0 0.0
    %2581 = vmatpush.msra.mxu0 0.0
    %2582 = vmatpush.msra.mxu0 0.0
    %2583 = vmatpush.msra.mxu0 0.0
    %2584 = vmatpush.msra.mxu0 0.0
    %2585 = vmatpush.msra.mxu0 0.0
    %2586 = vmatpush.msra.mxu0 0.0
    %2587 = vmatpush.msra.mxu0 0.0
    %2588 = vmatpush.msra.mxu0 %v2571
    %2589 = vmatpush.msra.mxu0 %v2570
    %2590 = vmatpush.msra.mxu0 %v2569
    %2591 = vmatpush.msra.mxu0 %v2568
    %2592 = vmatmul.f32.gmra.mxu0 %v2453
    %v2593 = vpop.f32.mrf.mxu0
    %v2594 = vadd.f32 %v2574, %v2593
    %2595 = vdwg.mxu0
    %v2596 = vsub.s32 %v158, 2
    %v2597 = vsub.s32 %v165, 2
    %v2598 = vsub.s32 %v166, 2
    %v2599 = vsub.s32 %v167, 2
    %vm2600 = vcmp.eq.s32.totalorder %v160, %v2596
    %vm2601 = vcmp.eq.s32.totalorder %v160, %v2597
    %vm2602 = vcmp.eq.s32.totalorder %v160, %v2598
    %vm2603 = vcmp.eq.s32.totalorder %v160, %v2599
    %v2604 = vsel %vm2600, 1, 0
    %v2605 = vsel %vm2601, 1, 0
    %v2606 = vsel %vm2602, 1, 0
    %v2607 = vsel %vm2603, 1, 0
    %v2608 = vcvt.s32.f32 %v2604
    %v2609 = vcvt.s32.f32 %v2605
    %v2610 = vcvt.s32.f32 %v2606
    %v2611 = vcvt.s32.f32 %v2607
    %v2612 = vadd.s32 %v158, 2
    %v2613 = vadd.s32 %v165, 2
    %v2614 = vadd.s32 %v166, 2
    %v2615 = vadd.s32 %v167, 2
    %vm2616 = vcmp.eq.s32.totalorder %v160, %v2612
    %vm2617 = vcmp.eq.s32.totalorder %v160, %v2613
    %vm2618 = vcmp.eq.s32.totalorder %v160, %v2614
    %vm2619 = vcmp.eq.s32.totalorder %v160, %v2615
    %v2620 = vsel %vm2616, 1, 0
    %v2621 = vsel %vm2617, 1, 0
    %v2622 = vsel %vm2618, 1, 0
    %v2623 = vsel %vm2619, 1, 0
    %v2624 = vcvt.s32.f32 %v2620
    %v2625 = vcvt.s32.f32 %v2621
    %v2626 = vcvt.s32.f32 %v2622
    %v2627 = vcvt.s32.f32 %v2623
    %s2628 = scalar_lea.vmem %s18, 32
    %v2629 = vld [vmem:[%s2628] sm:$0xff]
    %v2630 = vld [vmem:[%s2628 + $0x8] sm:$0xff]
    %v2631 = vld [vmem:[%s2628 + $0x10] sm:$0xff]
    %v2632 = vld [vmem:[%s2628 + $0x18] sm:$0xff]
    %v2634 = vsel %vm84, %v2608, 0
    %v2637 = vsel %vm84, %v2609, 0
    %v2640 = vsel %vm84, %v2610, 0
    %v2643 = vsel %vm84, %v2611, 0
    %2645 = vmatpush.msra.mxu0 0.0
    %2646 = vmatpush.msra.mxu0 0.0
    %2647 = vmatpush.msra.mxu0 0.0
    %2648 = vmatpush.msra.mxu0 0.0
    %2649 = vmatpush.msra.mxu0 0.0
    %2650 = vmatpush.msra.mxu0 0.0
    %2651 = vmatpush.msra.mxu0 0.0
    %2652 = vmatpush.msra.mxu0 0.0
    %2653 = vmatpush.msra.mxu0 0.0
    %2654 = vmatpush.msra.mxu0 0.0
    %2655 = vmatpush.msra.mxu0 0.0
    %2656 = vmatpush.msra.mxu0 0.0
    %2657 = vmatpush.msra.mxu0 %v2567
    %2658 = vmatpush.msra.mxu0 %v2566
    %2659 = vmatpush.msra.mxu0 %v2565
    %2660 = vmatpush.msra.mxu0 %v2564
    %2661 = vmatmul.f32.gmra.mxu0 %v2634
    %v2662 = vpop.f32.mrf.mxu0
    %v2663 = vadd.f32 0.0, %v2662
    %2664 = vmatmul.f32.gmra.mxu0 %v2637
    %v2665 = vpop.f32.mrf.mxu0
    %v2666 = vadd.f32 0.0, %v2665
    %2667 = vmatmul.f32.gmra.mxu0 %v2640
    %v2668 = vpop.f32.mrf.mxu0
    %v2669 = vadd.f32 0.0, %v2668
    %2670 = vmatmul.f32.gmra.mxu0 %v2643
    %v2671 = vpop.f32.mrf.mxu0
    %v2672 = vadd.f32 0.0, %v2671
    %2673 = vdwg.mxu0
    %v2674 = vld [vmem:[%s18] sm:$0xff]
    %v2675 = vld [vmem:[%s18 + $0x8] sm:$0xff]
    %v2676 = vld [vmem:[%s18 + $0x10] sm:$0xff]
    %v2677 = vld [vmem:[%s18 + $0x18] sm:$0xff]
    %v2679 = vsel %vm84, %v2663, 0
    %v2682 = vsel %vm84, %v2666, 0
    %v2685 = vsel %vm84, %v2669, 0
    %v2688 = vsel %vm84, %v2672, 0
    %2690 = vmatpush.msra.mxu0 0.0
    %2691 = vmatpush.msra.mxu0 0.0
    %2692 = vmatpush.msra.mxu0 0.0
    %2693 = vmatpush.msra.mxu0 0.0
    %2694 = vmatpush.msra.mxu0 0.0
    %2695 = vmatpush.msra.mxu0 0.0
    %2696 = vmatpush.msra.mxu0 0.0
    %2697 = vmatpush.msra.mxu0 0.0
    %2698 = vmatpush.msra.mxu0 0.0
    %2699 = vmatpush.msra.mxu0 0.0
    %2700 = vmatpush.msra.mxu0 0.0
    %2701 = vmatpush.msra.mxu0 0.0
    %2702 = vmatpush.msra.mxu0 %v2677
    %2703 = vmatpush.msra.mxu0 %v2676
    %2704 = vmatpush.msra.mxu0 %v2675
    %2705 = vmatpush.msra.mxu0 %v2674
    %2706 = vmatmul.f32.gmra.mxu0 %v2679
    %v2707 = vpop.f32.mrf.mxu0
    %v2708 = vadd.f32 0.0, %v2707
    %2709 = vmatmul.f32.gmra.mxu0 %v2682
    %v2710 = vpop.f32.mrf.mxu0
    %v2711 = vadd.f32 0.0, %v2710
    %2712 = vmatmul.f32.gmra.mxu0 %v2685
    %v2713 = vpop.f32.mrf.mxu0
    %v2714 = vadd.f32 0.0, %v2713
    %2715 = vmatmul.f32.gmra.mxu0 %v2688
    %v2716 = vpop.f32.mrf.mxu0
    %v2717 = vadd.f32 0.0, %v2716
    %2718 = vdwg.mxu0
    %v2720 = vsel %vm84, %v2564, 0
    %v2723 = vsel %vm84, %v2565, 0
    %v2726 = vsel %vm84, %v2566, 0
    %v2729 = vsel %vm84, %v2567, 0
    %2731 = vmatpush.msra.mxu0 0.0
    %2732 = vmatpush.msra.mxu0 0.0
    %2733 = vmatpush.msra.mxu0 0.0
    %2734 = vmatpush.msra.mxu0 0.0
    %2735 = vmatpush.msra.mxu0 0.0
    %2736 = vmatpush.msra.mxu0 0.0
    %2737 = vmatpush.msra.mxu0 0.0
    %2738 = vmatpush.msra.mxu0 0.0
    %2739 = vmatpush.msra.mxu0 0.0
    %2740 = vmatpush.msra.mxu0 0.0
    %2741 = vmatpush.msra.mxu0 0.0
    %2742 = vmatpush.msra.mxu0 0.0
    %2743 = vmatpush.msra.mxu0 %v2632
    %2744 = vmatpush.msra.mxu0 %v2631
    %2745 = vmatpush.msra.mxu0 %v2630
    %2746 = vmatpush.msra.mxu0 %v2629
    %2747 = vmatmul.f32.gmra.mxu0 %v2720
    %v2748 = vpop.f32.mrf.mxu0
    %v2749 = vadd.f32 %v2708, %v2748
    %2750 = vmatmul.f32.gmra.mxu0 %v2723
    %v2751 = vpop.f32.mrf.mxu0
    %v2752 = vadd.f32 %v2711, %v2751
    %2753 = vmatmul.f32.gmra.mxu0 %v2726
    %v2754 = vpop.f32.mrf.mxu0
    %v2755 = vadd.f32 %v2714, %v2754
    %2756 = vmatmul.f32.gmra.mxu0 %v2729
    %v2757 = vpop.f32.mrf.mxu0
    %v2758 = vadd.f32 %v2717, %v2757
    %2759 = vdwg.mxu0
    %v2761 = vsel %vm84, %v2624, 0
    %v2764 = vsel %vm84, %v2625, 0
    %v2767 = vsel %vm84, %v2626, 0
    %v2770 = vsel %vm84, %v2627, 0
    %2772 = vmatpush.msra.mxu0 0.0
    %2773 = vmatpush.msra.mxu0 0.0
    %2774 = vmatpush.msra.mxu0 0.0
    %2775 = vmatpush.msra.mxu0 0.0
    %2776 = vmatpush.msra.mxu0 0.0
    %2777 = vmatpush.msra.mxu0 0.0
    %2778 = vmatpush.msra.mxu0 0.0
    %2779 = vmatpush.msra.mxu0 0.0
    %2780 = vmatpush.msra.mxu0 0.0
    %2781 = vmatpush.msra.mxu0 0.0
    %2782 = vmatpush.msra.mxu0 0.0
    %2783 = vmatpush.msra.mxu0 0.0
    %2784 = vmatpush.msra.mxu0 %v2567
    %2785 = vmatpush.msra.mxu0 %v2566
    %2786 = vmatpush.msra.mxu0 %v2565
    %2787 = vmatpush.msra.mxu0 %v2564
    %2788 = vmatmul.f32.gmra.mxu0 %v2761
    %v2789 = vpop.f32.mrf.mxu0
    %v2790 = vadd.f32 0.0, %v2789
    %2791 = vmatmul.f32.gmra.mxu0 %v2764
    %v2792 = vpop.f32.mrf.mxu0
    %v2793 = vadd.f32 0.0, %v2792
    %2794 = vmatmul.f32.gmra.mxu0 %v2767
    %v2795 = vpop.f32.mrf.mxu0
    %v2796 = vadd.f32 0.0, %v2795
    %2797 = vmatmul.f32.gmra.mxu0 %v2770
    %v2798 = vpop.f32.mrf.mxu0
    %v2799 = vadd.f32 0.0, %v2798
    %2800 = vdwg.mxu0
    %s2801 = scalar_lea.vmem %s18, 64
    %v2802 = vld [vmem:[%s2801] sm:$0xff]
    %v2803 = vld [vmem:[%s2801 + $0x8] sm:$0xff]
    %v2804 = vld [vmem:[%s2801 + $0x10] sm:$0xff]
    %v2805 = vld [vmem:[%s2801 + $0x18] sm:$0xff]
    %v2807 = vsel %vm84, %v2790, 0
    %v2810 = vsel %vm84, %v2793, 0
    %v2813 = vsel %vm84, %v2796, 0
    %v2816 = vsel %vm84, %v2799, 0
    %2818 = vmatpush.msra.mxu0 0.0
    %2819 = vmatpush.msra.mxu0 0.0
    %2820 = vmatpush.msra.mxu0 0.0
    %2821 = vmatpush.msra.mxu0 0.0
    %2822 = vmatpush.msra.mxu0 0.0
    %2823 = vmatpush.msra.mxu0 0.0
    %2824 = vmatpush.msra.mxu0 0.0
    %2825 = vmatpush.msra.mxu0 0.0
    %2826 = vmatpush.msra.mxu0 0.0
    %2827 = vmatpush.msra.mxu0 0.0
    %2828 = vmatpush.msra.mxu0 0.0
    %2829 = vmatpush.msra.mxu0 0.0
    %2830 = vmatpush.msra.mxu0 %v2805
    %2831 = vmatpush.msra.mxu0 %v2804
    %2832 = vmatpush.msra.mxu0 %v2803
    %2833 = vmatpush.msra.mxu0 %v2802
    %2834 = vmatmul.f32.gmra.mxu0 %v2807
    %v2835 = vpop.f32.mrf.mxu0
    %v2836 = vadd.f32 0.0, %v2835
    %2837 = vmatmul.f32.gmra.mxu0 %v2810
    %v2838 = vpop.f32.mrf.mxu0
    %v2839 = vadd.f32 0.0, %v2838
    %2840 = vmatmul.f32.gmra.mxu0 %v2813
    %v2841 = vpop.f32.mrf.mxu0
    %v2842 = vadd.f32 0.0, %v2841
    %2843 = vmatmul.f32.gmra.mxu0 %v2816
    %v2844 = vpop.f32.mrf.mxu0
    %v2845 = vadd.f32 0.0, %v2844
    %2846 = vdwg.mxu0
    %v2847 = vadd.f32 %v2749, %v2836
    %v2848 = vadd.f32 %v2752, %v2839
    %v2849 = vadd.f32 %v2755, %v2842
    %v2850 = vadd.f32 %v2758, %v2845
    %v2851 = vld [vmem:[%s19] sm:$0x1]
    %v2853 = vperm.slane %v2851, 0
    %v2855 = vadd.f32 %v2847, %v2853
    %v2856 = vadd.f32 %v2848, %v2853
    %v2857 = vadd.f32 %v2849, %v2853
    %v2858 = vadd.f32 %v2850, %v2853
    %v2860 = vsel %vm1016, %v2594, 0
    %2862 = vmatpush.msra.mxu0 0.0
    %2863 = vmatpush.msra.mxu0 0.0
    %2864 = vmatpush.msra.mxu0 0.0
    %2865 = vmatpush.msra.mxu0 0.0
    %2866 = vmatpush.msra.mxu0 0.0
    %2867 = vmatpush.msra.mxu0 0.0
    %2868 = vmatpush.msra.mxu0 0.0
    %2869 = vmatpush.msra.mxu0 0.0
    %2870 = vmatpush.msra.mxu0 0.0
    %2871 = vmatpush.msra.mxu0 0.0
    %2872 = vmatpush.msra.mxu0 0.0
    %2873 = vmatpush.msra.mxu0 0.0
    %2874 = vmatpush.msra.mxu0 0.0
    %2875 = vmatpush.msra.mxu0 0.0
    %2876 = vmatpush.msra.mxu0 0.0
    %2877 = vmatpush.msra.mxu0 %v2860
    %2878 = vmatmul.f32.gmra.mxu0 %v1005
    %v2879 = vpop.f32.mrf.mxu0
    %v2880 = vadd.f32 0.0, %v2879
    %2881 = vmatmul.f32.gmra.mxu0 %v1008
    %v2882 = vpop.f32.mrf.mxu0
    %v2883 = vadd.f32 0.0, %v2882
    %2884 = vmatmul.f32.gmra.mxu0 %v1011
    %v2885 = vpop.f32.mrf.mxu0
    %v2886 = vadd.f32 0.0, %v2885
    %2887 = vmatmul.f32.gmra.mxu0 %v1014
    %v2888 = vpop.f32.mrf.mxu0
    %v2889 = vadd.f32 0.0, %v2888
    %2890 = vdwg.mxu0
    %2895 = vrot.lane.b32.xlu0 %v2880, 64
    %v2896 = vpop.permute.xlu0 %2895
    %2897 = vrot.lane.b32.xlu0 %v2883, 64
    %v2898 = vpop.permute.xlu0 %2897
    %2899 = vrot.lane.b32.xlu0 %v2886, 64
    %v2900 = vpop.permute.xlu0 %2899
    %2901 = vrot.lane.b32.xlu0 %v2889, 64
    %v2902 = vpop.permute.xlu0 %2901
    %v2907 = vadd.f32 %v2855, %v2896
    %v2908 = vadd.f32 %v2856, %v2898
    %v2909 = vadd.f32 %v2857, %v2900
    %v2910 = vadd.f32 %v2858, %v2902
    %v2911 = vtanh.pop %v2855
    %v2912 = vtanh.pop %v2856
    %v2913 = vtanh.pop %v2857
    %v2914 = vtanh.pop %v2858
    %v2915 = vmax.f32 %v2907, 0.0
    %v2916 = vmax.f32 %v2908, 0.0
    %v2917 = vmax.f32 %v2909, 0.0
    %v2918 = vmax.f32 %v2910, 0.0
    %2923 = vrot.lane.b32.xlu0 %v2915, 64
    %v2924 = vpop.permute.xlu0 %2923
    %2925 = vrot.lane.b32.xlu0 %v2916, 64
    %v2926 = vpop.permute.xlu0 %2925
    %2927 = vrot.lane.b32.xlu0 %v2917, 64
    %v2928 = vpop.permute.xlu0 %2927
    %2929 = vrot.lane.b32.xlu0 %v2918, 64
    %v2930 = vpop.permute.xlu0 %2929
    %v2935 = vmul.f32 %v2911, %v2924
    %v2936 = vmul.f32 %v2912, %v2926
    %v2937 = vmul.f32 %v2913, %v2928
    %v2938 = vmul.f32 %v2914, %v2930
    %v2939 = vmax.f32 %v2935, %v2937
    %v2940 = vmax.f32 %v2936, %v2938
    %v2941 = vmax.f32 %v2939, %v2940
    %v2943 = vrot.slane %v2941, 4
    %v2945 = vmax.f32 %v2941, %v2943
    %v2947 = vrot.slane %v2945, 2
    %v2949 = vmax.f32 %v2945, %v2947
    %v2950 = vld [vmem:[%s20] sm:$0xff]
    %v2951 = vld [vmem:[%s20 + $0x8] sm:$0xff]
    %v2952 = vld [vmem:[%s20 + $0x10] sm:$0xff]
    %v2953 = vld [vmem:[%s20 + $0x18] sm:$0xff]
    %v2954 = vld [vmem:[%s20 + $0x20] sm:$0xff]
    %v2955 = vld [vmem:[%s20 + $0x28] sm:$0xff]
    %v2956 = vld [vmem:[%s20 + $0x30] sm:$0xff]
    %v2957 = vld [vmem:[%s20 + $0x38] sm:$0xff]
    %v2958 = vld [vmem:[%s21] sm:$0x1]
    %v2960 = vperm.slane %v2958, 0
    %vm2962 = vcmask 523264
    %v2964 = vsel %vm2962, %v2949, 0
    %2966 = vmatpush.msra.mxu0 0.0
    %2967 = vmatpush.msra.mxu0 0.0
    %2968 = vmatpush.msra.mxu0 0.0
    %2969 = vmatpush.msra.mxu0 0.0
    %2970 = vmatpush.msra.mxu0 0.0
    %2971 = vmatpush.msra.mxu0 0.0
    %2972 = vmatpush.msra.mxu0 0.0
    %2973 = vmatpush.msra.mxu0 0.0
    %2974 = vmatpush.msra.mxu0 %v2957
    %2975 = vmatpush.msra.mxu0 %v2956
    %2976 = vmatpush.msra.mxu0 %v2955
    %2977 = vmatpush.msra.mxu0 %v2954
    %2978 = vmatpush.msra.mxu0 %v2953
    %2979 = vmatpush.msra.mxu0 %v2952
    %2980 = vmatpush.msra.mxu0 %v2951
    %2981 = vmatpush.msra.mxu0 %v2950
    %2982 = vmatmul.f32.gmra.mxu0 %v2964
    %v2983 = vpop.f32.mrf.mxu0
    %v2984 = vadd.f32 %v2960, %v2983
    %2985 = vdwg.mxu0
    %vm2986 = vcmask 17408
    %2987 = vst.msk [vmem:[#allocation4] sm:$0x3] %vm2986, %v2984
    // Predicated region
    $region125: #{metnet_forward.1} parent=1 // pred_check
      _
    $region126: #{metnet_forward.1} parent=1 // pred_check_branch
      %2989 = sbr.rel (0) target = $region128
    $region127: #{metnet_forward.1} parent=1 // pred_region
      %2991 = vsyncadd [#allocation5], 0
      %s2993 = sshll.u32 [#allocation4], 4
      %s2994 = int_to_ptr.vmem [resolvable:$true] %s2993
      %s2995 = sshll.u32 %s22, 4
      %s2996 = int_to_ptr.hbm [resolvable:$true] %s2995
      %2998 = dma.vmem_to_hbm [thread:$0]  %s2994, 32, %s2996, [#allocation5]
    $region128: #{metnet_forward.1} parent=1 // pred_fallthru
      _
    // Predicated region
    $region129: #{metnet_forward.1} parent=1 // pred_check
      _
    $region130: #{metnet_forward.1} parent=1 // pred_check_branch
      %3000 = sbr.rel (0) target = $region132
    $region131: #{metnet_forward.1} parent=1 // pred_region
      %3002 = dma.done [#allocation5], 32
    $region132: #{metnet_forward.1} parent=1 // pred_fallthru
      _
    %3003 = vsyncpa [#allocation5], 1

</llo_original>
